<compile_context>
chip_gen: v5e
topology: v5e:2x2
jax: 0.10.0
libtpu: 0.0.40
codegen_flags: <defaults>
</compile_context>

<pallas_src>
import functools

import jax
import jax.numpy as jnp
from jax.experimental import pallas as pl
from jax.experimental.pallas import tpu as pltpu


# ------------------------------- Pallas kernels ------------------------------

def _tap_gemm(z_ref, w_ref, taps, mc):
    """Implicit-GEMM conv for one sample: sum of 4 lane-shifted matmuls."""
    acc = None
    for t, s in enumerate(taps):
        a = z_ref[0, :, s:s + mc]                               # (4*Cin, Mc) bf16
        p = jnp.dot(w_ref[t], a, preferred_element_type=jnp.float32)
        acc = p if acc is None else acc + p
    return acc                                                  # (Cout, Mc) f32


def _conv_s2d_kernel(z_ref, w_ref, o_ref, *, taps):
    acc = _tap_gemm(z_ref, w_ref, taps, o_ref.shape[2])
    o_ref[0] = acc.astype(o_ref.dtype)                          # bf16 store


def _conv_s2d_bnstats_kernel(z_ref, w_ref, mask_ref, o_ref, sum_ref, ssq_ref, *, taps):
    acc = _tap_gemm(z_ref, w_ref, taps, o_ref.shape[2])
    o_ref[0] = acc.astype(o_ref.dtype)                          # bf16 store
    # Per-sample partial batch statistics over valid columns only (conv has no
    # bias, so masked columns contribute exactly zero); reduced across samples
    # in tiny glue -> grid axis stays "parallel".
    vf = mask_ref[...]                                          # (1, Mc) f32 {0,1}
    xm = acc * vf
    sum_ref[0] = jnp.sum(xm, axis=1, keepdims=True)             # (Cout, 1)
    ssq_ref[0] = jnp.sum(xm * acc, axis=1, keepdims=True)       # (Cout, 1)


def _head_sigmoid_kernel(a_ref, w_ref, o_ref):
    # Final Conv(ndf*8 -> 1, 4, 1, 0): full-receptive-field dot per sample + Sigmoid.
    x = jnp.sum(a_ref[...].astype(jnp.float32) * w_ref[...].astype(jnp.float32),
                axis=1, keepdims=True)                          # (N, 1) f32
    p = pl.reciprocal(1.0 + jnp.exp(-x), approx=True)           # EUP exp + EUP recip
    o_ref[...] = jnp.clip(p, 0.0, 1.0)


# --------------------------------- glue helpers ------------------------------

def _round_up(x, m):
    return ((x + m - 1) // m) * m


def _geom(H, W):
    """Geometry of one 4x4 / stride-2 / pad-1 conv layer."""
    Ho, Wo = H // 2, W // 2
    Hh, Wh = Ho + 1, Wo + 1                   # half-res grid incl. 1-px halo
    Mo = Ho * Wh                              # columns covering all valid outputs
    Mc = _round_up(Mo, 128)                   # lane-dense computed/stored columns
    Lpad = _round_up(Mc + Wh + 1, 128)        # per-sample segment (covers max tap shift)
    return Ho, Wo, Hh, Wh, Mo, Mc, Lpad


def _s2d_pack(x, Lpad):
    """(N, C, H, W) -> (N, 4C, Lpad) bf16: pad-1, space-to-depth-2, flatten per sample."""
    N, C, H, W = x.shape
    Hh, Wh = H // 2 + 1, W // 2 + 1
    xp = jnp.pad(x, ((0, 0), (0, 0), (1, 1), (1, 1)))           # (N, C, 2Hh, 2Wh)
    z = xp.reshape(N, C, Hh, 2, Wh, 2).transpose(0, 3, 5, 1, 2, 4)  # (N, p, q, C, Hh, Wh)
    z = z.reshape(N, 4 * C, Hh * Wh)
    z = jnp.pad(z, ((0, 0), (0, 0), (0, Lpad - Hh * Wh)))
    return z.astype(jnp.bfloat16)


def _pack_w(w):
    """(Cout, Cin, 4, 4) -> (4 taps, Cout, 4*Cin) bf16, channel order matching _s2d_pack."""
    Cout, Cin = w.shape[0], w.shape[1]
    wt = w.reshape(Cout, Cin, 2, 2, 2, 2)     # (Cout, Cin, bi, p, bj, q)
    wt = wt.transpose(2, 4, 0, 3, 5, 1)       # (bi, bj, Cout, p, q, Cin)
    return wt.reshape(4, Cout, 4 * Cin).astype(jnp.bfloat16)


def _valid_mask(Wh, Mo, Mc):
    col = jnp.arange(Mc)
    valid = ((col % Wh) != (Wh - 1)) & (col < Mo)
    return valid.astype(jnp.float32).reshape(1, Mc)


def _unpack_act(y, Ho, Wo, scale=None, shift=None):
    """(N, C, Mc) bf16 -> (N, C, Ho, Wo) f32 with (BN affine +) LeakyReLU(0.2).
    XLA fuses this elementwise work into the repack of the next layer."""
    N, C, _ = y.shape
    Wh = Wo + 1
    x = y[:, :, :Ho * Wh].astype(jnp.float32).reshape(N, C, Ho, Wh)[:, :, :, :Wo]
    if scale is not None:
        x = x * scale[None, :, None, None] + shift[None, :, None, None]
    return jnp.where(x >= 0, x, 0.2 * x)


def _bn_fold(s_part, ss_part, gamma, beta, count, eps=1e-5):
    """Per-sample partial sums -> per-channel scale/shift (biased batch variance,
    matching PyTorch training-mode forward).  f32 E[x^2]-E[x]^2 with >=0 guard."""
    s = jnp.sum(s_part[:, :, 0], axis=0)
    ss = jnp.sum(ss_part[:, :, 0], axis=0)
    mean = s / count
    var = jnp.maximum(ss / count - mean * mean, 0.0)
    scale = gamma * jax.lax.rsqrt(var + eps)
    shift = beta - mean * scale
    return scale, shift


# ------------------------------- layer wrappers -------------------------------

def conv_s2d(z, w4, Wh, Mc, *, mask=None):
    """One 4x4/stride-2/pad-1 conv as an implicit GEMM over per-sample segments."""
    N, C4, Lpad = z.shape
    Cout = w4.shape[1]
    taps = (0, 1, Wh, Wh + 1)
    with_stats = mask is not None

    z_spec = pl.BlockSpec((1, C4, Lpad), lambda n: (n, 0, 0))
    w_spec = pl.BlockSpec((4, Cout, C4), lambda n: (0, 0, 0))   # grid-invariant (resident)
    y_spec = pl.BlockSpec((1, Cout, Mc), lambda n: (n, 0, 0))
    cparams = pltpu.CompilerParams(dimension_semantics=("parallel",))

    if not with_stats:
        return pl.pallas_call(
            functools.partial(_conv_s2d_kernel, taps=taps),
            out_shape=jax.ShapeDtypeStruct((N, Cout, Mc), jnp.bfloat16),
            grid=(N,),
            in_specs=[z_spec, w_spec],
            out_specs=y_spec,
            compiler_params=cparams,
        )(z, w4)

    stat_spec = pl.BlockSpec((1, Cout, 1), lambda n: (n, 0, 0))
    return pl.pallas_call(
        functools.partial(_conv_s2d_bnstats_kernel, taps=taps),
        out_shape=(
            jax.ShapeDtypeStruct((N, Cout, Mc), jnp.bfloat16),
            jax.ShapeDtypeStruct((N, Cout, 1), jnp.float32),
            jax.ShapeDtypeStruct((N, Cout, 1), jnp.float32),
        ),
        grid=(N,),
        in_specs=[z_spec, w_spec, pl.BlockSpec((1, Mc), lambda n: (0, 0))],
        out_specs=(y_spec, stat_spec, stat_spec),
        compiler_params=cparams,
    )(z, w4, mask)


def head_sigmoid(a, w_row):
    N, K = a.shape
    return pl.pallas_call(
        _head_sigmoid_kernel,
        out_shape=jax.ShapeDtypeStruct((N, 1), jnp.float32),
        grid=(1,),
        in_specs=[pl.BlockSpec((N, K), lambda i: (0, 0)),
                  pl.BlockSpec((1, K), lambda i: (0, 0))],
        out_specs=pl.BlockSpec((N, 1), lambda i: (0, 0)),
    )(a, w_row)


# -------------------------------- forward pass --------------------------------

def discriminator_forward(x, params):
    N = x.shape[0]

    def conv_block(h, w, gamma=None, beta=None):
        Ho, Wo, _, Wh, Mo, Mc, Lpad = _geom(h.shape[2], h.shape[3])
        z = _s2d_pack(h, Lpad)
        w4 = _pack_w(w)
        if gamma is None:                                      # Conv + LeakyReLU
            y = conv_s2d(z, w4, Wh, Mc)
            return _unpack_act(y, Ho, Wo)
        mask = _valid_mask(Wh, Mo, Mc)                         # Conv + BN + LeakyReLU
        y, s, ss = conv_s2d(z, w4, Wh, Mc, mask=mask)
        scale, shift = _bn_fold(s, ss, gamma, beta, count=N * Ho * Wo)
        return _unpack_act(y, Ho, Wo, scale, shift)

    h = conv_block(x, params["w1"])
    h = conv_block(h, params["w2"], params["g2"], params["b2"])
    h = conv_block(h, params["w3"], params["g3"], params["b3"])
    h = conv_block(h, params["w4"], params["g4"], params["b4"])

    # Conv(ndf*8 -> 1, 4, 1, 0) + Sigmoid: input is 4x4 -> one dot per sample.
    a = h.reshape(N, -1).astype(jnp.bfloat16)                  # (N, Cin*16), (c, kh, kw) order
    w_row = params["w5"].reshape(1, -1).astype(jnp.bfloat16)   # (1, Cin*16), same order
    out = head_sigmoid(a, w_row)                               # (N, 1)
    return out.reshape(-1)                                     # == output.view(-1, 1).squeeze(1)


# ----------------------------- pure-JAX f32 reference -------------------------

def _reference_forward(x, params, eps=1e-5):
    dn = ("NCHW", "OIHW", "NCHW")

    def conv(h, w, stride, pad):
        return jax.lax.conv_general_dilated(
            h, w, (stride, stride), ((pad, pad), (pad, pad)), dimension_numbers=dn)

    def bn_lrelu(h, g, b):
        m = jnp.mean(h, axis=(0, 2, 3), keepdims=True)
        v = jnp.mean((h - m) ** 2, axis=(0, 2, 3), keepdims=True)
        h = (h - m) / jnp.sqrt(v + eps) * g[None, :, None, None] + b[None, :, None, None]
        return jnp.where(h >= 0, h, 0.2 * h)

    h = conv(x, params["w1"], 2, 1)
    h = jnp.where(h >= 0, h, 0.2 * h)
    h = bn_lrelu(conv(h, params["w2"], 2, 1), params["g2"], params["b2"])
    h = bn_lrelu(conv(h, params["w3"], 2, 1), params["g3"], params["b3"])
    h = bn_lrelu(conv(h, params["w4"], 2, 1), params["g4"], params["b4"])
    h = conv(h, params["w5"], 1, 0)
    return jax.nn.sigmoid(h).reshape(-1)


if __name__ == "__main__":
    nc, ndf, batch = 3, 8, 2
    key = jax.random.PRNGKey(0)
    ks = jax.random.split(key, 6)

    # Deterministic DCGAN-style init: conv ~ N(0, 0.02), BN gamma=1, beta=0.
    params = {
        "w1": 0.02 * jax.random.normal(ks[0], (ndf, nc, 4, 4), jnp.float32),
        "w2": 0.02 * jax.random.normal(ks[1], (ndf * 2, ndf, 4, 4), jnp.float32),
        "g2": jnp.ones((ndf * 2,), jnp.float32),
        "b2": jnp.zeros((ndf * 2,), jnp.float32),
        "w3": 0.02 * jax.random.normal(ks[2], (ndf * 4, ndf * 2, 4, 4), jnp.float32),
        "g3": jnp.ones((ndf * 4,), jnp.float32),
        "b3": jnp.zeros((ndf * 4,), jnp.float32),
        "w4": 0.02 * jax.random.normal(ks[3], (ndf * 8, ndf * 4, 4, 4), jnp.float32),
        "g4": jnp.ones((ndf * 8,), jnp.float32),
        "b4": jnp.zeros((ndf * 8,), jnp.float32),
        "w5": 0.02 * jax.random.normal(ks[4], (1, ndf * 8, 4, 4), jnp.float32),
    }

    # DCGAN discriminator architecture requires 64x64 spatial input.
    x = jax.random.normal(ks[5], (batch, nc, 64, 64), jnp.float32)

    out = jax.jit(discriminator_forward)(x, params)
    out = jax.block_until_ready(out)
    assert out.shape == (batch,), out.shape
    assert bool(jnp.all((out >= 0.0) & (out <= 1.0)))

    # Mixed-precision (bf16 operands, f32 accumulation) vs f32 reference.
    ref = jax.block_until_ready(jax.jit(_reference_forward)(x, params))
    assert bool(jnp.all(jnp.abs(out - ref) < 0.1)), (out, ref)

    print("KERNEL_OK")
</pallas_src>

<mosaic_0001>
module attributes {stable_mosaic.version = 11 : i64} {
  func.func @_conv_s2d_kernel(%arg0: i32, %arg1: memref<1x12x1280xbf16, #tpu.memory_space<vmem>>, %arg2: memref<4x8x12xbf16, #tpu.memory_space<vmem>>, %arg3: memref<1x8x1152xbf16, #tpu.memory_space<vmem>>) attributes {dimension_semantics = [#tpu.dimension_semantics<parallel>], iteration_bounds = array<i64: 2>, scalar_prefetch = 0 : i64, scratch_operands = 0 : i64, tpu.core_type = #tpu.core_type<tc>, window_params = [{transform_indices = @transform_0, window_bounds = array<i64: 1, 12, 1280>}, {pipeline_mode = #tpu.pipeline_mode<synchronous>, transform_indices = @transform_1, window_bounds = array<i64: 4, 8, 12>}, {transform_indices = @transform_2, window_bounds = array<i64: 1, 8, 1152>}]} {
    %c0 = arith.constant 0 : index
    %c0_0 = arith.constant 0 : index
    %c0_1 = arith.constant 0 : index
    %0 = vector.load %arg1[%c0, %c0_0, %c0_1] : memref<1x12x1280xbf16, #tpu.memory_space<vmem>>, vector<1x12x1152xbf16>
    %1 = vector.shape_cast %0 : vector<1x12x1152xbf16> to vector<12x1152xbf16>
    %c0_2 = arith.constant 0 : index
    %c0_3 = arith.constant 0 : index
    %c0_4 = arith.constant 0 : index
    %2 = vector.load %arg2[%c0_2, %c0_3, %c0_4] : memref<4x8x12xbf16, #tpu.memory_space<vmem>>, vector<1x8x12xbf16>
    %3 = vector.shape_cast %2 : vector<1x8x12xbf16> to vector<8x12xbf16>
    %cst = arith.constant dense<0.000000e+00> : vector<8x1152xf32>
    %4 = tpu.matmul %3, %1, %cst {dimension_numbers = #tpu.dot_dimension_numbers<[1], [0], [0], [1], [0, 0, 1, 1], [], []>} : vector<8x12xbf16>, vector<12x1152xbf16>, vector<8x1152xf32> -> vector<8x1152xf32>
    %c0_5 = arith.constant 0 : index
    %c0_6 = arith.constant 0 : index
    %c1 = arith.constant 1 : index
    %5 = vector.load %arg1[%c0_5, %c0_6, %c1] : memref<1x12x1280xbf16, #tpu.memory_space<vmem>>, vector<1x12x1152xbf16>
    %6 = vector.shape_cast %5 : vector<1x12x1152xbf16> to vector<12x1152xbf16>
    %c1_7 = arith.constant 1 : index
    %c0_8 = arith.constant 0 : index
    %c0_9 = arith.constant 0 : index
    %7 = vector.load %arg2[%c1_7, %c0_8, %c0_9] : memref<4x8x12xbf16, #tpu.memory_space<vmem>>, vector<1x8x12xbf16>
    %8 = vector.shape_cast %7 : vector<1x8x12xbf16> to vector<8x12xbf16>
    %cst_10 = arith.constant dense<0.000000e+00> : vector<8x1152xf32>
    %9 = tpu.matmul %8, %6, %cst_10 {dimension_numbers = #tpu.dot_dimension_numbers<[1], [0], [0], [1], [0, 0, 1, 1], [], []>} : vector<8x12xbf16>, vector<12x1152xbf16>, vector<8x1152xf32> -> vector<8x1152xf32>
    %10 = arith.addf %4, %9 : vector<8x1152xf32>
    %c0_11 = arith.constant 0 : index
    %c0_12 = arith.constant 0 : index
    %c33 = arith.constant 33 : index
    %11 = vector.load %arg1[%c0_11, %c0_12, %c33] : memref<1x12x1280xbf16, #tpu.memory_space<vmem>>, vector<1x12x1152xbf16>
    %12 = vector.shape_cast %11 : vector<1x12x1152xbf16> to vector<12x1152xbf16>
    %c2 = arith.constant 2 : index
    %c0_13 = arith.constant 0 : index
    %c0_14 = arith.constant 0 : index
    %13 = vector.load %arg2[%c2, %c0_13, %c0_14] : memref<4x8x12xbf16, #tpu.memory_space<vmem>>, vector<1x8x12xbf16>
    %14 = vector.shape_cast %13 : vector<1x8x12xbf16> to vector<8x12xbf16>
    %cst_15 = arith.constant dense<0.000000e+00> : vector<8x1152xf32>
    %15 = tpu.matmul %14, %12, %cst_15 {dimension_numbers = #tpu.dot_dimension_numbers<[1], [0], [0], [1], [0, 0, 1, 1], [], []>} : vector<8x12xbf16>, vector<12x1152xbf16>, vector<8x1152xf32> -> vector<8x1152xf32>
    %16 = arith.addf %10, %15 : vector<8x1152xf32>
    %c0_16 = arith.constant 0 : index
    %c0_17 = arith.constant 0 : index
    %c34 = arith.constant 34 : index
    %17 = vector.load %arg1[%c0_16, %c0_17, %c34] : memref<1x12x1280xbf16, #tpu.memory_space<vmem>>, vector<1x12x1152xbf16>
    %18 = vector.shape_cast %17 : vector<1x12x1152xbf16> to vector<12x1152xbf16>
    %c3 = arith.constant 3 : index
    %c0_18 = arith.constant 0 : index
    %c0_19 = arith.constant 0 : index
    %19 = vector.load %arg2[%c3, %c0_18, %c0_19] : memref<4x8x12xbf16, #tpu.memory_space<vmem>>, vector<1x8x12xbf16>
    %20 = vector.shape_cast %19 : vector<1x8x12xbf16> to vector<8x12xbf16>
    %cst_20 = arith.constant dense<0.000000e+00> : vector<8x1152xf32>
    %21 = tpu.matmul %20, %18, %cst_20 {dimension_numbers = #tpu.dot_dimension_numbers<[1], [0], [0], [1], [0, 0, 1, 1], [], []>} : vector<8x12xbf16>, vector<12x1152xbf16>, vector<8x1152xf32> -> vector<8x1152xf32>
    %22 = arith.addf %16, %21 : vector<8x1152xf32>
    %23 = arith.truncf %22 : vector<8x1152xf32> to vector<8x1152xbf16>
    %c0_21 = arith.constant 0 : index
    %c0_22 = arith.constant 0 : index
    %c0_23 = arith.constant 0 : index
    %24 = vector.load %arg3[%c0_21, %c0_22, %c0_23] : memref<1x8x1152xbf16, #tpu.memory_space<vmem>>, vector<1x8x1152xbf16>
    %25 = vector.shape_cast %24 : vector<1x8x1152xbf16> to vector<8x1152xbf16>
    %26 = vector.shape_cast %23 : vector<8x1152xbf16> to vector<1x8x1152xbf16>
    tpu.vector_store %arg3[%c0_21, %c0_22, %c0_23], %26 {strides = array<i32>} : memref<1x8x1152xbf16, #tpu.memory_space<vmem>>, vector<1x8x1152xbf16>,
    return
  }
  func.func @transform_0(%arg0: i32) -> (i32, i32, i32) {
    %c0_i32 = arith.constant 0 : i32
    %c0_i32_0 = arith.constant 0 : i32
    %c0_i32_1 = arith.constant 0 : i32
    return %arg0, %c0_i32, %c0_i32_0 : i32, i32, i32
  }
  func.func @transform_1(%arg0: i32) -> (i32, i32, i32) {
    %c0_i32 = arith.constant 0 : i32
    %c0_i32_0 = arith.constant 0 : i32
    %c0_i32_1 = arith.constant 0 : i32
    %c0_i32_2 = arith.constant 0 : i32
    return %c0_i32, %c0_i32_0, %c0_i32_1 : i32, i32, i32
  }
  func.func @transform_2(%arg0: i32) -> (i32, i32, i32) {
    %c0_i32 = arith.constant 0 : i32
    %c0_i32_0 = arith.constant 0 : i32
    %c0_i32_1 = arith.constant 0 : i32
    return %arg0, %c0_i32, %c0_i32_0 : i32, i32, i32
  }
}

module attributes {stable_mosaic.version = 11 : i64} {
  func.func @_conv_s2d_bnstats_kernel(%arg0: i32, %arg1: memref<1x32x512xbf16, #tpu.memory_space<vmem>>, %arg2: memref<4x16x32xbf16, #tpu.memory_space<vmem>>, %arg3: memref<1x384xf32, #tpu.memory_space<vmem>>, %arg4: memref<1x16x384xbf16, #tpu.memory_space<vmem>>, %arg5: memref<1x16x1xf32, #tpu.memory_space<vmem>>, %arg6: memref<1x16x1xf32, #tpu.memory_space<vmem>>) attributes {dimension_semantics = [#tpu.dimension_semantics<parallel>], iteration_bounds = array<i64: 2>, scalar_prefetch = 0 : i64, scratch_operands = 0 : i64, tpu.core_type = #tpu.core_type<tc>, window_params = [{transform_indices = @transform_0, window_bounds = array<i64: 1, 32, 512>}, {pipeline_mode = #tpu.pipeline_mode<synchronous>, transform_indices = @transform_1, window_bounds = array<i64: 4, 16, 32>}, {pipeline_mode = #tpu.pipeline_mode<synchronous>, transform_indices = @transform_2, window_bounds = array<i64: 1, 384>}, {transform_indices = @transform_3, window_bounds = array<i64: 1, 16, 384>}, {transform_indices = @transform_4, window_bounds = array<i64: 1, 16, 1>}, {transform_indices = @transform_5, window_bounds = array<i64: 1, 16, 1>}]} {
    %c0 = arith.constant 0 : index
    %c0_0 = arith.constant 0 : index
    %c0_1 = arith.constant 0 : index
    %0 = vector.load %arg1[%c0, %c0_0, %c0_1] : memref<1x32x512xbf16, #tpu.memory_space<vmem>>, vector<1x32x384xbf16>
    %1 = vector.shape_cast %0 : vector<1x32x384xbf16> to vector<32x384xbf16>
    %c0_2 = arith.constant 0 : index
    %c0_3 = arith.constant 0 : index
    %c0_4 = arith.constant 0 : index
    %2 = vector.load %arg2[%c0_2, %c0_3, %c0_4] : memref<4x16x32xbf16, #tpu.memory_space<vmem>>, vector<1x16x32xbf16>
    %3 = vector.shape_cast %2 : vector<1x16x32xbf16> to vector<16x32xbf16>
    %cst = arith.constant dense<0.000000e+00> : vector<16x384xf32>
    %4 = tpu.matmul %3, %1, %cst {dimension_numbers = #tpu.dot_dimension_numbers<[1], [0], [0], [1], [0, 0, 1, 1], [], []>} : vector<16x32xbf16>, vector<32x384xbf16>, vector<16x384xf32> -> vector<16x384xf32>
    %c0_5 = arith.constant 0 : index
    %c0_6 = arith.constant 0 : index
    %c1 = arith.constant 1 : index
    %5 = vector.load %arg1[%c0_5, %c0_6, %c1] : memref<1x32x512xbf16, #tpu.memory_space<vmem>>, vector<1x32x384xbf16>
    %6 = vector.shape_cast %5 : vector<1x32x384xbf16> to vector<32x384xbf16>
    %c1_7 = arith.constant 1 : index
    %c0_8 = arith.constant 0 : index
    %c0_9 = arith.constant 0 : index
    %7 = vector.load %arg2[%c1_7, %c0_8, %c0_9] : memref<4x16x32xbf16, #tpu.memory_space<vmem>>, vector<1x16x32xbf16>
    %8 = vector.shape_cast %7 : vector<1x16x32xbf16> to vector<16x32xbf16>
    %cst_10 = arith.constant dense<0.000000e+00> : vector<16x384xf32>
    %9 = tpu.matmul %8, %6, %cst_10 {dimension_numbers = #tpu.dot_dimension_numbers<[1], [0], [0], [1], [0, 0, 1, 1], [], []>} : vector<16x32xbf16>, vector<32x384xbf16>, vector<16x384xf32> -> vector<16x384xf32>
    %10 = arith.addf %4, %9 : vector<16x384xf32>
    %c0_11 = arith.constant 0 : index
    %c0_12 = arith.constant 0 : index
    %c17 = arith.constant 17 : index
    %11 = vector.load %arg1[%c0_11, %c0_12, %c17] : memref<1x32x512xbf16, #tpu.memory_space<vmem>>, vector<1x32x384xbf16>
    %12 = vector.shape_cast %11 : vector<1x32x384xbf16> to vector<32x384xbf16>
    %c2 = arith.constant 2 : index
    %c0_13 = arith.constant 0 : index
    %c0_14 = arith.constant 0 : index
    %13 = vector.load %arg2[%c2, %c0_13, %c0_14] : memref<4x16x32xbf16, #tpu.memory_space<vmem>>, vector<1x16x32xbf16>
    %14 = vector.shape_cast %13 : vector<1x16x32xbf16> to vector<16x32xbf16>
    %cst_15 = arith.constant dense<0.000000e+00> : vector<16x384xf32>
    %15 = tpu.matmul %14, %12, %cst_15 {dimension_numbers = #tpu.dot_dimension_numbers<[1], [0], [0], [1], [0, 0, 1, 1], [], []>} : vector<16x32xbf16>, vector<32x384xbf16>, vector<16x384xf32> -> vector<16x384xf32>
    %16 = arith.addf %10, %15 : vector<16x384xf32>
    %c0_16 = arith.constant 0 : index
    %c0_17 = arith.constant 0 : index
    %c18 = arith.constant 18 : index
    %17 = vector.load %arg1[%c0_16, %c0_17, %c18] : memref<1x32x512xbf16, #tpu.memory_space<vmem>>, vector<1x32x384xbf16>
    %18 = vector.shape_cast %17 : vector<1x32x384xbf16> to vector<32x384xbf16>
    %c3 = arith.constant 3 : index
    %c0_18 = arith.constant 0 : index
    %c0_19 = arith.constant 0 : index
    %19 = vector.load %arg2[%c3, %c0_18, %c0_19] : memref<4x16x32xbf16, #tpu.memory_space<vmem>>, vector<1x16x32xbf16>
    %20 = vector.shape_cast %19 : vector<1x16x32xbf16> to vector<16x32xbf16>
    %cst_20 = arith.constant dense<0.000000e+00> : vector<16x384xf32>
    %21 = tpu.matmul %20, %18, %cst_20 {dimension_numbers = #tpu.dot_dimension_numbers<[1], [0], [0], [1], [0, 0, 1, 1], [], []>} : vector<16x32xbf16>, vector<32x384xbf16>, vector<16x384xf32> -> vector<16x384xf32>
    %22 = arith.addf %16, %21 : vector<16x384xf32>
    %23 = arith.truncf %22 : vector<16x384xf32> to vector<16x384xbf16>
    %c0_21 = arith.constant 0 : index
    %c0_22 = arith.constant 0 : index
    %c0_23 = arith.constant 0 : index
    %24 = vector.load %arg4[%c0_21, %c0_22, %c0_23] : memref<1x16x384xbf16, #tpu.memory_space<vmem>>, vector<1x16x384xbf16>
    %25 = vector.shape_cast %24 : vector<1x16x384xbf16> to vector<16x384xbf16>
    %26 = vector.shape_cast %23 : vector<16x384xbf16> to vector<1x16x384xbf16>
    tpu.vector_store %arg4[%c0_21, %c0_22, %c0_23], %26 {strides = array<i32>} : memref<1x16x384xbf16, #tpu.memory_space<vmem>>, vector<1x16x384xbf16>,
    %c0_24 = arith.constant 0 : index
    %c0_25 = arith.constant 0 : index
    %27 = vector.load %arg3[%c0_24, %c0_25] : memref<1x384xf32, #tpu.memory_space<vmem>>, vector<1x384xf32>
    %28 = vector.broadcast %27 : vector<1x384xf32> to vector<16x384xf32>
    %29 = arith.mulf %22, %28 : vector<16x384xf32>
    %cst_26 = arith.constant dense<0.000000e+00> : vector<16xf32>
    %30 = vector.multi_reduction <add>, %29, %cst_26 [1] : vector<16x384xf32> to vector<16xf32>
    %31 = vector.shape_cast %30 : vector<16xf32> to vector<16x1xf32>
    %c0_27 = arith.constant 0 : index
    %c0_28 = arith.constant 0 : index
    %c0_29 = arith.constant 0 : index
    %32 = vector.load %arg5[%c0_27, %c0_28, %c0_29] : memref<1x16x1xf32, #tpu.memory_space<vmem>>, vector<1x16x1xf32>
    %33 = vector.shape_cast %32 : vector<1x16x1xf32> to vector<16x1xf32>
    %34 = vector.shape_cast %31 : vector<16x1xf32> to vector<1x16x1xf32>
    tpu.vector_store %arg5[%c0_27, %c0_28, %c0_29], %34 {strides = array<i32>} : memref<1x16x1xf32, #tpu.memory_space<vmem>>, vector<1x16x1xf32>,
    %35 = arith.mulf %29, %22 : vector<16x384xf32>
    %cst_30 = arith.constant dense<0.000000e+00> : vector<16xf32>
    %36 = vector.multi_reduction <add>, %35, %cst_30 [1] : vector<16x384xf32> to vector<16xf32>
    %37 = vector.shape_cast %36 : vector<16xf32> to vector<16x1xf32>
    %c0_31 = arith.constant 0 : index
    %c0_32 = arith.constant 0 : index
    %c0_33 = arith.constant 0 : index
    %38 = vector.load %arg6[%c0_31, %c0_32, %c0_33] : memref<1x16x1xf32, #tpu.memory_space<vmem>>, vector<1x16x1xf32>
    %39 = vector.shape_cast %38 : vector<1x16x1xf32> to vector<16x1xf32>
    %40 = vector.shape_cast %37 : vector<16x1xf32> to vector<1x16x1xf32>
    tpu.vector_store %arg6[%c0_31, %c0_32, %c0_33], %40 {strides = array<i32>} : memref<1x16x1xf32, #tpu.memory_space<vmem>>, vector<1x16x1xf32>,
    return
  }
  func.func @transform_0(%arg0: i32) -> (i32, i32, i32) {
    %c0_i32 = arith.constant 0 : i32
    %c0_i32_0 = arith.constant 0 : i32
    %c0_i32_1 = arith.constant 0 : i32
    return %arg0, %c0_i32, %c0_i32_0 : i32, i32, i32
  }
  func.func @transform_1(%arg0: i32) -> (i32, i32, i32) {
    %c0_i32 = arith.constant 0 : i32
    %c0_i32_0 = arith.constant 0 : i32
    %c0_i32_1 = arith.constant 0 : i32
    %c0_i32_2 = arith.constant 0 : i32
    return %c0_i32, %c0_i32_0, %c0_i32_1 : i32, i32, i32
  }
  func.func @transform_2(%arg0: i32) -> (i32, i32) {
    %c0_i32 = arith.constant 0 : i32
    %c0_i32_0 = arith.constant 0 : i32
    %c0_i32_1 = arith.constant 0 : i32
    return %c0_i32, %c0_i32_0 : i32, i32
  }
  func.func @transform_3(%arg0: i32) -> (i32, i32, i32) {
    %c0_i32 = arith.constant 0 : i32
    %c0_i32_0 = arith.constant 0 : i32
    %c0_i32_1 = arith.constant 0 : i32
    return %arg0, %c0_i32, %c0_i32_0 : i32, i32, i32
  }
  func.func @transform_4(%arg0: i32) -> (i32, i32, i32) {
    %c0_i32 = arith.constant 0 : i32
    %c0_i32_0 = arith.constant 0 : i32
    %c0_i32_1 = arith.constant 0 : i32
    return %arg0, %c0_i32, %c0_i32_0 : i32, i32, i32
  }
  func.func @transform_5(%arg0: i32) -> (i32, i32, i32) {
    %c0_i32 = arith.constant 0 : i32
    %c0_i32_0 = arith.constant 0 : i32
    %c0_i32_1 = arith.constant 0 : i32
    return %arg0, %c0_i32, %c0_i32_0 : i32, i32, i32
  }
}

module attributes {stable_mosaic.version = 11 : i64} {
  func.func @_conv_s2d_bnstats_kernel(%arg0: i32, %arg1: memref<1x64x256xbf16, #tpu.memory_space<vmem>>, %arg2: memref<4x32x64xbf16, #tpu.memory_space<vmem>>, %arg3: memref<1x128xf32, #tpu.memory_space<vmem>>, %arg4: memref<1x32x128xbf16, #tpu.memory_space<vmem>>, %arg5: memref<1x32x1xf32, #tpu.memory_space<vmem>>, %arg6: memref<1x32x1xf32, #tpu.memory_space<vmem>>) attributes {dimension_semantics = [#tpu.dimension_semantics<parallel>], iteration_bounds = array<i64: 2>, scalar_prefetch = 0 : i64, scratch_operands = 0 : i64, tpu.core_type = #tpu.core_type<tc>, window_params = [{transform_indices = @transform_0, window_bounds = array<i64: 1, 64, 256>}, {pipeline_mode = #tpu.pipeline_mode<synchronous>, transform_indices = @transform_1, window_bounds = array<i64: 4, 32, 64>}, {pipeline_mode = #tpu.pipeline_mode<synchronous>, transform_indices = @transform_2, window_bounds = array<i64: 1, 128>}, {transform_indices = @transform_3, window_bounds = array<i64: 1, 32, 128>}, {transform_indices = @transform_4, window_bounds = array<i64: 1, 32, 1>}, {transform_indices = @transform_5, window_bounds = array<i64: 1, 32, 1>}]} {
    %c0 = arith.constant 0 : index
    %c0_0 = arith.constant 0 : index
    %c0_1 = arith.constant 0 : index
    %0 = vector.load %arg1[%c0, %c0_0, %c0_1] : memref<1x64x256xbf16, #tpu.memory_space<vmem>>, vector<1x64x128xbf16>
    %1 = vector.shape_cast %0 : vector<1x64x128xbf16> to vector<64x128xbf16>
    %c0_2 = arith.constant 0 : index
    %c0_3 = arith.constant 0 : index
    %c0_4 = arith.constant 0 : index
    %2 = vector.load %arg2[%c0_2, %c0_3, %c0_4] : memref<4x32x64xbf16, #tpu.memory_space<vmem>>, vector<1x32x64xbf16>
    %3 = vector.shape_cast %2 : vector<1x32x64xbf16> to vector<32x64xbf16>
    %cst = arith.constant dense<0.000000e+00> : vector<32x128xf32>
    %4 = tpu.matmul %3, %1, %cst {dimension_numbers = #tpu.dot_dimension_numbers<[1], [0], [0], [1], [0, 0, 1, 1], [], []>} : vector<32x64xbf16>, vector<64x128xbf16>, vector<32x128xf32> -> vector<32x128xf32>
    %c0_5 = arith.constant 0 : index
    %c0_6 = arith.constant 0 : index
    %c1 = arith.constant 1 : index
    %5 = vector.load %arg1[%c0_5, %c0_6, %c1] : memref<1x64x256xbf16, #tpu.memory_space<vmem>>, vector<1x64x128xbf16>
    %6 = vector.shape_cast %5 : vector<1x64x128xbf16> to vector<64x128xbf16>
    %c1_7 = arith.constant 1 : index
    %c0_8 = arith.constant 0 : index
    %c0_9 = arith.constant 0 : index
    %7 = vector.load %arg2[%c1_7, %c0_8, %c0_9] : memref<4x32x64xbf16, #tpu.memory_space<vmem>>, vector<1x32x64xbf16>
    %8 = vector.shape_cast %7 : vector<1x32x64xbf16> to vector<32x64xbf16>
    %cst_10 = arith.constant dense<0.000000e+00> : vector<32x128xf32>
    %9 = tpu.matmul %8, %6, %cst_10 {dimension_numbers = #tpu.dot_dimension_numbers<[1], [0], [0], [1], [0, 0, 1, 1], [], []>} : vector<32x64xbf16>, vector<64x128xbf16>, vector<32x128xf32> -> vector<32x128xf32>
    %10 = arith.addf %4, %9 : vector<32x128xf32>
    %c0_11 = arith.constant 0 : index
    %c0_12 = arith.constant 0 : index
    %c9 = arith.constant 9 : index
    %11 = vector.load %arg1[%c0_11, %c0_12, %c9] : memref<1x64x256xbf16, #tpu.memory_space<vmem>>, vector<1x64x128xbf16>
    %12 = vector.shape_cast %11 : vector<1x64x128xbf16> to vector<64x128xbf16>
    %c2 = arith.constant 2 : index
    %c0_13 = arith.constant 0 : index
    %c0_14 = arith.constant 0 : index
    %13 = vector.load %arg2[%c2, %c0_13, %c0_14] : memref<4x32x64xbf16, #tpu.memory_space<vmem>>, vector<1x32x64xbf16>
    %14 = vector.shape_cast %13 : vector<1x32x64xbf16> to vector<32x64xbf16>
    %cst_15 = arith.constant dense<0.000000e+00> : vector<32x128xf32>
    %15 = tpu.matmul %14, %12, %cst_15 {dimension_numbers = #tpu.dot_dimension_numbers<[1], [0], [0], [1], [0, 0, 1, 1], [], []>} : vector<32x64xbf16>, vector<64x128xbf16>, vector<32x128xf32> -> vector<32x128xf32>
    %16 = arith.addf %10, %15 : vector<32x128xf32>
    %c0_16 = arith.constant 0 : index
    %c0_17 = arith.constant 0 : index
    %c10 = arith.constant 10 : index
    %17 = vector.load %arg1[%c0_16, %c0_17, %c10] : memref<1x64x256xbf16, #tpu.memory_space<vmem>>, vector<1x64x128xbf16>
    %18 = vector.shape_cast %17 : vector<1x64x128xbf16> to vector<64x128xbf16>
    %c3 = arith.constant 3 : index
    %c0_18 = arith.constant 0 : index
    %c0_19 = arith.constant 0 : index
    %19 = vector.load %arg2[%c3, %c0_18, %c0_19] : memref<4x32x64xbf16, #tpu.memory_space<vmem>>, vector<1x32x64xbf16>
    %20 = vector.shape_cast %19 : vector<1x32x64xbf16> to vector<32x64xbf16>
    %cst_20 = arith.constant dense<0.000000e+00> : vector<32x128xf32>
    %21 = tpu.matmul %20, %18, %cst_20 {dimension_numbers = #tpu.dot_dimension_numbers<[1], [0], [0], [1], [0, 0, 1, 1], [], []>} : vector<32x64xbf16>, vector<64x128xbf16>, vector<32x128xf32> -> vector<32x128xf32>
    %22 = arith.addf %16, %21 : vector<32x128xf32>
    %23 = arith.truncf %22 : vector<32x128xf32> to vector<32x128xbf16>
    %c0_21 = arith.constant 0 : index
    %c0_22 = arith.constant 0 : index
    %c0_23 = arith.constant 0 : index
    %24 = vector.load %arg4[%c0_21, %c0_22, %c0_23] : memref<1x32x128xbf16, #tpu.memory_space<vmem>>, vector<1x32x128xbf16>
    %25 = vector.shape_cast %24 : vector<1x32x128xbf16> to vector<32x128xbf16>
    %26 = vector.shape_cast %23 : vector<32x128xbf16> to vector<1x32x128xbf16>
    tpu.vector_store %arg4[%c0_21, %c0_22, %c0_23], %26 {strides = array<i32>} : memref<1x32x128xbf16, #tpu.memory_space<vmem>>, vector<1x32x128xbf16>,
    %c0_24 = arith.constant 0 : index
    %c0_25 = arith.constant 0 : index
    %27 = vector.load %arg3[%c0_24, %c0_25] : memref<1x128xf32, #tpu.memory_space<vmem>>, vector<1x128xf32>
    %28 = vector.broadcast %27 : vector<1x128xf32> to vector<32x128xf32>
    %29 = arith.mulf %22, %28 : vector<32x128xf32>
    %cst_26 = arith.constant dense<0.000000e+00> : vector<32xf32>
    %30 = vector.multi_reduction <add>, %29, %cst_26 [1] : vector<32x128xf32> to vector<32xf32>
    %31 = vector.shape_cast %30 : vector<32xf32> to vector<32x1xf32>
    %c0_27 = arith.constant 0 : index
    %c0_28 = arith.constant 0 : index
    %c0_29 = arith.constant 0 : index
    %32 = vector.load %arg5[%c0_27, %c0_28, %c0_29] : memref<1x32x1xf32, #tpu.memory_space<vmem>>, vector<1x32x1xf32>
    %33 = vector.shape_cast %32 : vector<1x32x1xf32> to vector<32x1xf32>
    %34 = vector.shape_cast %31 : vector<32x1xf32> to vector<1x32x1xf32>
    tpu.vector_store %arg5[%c0_27, %c0_28, %c0_29], %34 {strides = array<i32>} : memref<1x32x1xf32, #tpu.memory_space<vmem>>, vector<1x32x1xf32>,
    %35 = arith.mulf %29, %22 : vector<32x128xf32>
    %cst_30 = arith.constant dense<0.000000e+00> : vector<32xf32>
    %36 = vector.multi_reduction <add>, %35, %cst_30 [1] : vector<32x128xf32> to vector<32xf32>
    %37 = vector.shape_cast %36 : vector<32xf32> to vector<32x1xf32>
    %c0_31 = arith.constant 0 : index
    %c0_32 = arith.constant 0 : index
    %c0_33 = arith.constant 0 : index
    %38 = vector.load %arg6[%c0_31, %c0_32, %c0_33] : memref<1x32x1xf32, #tpu.memory_space<vmem>>, vector<1x32x1xf32>
    %39 = vector.shape_cast %38 : vector<1x32x1xf32> to vector<32x1xf32>
    %40 = vector.shape_cast %37 : vector<32x1xf32> to vector<1x32x1xf32>
    tpu.vector_store %arg6[%c0_31, %c0_32, %c0_33], %40 {strides = array<i32>} : memref<1x32x1xf32, #tpu.memory_space<vmem>>, vector<1x32x1xf32>,
    return
  }
  func.func @transform_0(%arg0: i32) -> (i32, i32, i32) {
    %c0_i32 = arith.constant 0 : i32
    %c0_i32_0 = arith.constant 0 : i32
    %c0_i32_1 = arith.constant 0 : i32
    return %arg0, %c0_i32, %c0_i32_0 : i32, i32, i32
  }
  func.func @transform_1(%arg0: i32) -> (i32, i32, i32) {
    %c0_i32 = arith.constant 0 : i32
    %c0_i32_0 = arith.constant 0 : i32
    %c0_i32_1 = arith.constant 0 : i32
    %c0_i32_2 = arith.constant 0 : i32
    return %c0_i32, %c0_i32_0, %c0_i32_1 : i32, i32, i32
  }
  func.func @transform_2(%arg0: i32) -> (i32, i32) {
    %c0_i32 = arith.constant 0 : i32
    %c0_i32_0 = arith.constant 0 : i32
    %c0_i32_1 = arith.constant 0 : i32
    return %c0_i32, %c0_i32_0 : i32, i32
  }
  func.func @transform_3(%arg0: i32) -> (i32, i32, i32) {
    %c0_i32 = arith.constant 0 : i32
    %c0_i32_0 = arith.constant 0 : i32
    %c0_i32_1 = arith.constant 0 : i32
    return %arg0, %c0_i32, %c0_i32_0 : i32, i32, i32
  }
  func.func @transform_4(%arg0: i32) -> (i32, i32, i32) {
    %c0_i32 = arith.constant 0 : i32
    %c0_i32_0 = arith.constant 0 : i32
    %c0_i32_1 = arith.constant 0 : i32
    return %arg0, %c0_i32, %c0_i32_0 : i32, i32, i32
  }
  func.func @transform_5(%arg0: i32) -> (i32, i32, i32) {
    %c0_i32 = arith.constant 0 : i32
    %c0_i32_0 = arith.constant 0 : i32
    %c0_i32_1 = arith.constant 0 : i32
    return %arg0, %c0_i32, %c0_i32_0 : i32, i32, i32
  }
}

module attributes {stable_mosaic.version = 11 : i64} {
  func.func @_conv_s2d_bnstats_kernel(%arg0: i32, %arg1: memref<1x128x256xbf16, #tpu.memory_space<vmem>>, %arg2: memref<4x64x128xbf16, #tpu.memory_space<vmem>>, %arg3: memref<1x128xf32, #tpu.memory_space<vmem>>, %arg4: memref<1x64x128xbf16, #tpu.memory_space<vmem>>, %arg5: memref<1x64x1xf32, #tpu.memory_space<vmem>>, %arg6: memref<1x64x1xf32, #tpu.memory_space<vmem>>) attributes {dimension_semantics = [#tpu.dimension_semantics<parallel>], iteration_bounds = array<i64: 2>, scalar_prefetch = 0 : i64, scratch_operands = 0 : i64, tpu.core_type = #tpu.core_type<tc>, window_params = [{transform_indices = @transform_0, window_bounds = array<i64: 1, 128, 256>}, {pipeline_mode = #tpu.pipeline_mode<synchronous>, transform_indices = @transform_1, window_bounds = array<i64: 4, 64, 128>}, {pipeline_mode = #tpu.pipeline_mode<synchronous>, transform_indices = @transform_2, window_bounds = array<i64: 1, 128>}, {transform_indices = @transform_3, window_bounds = array<i64: 1, 64, 128>}, {transform_indices = @transform_4, window_bounds = array<i64: 1, 64, 1>}, {transform_indices = @transform_5, window_bounds = array<i64: 1, 64, 1>}]} {
    %c0 = arith.constant 0 : index
    %c0_0 = arith.constant 0 : index
    %c0_1 = arith.constant 0 : index
    %0 = vector.load %arg1[%c0, %c0_0, %c0_1] : memref<1x128x256xbf16, #tpu.memory_space<vmem>>, vector<1x128x128xbf16>
    %1 = vector.shape_cast %0 : vector<1x128x128xbf16> to vector<128x128xbf16>
    %c0_2 = arith.constant 0 : index
    %c0_3 = arith.constant 0 : index
    %c0_4 = arith.constant 0 : index
    %2 = vector.load %arg2[%c0_2, %c0_3, %c0_4] : memref<4x64x128xbf16, #tpu.memory_space<vmem>>, vector<1x64x128xbf16>
    %3 = vector.shape_cast %2 : vector<1x64x128xbf16> to vector<64x128xbf16>
    %cst = arith.constant dense<0.000000e+00> : vector<64x128xf32>
    %4 = tpu.matmul %3, %1, %cst {dimension_numbers = #tpu.dot_dimension_numbers<[1], [0], [0], [1], [0, 0, 1, 1], [], []>} : vector<64x128xbf16>, vector<128x128xbf16>, vector<64x128xf32> -> vector<64x128xf32>
    %c0_5 = arith.constant 0 : index
    %c0_6 = arith.constant 0 : index
    %c1 = arith.constant 1 : index
    %5 = vector.load %arg1[%c0_5, %c0_6, %c1] : memref<1x128x256xbf16, #tpu.memory_space<vmem>>, vector<1x128x128xbf16>
    %6 = vector.shape_cast %5 : vector<1x128x128xbf16> to vector<128x128xbf16>
    %c1_7 = arith.constant 1 : index
    %c0_8 = arith.constant 0 : index
    %c0_9 = arith.constant 0 : index
    %7 = vector.load %arg2[%c1_7, %c0_8, %c0_9] : memref<4x64x128xbf16, #tpu.memory_space<vmem>>, vector<1x64x128xbf16>
    %8 = vector.shape_cast %7 : vector<1x64x128xbf16> to vector<64x128xbf16>
    %cst_10 = arith.constant dense<0.000000e+00> : vector<64x128xf32>
    %9 = tpu.matmul %8, %6, %cst_10 {dimension_numbers = #tpu.dot_dimension_numbers<[1], [0], [0], [1], [0, 0, 1, 1], [], []>} : vector<64x128xbf16>, vector<128x128xbf16>, vector<64x128xf32> -> vector<64x128xf32>
    %10 = arith.addf %4, %9 : vector<64x128xf32>
    %c0_11 = arith.constant 0 : index
    %c0_12 = arith.constant 0 : index
    %c5 = arith.constant 5 : index
    %11 = vector.load %arg1[%c0_11, %c0_12, %c5] : memref<1x128x256xbf16, #tpu.memory_space<vmem>>, vector<1x128x128xbf16>
    %12 = vector.shape_cast %11 : vector<1x128x128xbf16> to vector<128x128xbf16>
    %c2 = arith.constant 2 : index
    %c0_13 = arith.constant 0 : index
    %c0_14 = arith.constant 0 : index
    %13 = vector.load %arg2[%c2, %c0_13, %c0_14] : memref<4x64x128xbf16, #tpu.memory_space<vmem>>, vector<1x64x128xbf16>
    %14 = vector.shape_cast %13 : vector<1x64x128xbf16> to vector<64x128xbf16>
    %cst_15 = arith.constant dense<0.000000e+00> : vector<64x128xf32>
    %15 = tpu.matmul %14, %12, %cst_15 {dimension_numbers = #tpu.dot_dimension_numbers<[1], [0], [0], [1], [0, 0, 1, 1], [], []>} : vector<64x128xbf16>, vector<128x128xbf16>, vector<64x128xf32> -> vector<64x128xf32>
    %16 = arith.addf %10, %15 : vector<64x128xf32>
    %c0_16 = arith.constant 0 : index
    %c0_17 = arith.constant 0 : index
    %c6 = arith.constant 6 : index
    %17 = vector.load %arg1[%c0_16, %c0_17, %c6] : memref<1x128x256xbf16, #tpu.memory_space<vmem>>, vector<1x128x128xbf16>
    %18 = vector.shape_cast %17 : vector<1x128x128xbf16> to vector<128x128xbf16>
    %c3 = arith.constant 3 : index
    %c0_18 = arith.constant 0 : index
    %c0_19 = arith.constant 0 : index
    %19 = vector.load %arg2[%c3, %c0_18, %c0_19] : memref<4x64x128xbf16, #tpu.memory_space<vmem>>, vector<1x64x128xbf16>
    %20 = vector.shape_cast %19 : vector<1x64x128xbf16> to vector<64x128xbf16>
    %cst_20 = arith.constant dense<0.000000e+00> : vector<64x128xf32>
    %21 = tpu.matmul %20, %18, %cst_20 {dimension_numbers = #tpu.dot_dimension_numbers<[1], [0], [0], [1], [0, 0, 1, 1], [], []>} : vector<64x128xbf16>, vector<128x128xbf16>, vector<64x128xf32> -> vector<64x128xf32>
    %22 = arith.addf %16, %21 : vector<64x128xf32>
    %23 = arith.truncf %22 : vector<64x128xf32> to vector<64x128xbf16>
    %c0_21 = arith.constant 0 : index
    %c0_22 = arith.constant 0 : index
    %c0_23 = arith.constant 0 : index
    %24 = vector.load %arg4[%c0_21, %c0_22, %c0_23] : memref<1x64x128xbf16, #tpu.memory_space<vmem>>, vector<1x64x128xbf16>
    %25 = vector.shape_cast %24 : vector<1x64x128xbf16> to vector<64x128xbf16>
    %26 = vector.shape_cast %23 : vector<64x128xbf16> to vector<1x64x128xbf16>
    tpu.vector_store %arg4[%c0_21, %c0_22, %c0_23], %26 {strides = array<i32>} : memref<1x64x128xbf16, #tpu.memory_space<vmem>>, vector<1x64x128xbf16>,
    %c0_24 = arith.constant 0 : index
    %c0_25 = arith.constant 0 : index
    %27 = vector.load %arg3[%c0_24, %c0_25] : memref<1x128xf32, #tpu.memory_space<vmem>>, vector<1x128xf32>
    %28 = vector.broadcast %27 : vector<1x128xf32> to vector<64x128xf32>
    %29 = arith.mulf %22, %28 : vector<64x128xf32>
    %cst_26 = arith.constant dense<0.000000e+00> : vector<64xf32>
    %30 = vector.multi_reduction <add>, %29, %cst_26 [1] : vector<64x128xf32> to vector<64xf32>
    %31 = vector.shape_cast %30 : vector<64xf32> to vector<64x1xf32>
    %c0_27 = arith.constant 0 : index
    %c0_28 = arith.constant 0 : index
    %c0_29 = arith.constant 0 : index
    %32 = vector.load %arg5[%c0_27, %c0_28, %c0_29] : memref<1x64x1xf32, #tpu.memory_space<vmem>>, vector<1x64x1xf32>
    %33 = vector.shape_cast %32 : vector<1x64x1xf32> to vector<64x1xf32>
    %34 = vector.shape_cast %31 : vector<64x1xf32> to vector<1x64x1xf32>
    tpu.vector_store %arg5[%c0_27, %c0_28, %c0_29], %34 {strides = array<i32>} : memref<1x64x1xf32, #tpu.memory_space<vmem>>, vector<1x64x1xf32>,
    %35 = arith.mulf %29, %22 : vector<64x128xf32>
    %cst_30 = arith.constant dense<0.000000e+00> : vector<64xf32>
    %36 = vector.multi_reduction <add>, %35, %cst_30 [1] : vector<64x128xf32> to vector<64xf32>
    %37 = vector.shape_cast %36 : vector<64xf32> to vector<64x1xf32>
    %c0_31 = arith.constant 0 : index
    %c0_32 = arith.constant 0 : index
    %c0_33 = arith.constant 0 : index
    %38 = vector.load %arg6[%c0_31, %c0_32, %c0_33] : memref<1x64x1xf32, #tpu.memory_space<vmem>>, vector<1x64x1xf32>
    %39 = vector.shape_cast %38 : vector<1x64x1xf32> to vector<64x1xf32>
    %40 = vector.shape_cast %37 : vector<64x1xf32> to vector<1x64x1xf32>
    tpu.vector_store %arg6[%c0_31, %c0_32, %c0_33], %40 {strides = array<i32>} : memref<1x64x1xf32, #tpu.memory_space<vmem>>, vector<1x64x1xf32>,
    return
  }
  func.func @transform_0(%arg0: i32) -> (i32, i32, i32) {
    %c0_i32 = arith.constant 0 : i32
    %c0_i32_0 = arith.constant 0 : i32
    %c0_i32_1 = arith.constant 0 : i32
    return %arg0, %c0_i32, %c0_i32_0 : i32, i32, i32
  }
  func.func @transform_1(%arg0: i32) -> (i32, i32, i32) {
    %c0_i32 = arith.constant 0 : i32
    %c0_i32_0 = arith.constant 0 : i32
    %c0_i32_1 = arith.constant 0 : i32
    %c0_i32_2 = arith.constant 0 : i32
    return %c0_i32, %c0_i32_0, %c0_i32_1 : i32, i32, i32
  }
  func.func @transform_2(%arg0: i32) -> (i32, i32) {
    %c0_i32 = arith.constant 0 : i32
    %c0_i32_0 = arith.constant 0 : i32
    %c0_i32_1 = arith.constant 0 : i32
    return %c0_i32, %c0_i32_0 : i32, i32
  }
  func.func @transform_3(%arg0: i32) -> (i32, i32, i32) {
    %c0_i32 = arith.constant 0 : i32
    %c0_i32_0 = arith.constant 0 : i32
    %c0_i32_1 = arith.constant 0 : i32
    return %arg0, %c0_i32, %c0_i32_0 : i32, i32, i32
  }
  func.func @transform_4(%arg0: i32) -> (i32, i32, i32) {
    %c0_i32 = arith.constant 0 : i32
    %c0_i32_0 = arith.constant 0 : i32
    %c0_i32_1 = arith.constant 0 : i32
    return %arg0, %c0_i32, %c0_i32_0 : i32, i32, i32
  }
  func.func @transform_5(%arg0: i32) -> (i32, i32, i32) {
    %c0_i32 = arith.constant 0 : i32
    %c0_i32_0 = arith.constant 0 : i32
    %c0_i32_1 = arith.constant 0 : i32
    return %arg0, %c0_i32, %c0_i32_0 : i32, i32, i32
  }
}

module attributes {stable_mosaic.version = 11 : i64} {
  func.func @_head_sigmoid_kernel(%arg0: i32, %arg1: memref<2x1024xbf16, #tpu.memory_space<vmem>>, %arg2: memref<1x1024xbf16, #tpu.memory_space<vmem>>, %arg3: memref<2x1xf32, #tpu.memory_space<vmem>>) attributes {dimension_semantics = [#tpu.dimension_semantics<arbitrary>], iteration_bounds = array<i64: 1>, scalar_prefetch = 0 : i64, scratch_operands = 0 : i64, tpu.core_type = #tpu.core_type<tc>, window_params = [{pipeline_mode = #tpu.pipeline_mode<synchronous>, transform_indices = @transform_0, window_bounds = array<i64: 2, 1024>}, {pipeline_mode = #tpu.pipeline_mode<synchronous>, transform_indices = @transform_1, window_bounds = array<i64: 1, 1024>}, {pipeline_mode = #tpu.pipeline_mode<synchronous>, transform_indices = @transform_2, window_bounds = array<i64: 2, 1>}]} {
    %c0 = arith.constant 0 : index
    %c0_0 = arith.constant 0 : index
    %0 = vector.load %arg1[%c0, %c0_0] : memref<2x1024xbf16, #tpu.memory_space<vmem>>, vector<2x1024xbf16>
    %1 = arith.extf %0 : vector<2x1024xbf16> to vector<2x1024xf32>
    %c0_1 = arith.constant 0 : index
    %c0_2 = arith.constant 0 : index
    %2 = vector.load %arg2[%c0_1, %c0_2] : memref<1x1024xbf16, #tpu.memory_space<vmem>>, vector<1x1024xbf16>
    %3 = arith.extf %2 : vector<1x1024xbf16> to vector<1x1024xf32>
    %4 = vector.broadcast %3 : vector<1x1024xf32> to vector<2x1024xf32>
    %5 = arith.mulf %1, %4 : vector<2x1024xf32>
    %cst = arith.constant dense<0.000000e+00> : vector<2xf32>
    %6 = vector.multi_reduction <add>, %5, %cst [1] : vector<2x1024xf32> to vector<2xf32>
    %7 = vector.shape_cast %6 : vector<2xf32> to vector<2x1xf32>
    %cst_3 = arith.constant 0.000000e+00 : f32
    %8 = vector.broadcast %cst_3 : f32 to vector<2x1xf32>
    %9 = arith.subf %8, %7 : vector<2x1xf32>
    %10 = math.exp %9 : vector<2x1xf32>
    %cst_4 = arith.constant 1.000000e+00 : f32
    %11 = vector.broadcast %cst_4 : f32 to vector<2x1xf32>
    %12 = arith.addf %11, %10 : vector<2x1xf32>
    %13 = tpu.reciprocal %12 {approx = true} : vector<2x1xf32> -> vector<2x1xf32>
    %cst_5 = arith.constant 0.000000e+00 : f32
    %cst_6 = arith.constant 1.000000e+00 : f32
    %14 = vector.broadcast %cst_5 : f32 to vector<2x1xf32>
    %15 = arith.maximumf %14, %13 : vector<2x1xf32>
    %16 = vector.broadcast %cst_6 : f32 to vector<2x1xf32>
    %17 = arith.minimumf %16, %15 : vector<2x1xf32>
    %c0_7 = arith.constant 0 : index
    %c0_8 = arith.constant 0 : index
    %18 = vector.load %arg3[%c0_7, %c0_8] : memref<2x1xf32, #tpu.memory_space<vmem>>, vector<2x1xf32>
    tpu.vector_store %arg3[%c0_7, %c0_8], %17 {strides = array<i32>} : memref<2x1xf32, #tpu.memory_space<vmem>>, vector<2x1xf32>,
    return
  }
  func.func @transform_0(%arg0: i32) -> (i32, i32) {
    %c0_i32 = arith.constant 0 : i32
    %c0_i32_0 = arith.constant 0 : i32
    %c0_i32_1 = arith.constant 0 : i32
    return %c0_i32, %c0_i32_0 : i32, i32
  }
  func.func @transform_1(%arg0: i32) -> (i32, i32) {
    %c0_i32 = arith.constant 0 : i32
    %c0_i32_0 = arith.constant 0 : i32
    %c0_i32_1 = arith.constant 0 : i32
    return %c0_i32, %c0_i32_0 : i32, i32
  }
  func.func @transform_2(%arg0: i32) -> (i32, i32) {
    %c0_i32 = arith.constant 0 : i32
    %c0_i32_0 = arith.constant 0 : i32
    %c0_i32_1 = arith.constant 0 : i32
    return %c0_i32, %c0_i32_0 : i32, i32
  }
}

</mosaic_0001>

<llo_original>
// kernel: discriminator_forward.5
$region0: #{discriminator_forward.5}
  #allocation0 [shape = 'u32[]', space=smem, size = 0x4, offset = 0x4, fixed_abs, tag = 'smem constant byte address 0x4 - core index']
  #allocation1 [shape = 'u32[72,128]{1,0:T(1,128)}', space=vmem, size = 0x9000, scoped, tag = 'internal scratch']
  %s0 = inlined_call_operand.vmem [shape: bf16[2,12,1280], index: 0, kind: input, shape index: {}]
  %s1 = inlined_call_operand.vmem [shape: bf16[4,8,12], index: 1, kind: input, shape index: {}]
  %s2 = inlined_call_operand.vmem [shape: bf16[2,8,1152], index: 2, kind: output, shape index: {}]
  %s3 = sld [smem:[#allocation0]]
  $region41: #{discriminator_forward.5} parent=0
    _
  %s5 = ssub.s32 1, %s3
  %s6 = scalar_select 0, %s5, %s3
  loop: start=0, step=1, limit=4
  $region2: #{discriminator_forward.5} parent=0 // loop_pre_header
    _
  $region3: #{discriminator_forward.5} parent=0 // loop_header
    %s8 = sphi 0, %s12
    %p9 = scmp.ge.s32.totalorder %s8, 4
    %s18 = sphi 0, %s20
    %s21 = sphi 0, %s18
    %s22 = sphi 0, %s21
    %s38 = sphi 0, %s22
    %s42 = sphi 0, %s42
    %s44 = sphi 0, %s42
    %s45 = sphi 0, %s44
    %s59 = sphi 0, %s45
    %s65 = sphi 0, %s67
    %s68 = sphi 0, %s65
    %s69 = sphi 0, %s68
    %s85 = sphi 0, %s69
  $region4: #{discriminator_forward.5} parent=0 // loop_header_branch
    %11 = sbr.rel (%p9) target = $region8
  $region5: #{discriminator_forward.5} parent=0 // loop_body
    %s13 = ssub.s32 %s8, 1
    %s14 = ssub.s32 %s8, 2
    %s15 = sadd.s32 %s8, 1
    %s16 = ssub.s32 %s8, %s15
    %p17 = scmp.eq.s32.totalorder %s16, 0
    %s19 = sadd.s32 %s18, 1
    %s20 = scalar_select %p17, %s18, %s19
    %p23 = pneg %p17
    %p24 = scmp.eq.s32.totalorder %s8, 1
    %p25 = por %p23, %p24
    %p26 = scmp.ne.s32.totalorder %s18, %s21
    %p27 = scmp.eq.s32.totalorder %s8, 0
    %p28 = por %p26, %p27
    %p29 = scmp.ne.s32.totalorder %s18, %s21
    %p30 = scmp.eq.s32.totalorder %s13, 1
    %p31 = por %p29, %p30
    %p32 = scmp.ne.s32.totalorder %s21, %s22
    %p33 = scmp.eq.s32.totalorder %s13, 0
    %p34 = por %p32, %p33
    %p35 = scmp.ne.s32.totalorder %s21, %s22
    %p36 = scmp.eq.s32.totalorder %s14, 1
    %p37 = por %p35, %p36
    %p39 = scmp.ne.s32.totalorder %s22, %s38
    %p40 = scmp.eq.s32.totalorder %s14, 0
    %p41 = por %p39, %p40
    %s43 = sadd.s32 %s42, 1
    %p46 = scmp.eq.s32.totalorder %s8, 1
    %p47 = scmp.ne.s32.totalorder %s42, %s44
    %p48 = scmp.eq.s32.totalorder %s8, 0
    %p49 = por %p47, %p48
    %p50 = scmp.ne.s32.totalorder %s42, %s44
    %p51 = scmp.eq.s32.totalorder %s13, 1
    %p52 = por %p50, %p51
    %p53 = scmp.ne.s32.totalorder %s44, %s45
    %p54 = scmp.eq.s32.totalorder %s13, 0
    %p55 = por %p53, %p54
    %p56 = scmp.ne.s32.totalorder %s44, %s45
    %p57 = scmp.eq.s32.totalorder %s14, 1
    %p58 = por %p56, %p57
    %p60 = scmp.ne.s32.totalorder %s45, %s59
    %p61 = scmp.eq.s32.totalorder %s14, 0
    %p62 = por %p60, %p61
    %s63 = ssub.s32 %s8, %s15
    %p64 = scmp.eq.s32.totalorder %s63, 0
    %s66 = sadd.s32 %s65, 1
    %s67 = scalar_select %p64, %s65, %s66
    %p70 = pneg %p64
    %p71 = scmp.eq.s32.totalorder %s8, 1
    %p72 = por %p70, %p71
    %p73 = scmp.ne.s32.totalorder %s65, %s68
    %p74 = scmp.eq.s32.totalorder %s8, 0
    %p75 = por %p73, %p74
    %p76 = scmp.ne.s32.totalorder %s65, %s68
    %p77 = scmp.eq.s32.totalorder %s13, 1
    %p78 = por %p76, %p77
    %p79 = scmp.ne.s32.totalorder %s68, %s69
    %p80 = scmp.eq.s32.totalorder %s13, 0
    %p81 = por %p79, %p80
    %p82 = scmp.ne.s32.totalorder %s68, %s69
    %p83 = scmp.eq.s32.totalorder %s14, 1
    %p84 = por %p82, %p83
    %p86 = scmp.ne.s32.totalorder %s69, %s85
    %p87 = scmp.eq.s32.totalorder %s14, 0
    %p88 = por %p86, %p87
    %p89 = scmp.le.s32.totalorder 1, %s8
    %p90 = scmp.lt.s32.totalorder %s8, 3
    %p91 = pnand %p89, %p90
    %p92 = pneg %p91
    // Predicated region
    $region9: #{discriminator_forward.5} parent=5 // pred_check
      _
    $region10: #{discriminator_forward.5} parent=5 // pred_check_branch
      %94 = sbr.rel (%p91) target = $region12
    $region11: #{discriminator_forward.5} parent=5 // pred_region
      %s95 = ssub.s32 %s8, 1
      // Predicated region
      $region13: #{discriminator_forward.5} parent=11 // pred_check
        %p96 = pneg %p55
      $region14: #{discriminator_forward.5} parent=11 // pred_check_branch
        %98 = sbr.rel (%p96) target = $region16
      $region15: #{discriminator_forward.5} parent=11 // pred_region
        _
      $region16: #{discriminator_forward.5} parent=11 // pred_fallthru
        _
    $region12: #{discriminator_forward.5} parent=5 // pred_fallthru
      _
    %p99 = scmp.lt.s32.totalorder %s8, 2
    // Predicated region
    $region17: #{discriminator_forward.5} parent=5 // pred_check
      %p100 = pneg %p99
    $region18: #{discriminator_forward.5} parent=5 // pred_check_branch
      %102 = sbr.rel (%p100) target = $region20
    $region19: #{discriminator_forward.5} parent=5 // pred_region
      // Predicated region
      $region21: #{discriminator_forward.5} parent=19 // pred_check
        %p103 = pneg %p28
      $region22: #{discriminator_forward.5} parent=19 // pred_check_branch
        %105 = sbr.rel (%p103) target = $region24
      $region23: #{discriminator_forward.5} parent=19 // pred_region
        %p106 = scmp.lt.s32.totalorder %s8, 1
        %s107 = scalar_select %p106, %s8, 1
        %s108 = smul.addr %s107, 20
        %s109 = smul.addr %s108, 4
        %s110 = scalar_lea.vmem %s0, %s109
      $region24: #{discriminator_forward.5} parent=19 // pred_fallthru
        _
    $region20: #{discriminator_forward.5} parent=5 // pred_fallthru
      _
    %p111 = scmp.le.s32.totalorder 1, %s8
    %p112 = scmp.lt.s32.totalorder %s8, 3
    %p113 = pnand %p111, %p112
    %p114 = pneg %p113
    // Predicated region
    $region25: #{discriminator_forward.5} parent=5 // pred_check
      _
    $region26: #{discriminator_forward.5} parent=5 // pred_check_branch
      %116 = sbr.rel (%p113) target = $region28
    $region27: #{discriminator_forward.5} parent=5 // pred_region
      %s117 = ssub.s32 %s8, 1
      %p118 = scmp.lt.s32.totalorder %s13, 1
      %s119 = scalar_select %p118, %s13, 1
      %s120 = smul.addr %s119, 20
      %s121 = smul.addr %s120, 4
      %s122 = scalar_lea.vmem %s0, %s121
      %p123 = pneg %p34
      %p124 = pneg %p31
      %p125 = pneg %p55
      %p126 = pneg %p52
      %p127 = pneg %p81
      %p128 = pneg %p78
      %p129 = scmp.lt.s32.totalorder %s13, 1
      %s130 = scalar_select %p129, %s13, 1
      %s131 = smul.addr %s130, 9
      %s132 = smul.addr %s131, 4
      %s133 = scalar_lea.vmem %s2, %s132
      %p134 = scmp.lt.s32.totalorder %s13, 1
      %s135 = scalar_select %p134, %s13, 1
      %s136 = smul.addr %s135, 20
      %s137 = smul.addr %s136, 4
      %s138 = scalar_lea.vmem %s0, %s137
      %p139 = scmp.lt.s32.totalorder %s13, 1
      %s140 = scalar_select %p139, %s13, 1
      %s141 = smul.addr %s140, 9
      %s142 = smul.addr %s141, 4
      %s143 = scalar_lea.vmem %s2, %s142
      %v145 = vld [vmem:[%s138] sm:$0xff]
      %v146 = vld [vmem:[%s138 + $0x8] sm:$0xff]
      %v147 = vld [vmem:[%s138 + $0x10] sm:$0xff]
      %v148 = vld [vmem:[%s138 + $0x18] sm:$0xff]
      %v149 = vld [vmem:[%s138 + $0x20] sm:$0xf]
      %v150 = vld [vmem:[%s138 + $0x28] sm:$0x33]
      %v151 = vld [vmem:[%s138 + $0x30] sm:$0x33]
      %v152 = vld [vmem:[%s138 + $0x38] sm:$0x33]
      %v153 = vld [vmem:[%s138 + $0x40] sm:$0x33]
      %v154 = vld [vmem:[%s138 + $0x48] sm:$0x3]
      %v155 = vld [vmem:[%s1] sm:$0xf]
      %v156 = vld [vmem:[%s138 + $0x20] sm:$0xff]
      %v157 = vld [vmem:[%s138 + $0x48] sm:$0x33]
      %s158 = scalar_lea.vmem %s1, 4
      %v159 = vld [vmem:[%s158] sm:$0xf]
      %v170 = vunpack.c.l.b16 %v145
      %v171 = vunpack.c.h.b16 %v145
      %v172 = vunpack.c.l.b16 %v146
      %v173 = vunpack.c.h.b16 %v146
      %v174 = vunpack.c.l.b16 %v147
      %v175 = vunpack.c.h.b16 %v147
      %v176 = vunpack.c.l.b16 %v148
      %v177 = vunpack.c.h.b16 %v148
      %v178 = vunpack.c.l.b16 %v156
      %v179 = vunpack.c.h.b16 %v156
      %v180 = vunpack.c.l.b16 %v150
      %v181 = vunpack.c.h.b16 %v150
      %v182 = vunpack.c.l.b16 %v151
      %v183 = vunpack.c.h.b16 %v151
      %v184 = vunpack.c.l.b16 %v152
      %v185 = vunpack.c.h.b16 %v152
      %v186 = vunpack.c.l.b16 %v153
      %v187 = vunpack.c.h.b16 %v153
      %v188 = vunpack.c.l.b16 %v157
      %v189 = vunpack.c.h.b16 %v157
      %v190 = vpack.c.b16 %v180, %v170
      %v191 = vpack.c.b16 %v181, %v171
      %v192 = vpack.c.b16 %v182, %v172
      %v193 = vpack.c.b16 %v183, %v173
      %v194 = vpack.c.b16 %v184, %v174
      %v195 = vpack.c.b16 %v185, %v175
      %v196 = vpack.c.b16 %v186, %v176
      %v197 = vpack.c.b16 %v187, %v177
      %v198 = vpack.c.b16 %v188, %v178
      %v199 = vpack.c.b16 %v189, %v179
      %200 = vrot.lane.b32.xlu0 %v190, 127
      %v201 = vpop.permute.xlu0 %200
      %202 = vrot.lane.b32.xlu0 %v191, 127
      %v203 = vpop.permute.xlu0 %202
      %204 = vrot.lane.b32.xlu0 %v192, 127
      %v205 = vpop.permute.xlu0 %204
      %206 = vrot.lane.b32.xlu0 %v193, 127
      %v207 = vpop.permute.xlu0 %206
      %208 = vrot.lane.b32.xlu0 %v194, 127
      %v209 = vpop.permute.xlu0 %208
      %210 = vrot.lane.b32.xlu0 %v195, 127
      %v211 = vpop.permute.xlu0 %210
      %212 = vrot.lane.b32.xlu0 %v196, 127
      %v213 = vpop.permute.xlu0 %212
      %214 = vrot.lane.b32.xlu0 %v197, 127
      %v215 = vpop.permute.xlu0 %214
      %216 = vrot.lane.b32.xlu0 %v198, 127
      %v217 = vpop.permute.xlu0 %216
      %218 = vrot.lane.b32.xlu0 %v199, 127
      %v219 = vpop.permute.xlu0 %218
      %vm220 = vcmask 1039360
      %v221 = vsel %vm220, %v201, %v203
      %v222 = vsel %vm220, %v203, %v205
      %v223 = vsel %vm220, %v205, %v207
      %v224 = vsel %vm220, %v207, %v209
      %v225 = vsel %vm220, %v209, %v211
      %v226 = vsel %vm220, %v211, %v213
      %v227 = vsel %vm220, %v213, %v215
      %v228 = vsel %vm220, %v215, %v217
      %v229 = vsel %vm220, %v217, %v219
      %vm230 = vcmask 97280
      %v232 = vsel %vm230, %v159, 0
      %vm234 = vcmask 1045504
      %v236 = vsel %vm234, %v221, 0
      %v239 = vsel %vm234, %v222, 0
      %v242 = vsel %vm234, %v223, 0
      %v245 = vsel %vm234, %v224, 0
      %v248 = vsel %vm234, %v225, 0
      %v251 = vsel %vm234, %v226, 0
      %v254 = vsel %vm234, %v227, 0
      %v257 = vsel %vm234, %v228, 0
      %v260 = vsel %vm234, %v229, 0
      %262 = vmatpush.bf16.msra.mxu0 0
      %263 = vmatpush.bf16.msra.mxu0 0
      %264 = vmatpush.bf16.msra.mxu0 0
      %265 = vmatpush.bf16.msra.mxu0 0
      %266 = vmatpush.bf16.msra.mxu0 0
      %267 = vmatpush.bf16.msra.mxu0 0
      %268 = vmatpush.bf16.msra.mxu0 0
      %269 = vmatpush.bf16.msra.mxu0 %v236
      %270 = vmatmul.bf16.gmra.mxu0 %v232
      %v271 = vpop.f32.mrf.mxu0
      %v272 = vadd.f32 0.0, %v271
      %v273 = vpop.f32.mrf.mxu0
      %274 = vdwg.mxu0
      %275 = vmatpush.bf16.msra.mxu0 0
      %276 = vmatpush.bf16.msra.mxu0 0
      %277 = vmatpush.bf16.msra.mxu0 0
      %278 = vmatpush.bf16.msra.mxu0 0
      %279 = vmatpush.bf16.msra.mxu0 0
      %280 = vmatpush.bf16.msra.mxu0 0
      %281 = vmatpush.bf16.msra.mxu0 0
      %282 = vmatpush.bf16.msra.mxu0 %v239
      %283 = vmatmul.bf16.gmra.mxu0 %v232
      %v284 = vpop.f32.mrf.mxu0
      %v285 = vadd.f32 0.0, %v284
      %v286 = vpop.f32.mrf.mxu0
      %287 = vdwg.mxu0
      %288 = vmatpush.bf16.msra.mxu0 0
      %289 = vmatpush.bf16.msra.mxu0 0
      %290 = vmatpush.bf16.msra.mxu0 0
      %291 = vmatpush.bf16.msra.mxu0 0
      %292 = vmatpush.bf16.msra.mxu0 0
      %293 = vmatpush.bf16.msra.mxu0 0
      %294 = vmatpush.bf16.msra.mxu0 0
      %295 = vmatpush.bf16.msra.mxu0 %v242
      %296 = vmatmul.bf16.gmra.mxu0 %v232
      %v297 = vpop.f32.mrf.mxu0
      %v298 = vadd.f32 0.0, %v297
      %v299 = vpop.f32.mrf.mxu0
      %300 = vdwg.mxu0
      %301 = vmatpush.bf16.msra.mxu0 0
      %302 = vmatpush.bf16.msra.mxu0 0
      %303 = vmatpush.bf16.msra.mxu0 0
      %304 = vmatpush.bf16.msra.mxu0 0
      %305 = vmatpush.bf16.msra.mxu0 0
      %306 = vmatpush.bf16.msra.mxu0 0
      %307 = vmatpush.bf16.msra.mxu0 0
      %308 = vmatpush.bf16.msra.mxu0 %v245
      %309 = vmatmul.bf16.gmra.mxu0 %v232
      %v310 = vpop.f32.mrf.mxu0
      %v311 = vadd.f32 0.0, %v310
      %v312 = vpop.f32.mrf.mxu0
      %313 = vdwg.mxu0
      %314 = vmatpush.bf16.msra.mxu0 0
      %315 = vmatpush.bf16.msra.mxu0 0
      %316 = vmatpush.bf16.msra.mxu0 0
      %317 = vmatpush.bf16.msra.mxu0 0
      %318 = vmatpush.bf16.msra.mxu0 0
      %319 = vmatpush.bf16.msra.mxu0 0
      %320 = vmatpush.bf16.msra.mxu0 0
      %321 = vmatpush.bf16.msra.mxu0 %v248
      %322 = vmatmul.bf16.gmra.mxu0 %v232
      %v323 = vpop.f32.mrf.mxu0
      %v324 = vadd.f32 0.0, %v323
      %v325 = vpop.f32.mrf.mxu0
      %326 = vdwg.mxu0
      %327 = vmatpush.bf16.msra.mxu0 0
      %328 = vmatpush.bf16.msra.mxu0 0
      %329 = vmatpush.bf16.msra.mxu0 0
      %330 = vmatpush.bf16.msra.mxu0 0
      %331 = vmatpush.bf16.msra.mxu0 0
      %332 = vmatpush.bf16.msra.mxu0 0
      %333 = vmatpush.bf16.msra.mxu0 0
      %334 = vmatpush.bf16.msra.mxu0 %v251
      %335 = vmatmul.bf16.gmra.mxu0 %v232
      %v336 = vpop.f32.mrf.mxu0
      %v337 = vadd.f32 0.0, %v336
      %v338 = vpop.f32.mrf.mxu0
      %339 = vdwg.mxu0
      %340 = vmatpush.bf16.msra.mxu0 0
      %341 = vmatpush.bf16.msra.mxu0 0
      %342 = vmatpush.bf16.msra.mxu0 0
      %343 = vmatpush.bf16.msra.mxu0 0
      %344 = vmatpush.bf16.msra.mxu0 0
      %345 = vmatpush.bf16.msra.mxu0 0
      %346 = vmatpush.bf16.msra.mxu0 0
      %347 = vmatpush.bf16.msra.mxu0 %v254
      %348 = vmatmul.bf16.gmra.mxu0 %v232
      %v349 = vpop.f32.mrf.mxu0
      %v350 = vadd.f32 0.0, %v349
      %v351 = vpop.f32.mrf.mxu0
      %352 = vdwg.mxu0
      %353 = vmatpush.bf16.msra.mxu0 0
      %354 = vmatpush.bf16.msra.mxu0 0
      %355 = vmatpush.bf16.msra.mxu0 0
      %356 = vmatpush.bf16.msra.mxu0 0
      %357 = vmatpush.bf16.msra.mxu0 0
      %358 = vmatpush.bf16.msra.mxu0 0
      %359 = vmatpush.bf16.msra.mxu0 0
      %360 = vmatpush.bf16.msra.mxu0 %v257
      %361 = vmatmul.bf16.gmra.mxu0 %v232
      %v362 = vpop.f32.mrf.mxu0
      %v363 = vadd.f32 0.0, %v362
      %v364 = vpop.f32.mrf.mxu0
      %365 = vdwg.mxu0
      %366 = vmatpush.bf16.msra.mxu0 0
      %367 = vmatpush.bf16.msra.mxu0 0
      %368 = vmatpush.bf16.msra.mxu0 0
      %369 = vmatpush.bf16.msra.mxu0 0
      %370 = vmatpush.bf16.msra.mxu0 0
      %371 = vmatpush.bf16.msra.mxu0 0
      %372 = vmatpush.bf16.msra.mxu0 0
      %373 = vmatpush.bf16.msra.mxu0 %v260
      %374 = vmatmul.bf16.gmra.mxu0 %v232
      %v375 = vpop.f32.mrf.mxu0
      %v376 = vadd.f32 0.0, %v375
      %v377 = vpop.f32.mrf.mxu0
      %378 = vdwg.mxu0
      %v381 = vunpack.c.l.b16 %v149
      %v382 = vunpack.c.l.b16 %v154
      %v383 = vpack.c.b16 %v382, %v381
      %v385 = vsel %vm230, %v155, 0
      %v388 = vsel %vm234, %v190, 0
      %v391 = vsel %vm234, %v191, 0
      %v394 = vsel %vm234, %v192, 0
      %v397 = vsel %vm234, %v193, 0
      %v400 = vsel %vm234, %v194, 0
      %v403 = vsel %vm234, %v195, 0
      %v406 = vsel %vm234, %v196, 0
      %v409 = vsel %vm234, %v197, 0
      %v412 = vsel %vm234, %v383, 0
      %414 = vmatpush.bf16.msra.mxu0 0
      %415 = vmatpush.bf16.msra.mxu0 0
      %416 = vmatpush.bf16.msra.mxu0 0
      %417 = vmatpush.bf16.msra.mxu0 0
      %418 = vmatpush.bf16.msra.mxu0 0
      %419 = vmatpush.bf16.msra.mxu0 0
      %420 = vmatpush.bf16.msra.mxu0 0
      %421 = vmatpush.bf16.msra.mxu0 %v388
      %422 = vmatmul.bf16.gmra.mxu0 %v385
      %v423 = vpop.f32.mrf.mxu0
      %v424 = vadd.f32 %v272, %v423
      %v425 = vpop.f32.mrf.mxu0
      %426 = vdwg.mxu0
      %427 = vmatpush.bf16.msra.mxu0 0
      %428 = vmatpush.bf16.msra.mxu0 0
      %429 = vmatpush.bf16.msra.mxu0 0
      %430 = vmatpush.bf16.msra.mxu0 0
      %431 = vmatpush.bf16.msra.mxu0 0
      %432 = vmatpush.bf16.msra.mxu0 0
      %433 = vmatpush.bf16.msra.mxu0 0
      %434 = vmatpush.bf16.msra.mxu0 %v391
      %435 = vmatmul.bf16.gmra.mxu0 %v385
      %v436 = vpop.f32.mrf.mxu0
      %v437 = vadd.f32 %v285, %v436
      %v438 = vpop.f32.mrf.mxu0
      %439 = vdwg.mxu0
      %440 = vmatpush.bf16.msra.mxu0 0
      %441 = vmatpush.bf16.msra.mxu0 0
      %442 = vmatpush.bf16.msra.mxu0 0
      %443 = vmatpush.bf16.msra.mxu0 0
      %444 = vmatpush.bf16.msra.mxu0 0
      %445 = vmatpush.bf16.msra.mxu0 0
      %446 = vmatpush.bf16.msra.mxu0 0
      %447 = vmatpush.bf16.msra.mxu0 %v394
      %448 = vmatmul.bf16.gmra.mxu0 %v385
      %v449 = vpop.f32.mrf.mxu0
      %v450 = vadd.f32 %v298, %v449
      %v451 = vpop.f32.mrf.mxu0
      %452 = vdwg.mxu0
      %453 = vmatpush.bf16.msra.mxu0 0
      %454 = vmatpush.bf16.msra.mxu0 0
      %455 = vmatpush.bf16.msra.mxu0 0
      %456 = vmatpush.bf16.msra.mxu0 0
      %457 = vmatpush.bf16.msra.mxu0 0
      %458 = vmatpush.bf16.msra.mxu0 0
      %459 = vmatpush.bf16.msra.mxu0 0
      %460 = vmatpush.bf16.msra.mxu0 %v397
      %461 = vmatmul.bf16.gmra.mxu0 %v385
      %v462 = vpop.f32.mrf.mxu0
      %v463 = vadd.f32 %v311, %v462
      %v464 = vpop.f32.mrf.mxu0
      %465 = vdwg.mxu0
      %466 = vmatpush.bf16.msra.mxu0 0
      %467 = vmatpush.bf16.msra.mxu0 0
      %468 = vmatpush.bf16.msra.mxu0 0
      %469 = vmatpush.bf16.msra.mxu0 0
      %470 = vmatpush.bf16.msra.mxu0 0
      %471 = vmatpush.bf16.msra.mxu0 0
      %472 = vmatpush.bf16.msra.mxu0 0
      %473 = vmatpush.bf16.msra.mxu0 %v400
      %474 = vmatmul.bf16.gmra.mxu0 %v385
      %v475 = vpop.f32.mrf.mxu0
      %v476 = vadd.f32 %v324, %v475
      %v477 = vpop.f32.mrf.mxu0
      %478 = vdwg.mxu0
      %479 = vmatpush.bf16.msra.mxu0 0
      %480 = vmatpush.bf16.msra.mxu0 0
      %481 = vmatpush.bf16.msra.mxu0 0
      %482 = vmatpush.bf16.msra.mxu0 0
      %483 = vmatpush.bf16.msra.mxu0 0
      %484 = vmatpush.bf16.msra.mxu0 0
      %485 = vmatpush.bf16.msra.mxu0 0
      %486 = vmatpush.bf16.msra.mxu0 %v403
      %487 = vmatmul.bf16.gmra.mxu0 %v385
      %v488 = vpop.f32.mrf.mxu0
      %v489 = vadd.f32 %v337, %v488
      %v490 = vpop.f32.mrf.mxu0
      %491 = vdwg.mxu0
      %492 = vmatpush.bf16.msra.mxu0 0
      %493 = vmatpush.bf16.msra.mxu0 0
      %494 = vmatpush.bf16.msra.mxu0 0
      %495 = vmatpush.bf16.msra.mxu0 0
      %496 = vmatpush.bf16.msra.mxu0 0
      %497 = vmatpush.bf16.msra.mxu0 0
      %498 = vmatpush.bf16.msra.mxu0 0
      %499 = vmatpush.bf16.msra.mxu0 %v406
      %500 = vmatmul.bf16.gmra.mxu0 %v385
      %v501 = vpop.f32.mrf.mxu0
      %v502 = vadd.f32 %v350, %v501
      %v503 = vpop.f32.mrf.mxu0
      %504 = vdwg.mxu0
      %505 = vmatpush.bf16.msra.mxu0 0
      %506 = vmatpush.bf16.msra.mxu0 0
      %507 = vmatpush.bf16.msra.mxu0 0
      %508 = vmatpush.bf16.msra.mxu0 0
      %509 = vmatpush.bf16.msra.mxu0 0
      %510 = vmatpush.bf16.msra.mxu0 0
      %511 = vmatpush.bf16.msra.mxu0 0
      %512 = vmatpush.bf16.msra.mxu0 %v409
      %513 = vmatmul.bf16.gmra.mxu0 %v385
      %v514 = vpop.f32.mrf.mxu0
      %v515 = vadd.f32 %v363, %v514
      %v516 = vpop.f32.mrf.mxu0
      %517 = vdwg.mxu0
      %518 = vmatpush.bf16.msra.mxu0 0
      %519 = vmatpush.bf16.msra.mxu0 0
      %520 = vmatpush.bf16.msra.mxu0 0
      %521 = vmatpush.bf16.msra.mxu0 0
      %522 = vmatpush.bf16.msra.mxu0 0
      %523 = vmatpush.bf16.msra.mxu0 0
      %524 = vmatpush.bf16.msra.mxu0 0
      %525 = vmatpush.bf16.msra.mxu0 %v412
      %526 = vmatmul.bf16.gmra.mxu0 %v385
      %v527 = vpop.f32.mrf.mxu0
      %v528 = vadd.f32 %v376, %v527
      %v529 = vpop.f32.mrf.mxu0
      %530 = vdwg.mxu0
      %s531 = scalar_lea.vmem %s1, 8
      %v532 = vld [vmem:[%s531] sm:$0xf]
      %533 = vrot.lane.b32.xlu0 %v190, 95
      %v534 = vpop.permute.xlu0 %533
      %535 = vrot.lane.b32.xlu0 %v191, 95
      %v536 = vpop.permute.xlu0 %535
      %537 = vrot.lane.b32.xlu0 %v192, 95
      %v538 = vpop.permute.xlu0 %537
      %539 = vrot.lane.b32.xlu0 %v193, 95
      %v540 = vpop.permute.xlu0 %539
      %541 = vrot.lane.b32.xlu0 %v194, 95
      %v542 = vpop.permute.xlu0 %541
      %543 = vrot.lane.b32.xlu0 %v195, 95
      %v544 = vpop.permute.xlu0 %543
      %545 = vrot.lane.b32.xlu0 %v196, 95
      %v546 = vpop.permute.xlu0 %545
      %547 = vrot.lane.b32.xlu0 %v197, 95
      %v548 = vpop.permute.xlu0 %547
      %549 = vrot.lane.b32.xlu0 %v198, 95
      %v550 = vpop.permute.xlu0 %549
      %551 = vrot.lane.b32.xlu0 %v199, 95
      %v552 = vpop.permute.xlu0 %551
      %vm553 = vcmask 777216
      %v554 = vsel %vm553, %v534, %v536
      %v555 = vsel %vm553, %v536, %v538
      %v556 = vsel %vm553, %v538, %v540
      %v557 = vsel %vm553, %v540, %v542
      %v558 = vsel %vm553, %v542, %v544
      %v559 = vsel %vm553, %v544, %v546
      %v560 = vsel %vm553, %v546, %v548
      %v561 = vsel %vm553, %v548, %v550
      %v562 = vsel %vm553, %v550, %v552
      %v564 = vsel %vm230, %v532, 0
      %v567 = vsel %vm234, %v554, 0
      %v570 = vsel %vm234, %v555, 0
      %v573 = vsel %vm234, %v556, 0
      %v576 = vsel %vm234, %v557, 0
      %v579 = vsel %vm234, %v558, 0
      %v582 = vsel %vm234, %v559, 0
      %v585 = vsel %vm234, %v560, 0
      %v588 = vsel %vm234, %v561, 0
      %v591 = vsel %vm234, %v562, 0
      %593 = vmatpush.bf16.msra.mxu0 0
      %594 = vmatpush.bf16.msra.mxu0 0
      %595 = vmatpush.bf16.msra.mxu0 0
      %596 = vmatpush.bf16.msra.mxu0 0
      %597 = vmatpush.bf16.msra.mxu0 0
      %598 = vmatpush.bf16.msra.mxu0 0
      %599 = vmatpush.bf16.msra.mxu0 0
      %600 = vmatpush.bf16.msra.mxu0 %v567
      %601 = vmatmul.bf16.gmra.mxu0 %v564
      %v602 = vpop.f32.mrf.mxu0
      %v603 = vadd.f32 0.0, %v602
      %v604 = vpop.f32.mrf.mxu0
      %605 = vdwg.mxu0
      %606 = vmatpush.bf16.msra.mxu0 0
      %607 = vmatpush.bf16.msra.mxu0 0
      %608 = vmatpush.bf16.msra.mxu0 0
      %609 = vmatpush.bf16.msra.mxu0 0
      %610 = vmatpush.bf16.msra.mxu0 0
      %611 = vmatpush.bf16.msra.mxu0 0
      %612 = vmatpush.bf16.msra.mxu0 0
      %613 = vmatpush.bf16.msra.mxu0 %v570
      %614 = vmatmul.bf16.gmra.mxu0 %v564
      %v615 = vpop.f32.mrf.mxu0
      %v616 = vadd.f32 0.0, %v615
      %v617 = vpop.f32.mrf.mxu0
      %618 = vdwg.mxu0
      %619 = vmatpush.bf16.msra.mxu0 0
      %620 = vmatpush.bf16.msra.mxu0 0
      %621 = vmatpush.bf16.msra.mxu0 0
      %622 = vmatpush.bf16.msra.mxu0 0
      %623 = vmatpush.bf16.msra.mxu0 0
      %624 = vmatpush.bf16.msra.mxu0 0
      %625 = vmatpush.bf16.msra.mxu0 0
      %626 = vmatpush.bf16.msra.mxu0 %v573
      %627 = vmatmul.bf16.gmra.mxu0 %v564
      %v628 = vpop.f32.mrf.mxu0
      %v629 = vadd.f32 0.0, %v628
      %v630 = vpop.f32.mrf.mxu0
      %631 = vdwg.mxu0
      %632 = vmatpush.bf16.msra.mxu0 0
      %633 = vmatpush.bf16.msra.mxu0 0
      %634 = vmatpush.bf16.msra.mxu0 0
      %635 = vmatpush.bf16.msra.mxu0 0
      %636 = vmatpush.bf16.msra.mxu0 0
      %637 = vmatpush.bf16.msra.mxu0 0
      %638 = vmatpush.bf16.msra.mxu0 0
      %639 = vmatpush.bf16.msra.mxu0 %v576
      %640 = vmatmul.bf16.gmra.mxu0 %v564
      %v641 = vpop.f32.mrf.mxu0
      %v642 = vadd.f32 0.0, %v641
      %v643 = vpop.f32.mrf.mxu0
      %644 = vdwg.mxu0
      %645 = vmatpush.bf16.msra.mxu0 0
      %646 = vmatpush.bf16.msra.mxu0 0
      %647 = vmatpush.bf16.msra.mxu0 0
      %648 = vmatpush.bf16.msra.mxu0 0
      %649 = vmatpush.bf16.msra.mxu0 0
      %650 = vmatpush.bf16.msra.mxu0 0
      %651 = vmatpush.bf16.msra.mxu0 0
      %652 = vmatpush.bf16.msra.mxu0 %v579
      %653 = vmatmul.bf16.gmra.mxu0 %v564
      %v654 = vpop.f32.mrf.mxu0
      %v655 = vadd.f32 0.0, %v654
      %v656 = vpop.f32.mrf.mxu0
      %657 = vdwg.mxu0
      %658 = vmatpush.bf16.msra.mxu0 0
      %659 = vmatpush.bf16.msra.mxu0 0
      %660 = vmatpush.bf16.msra.mxu0 0
      %661 = vmatpush.bf16.msra.mxu0 0
      %662 = vmatpush.bf16.msra.mxu0 0
      %663 = vmatpush.bf16.msra.mxu0 0
      %664 = vmatpush.bf16.msra.mxu0 0
      %665 = vmatpush.bf16.msra.mxu0 %v582
      %666 = vmatmul.bf16.gmra.mxu0 %v564
      %v667 = vpop.f32.mrf.mxu0
      %v668 = vadd.f32 0.0, %v667
      %v669 = vpop.f32.mrf.mxu0
      %670 = vdwg.mxu0
      %671 = vmatpush.bf16.msra.mxu0 0
      %672 = vmatpush.bf16.msra.mxu0 0
      %673 = vmatpush.bf16.msra.mxu0 0
      %674 = vmatpush.bf16.msra.mxu0 0
      %675 = vmatpush.bf16.msra.mxu0 0
      %676 = vmatpush.bf16.msra.mxu0 0
      %677 = vmatpush.bf16.msra.mxu0 0
      %678 = vmatpush.bf16.msra.mxu0 %v585
      %679 = vmatmul.bf16.gmra.mxu0 %v564
      %v680 = vpop.f32.mrf.mxu0
      %v681 = vadd.f32 0.0, %v680
      %v682 = vpop.f32.mrf.mxu0
      %683 = vdwg.mxu0
      %684 = vmatpush.bf16.msra.mxu0 0
      %685 = vmatpush.bf16.msra.mxu0 0
      %686 = vmatpush.bf16.msra.mxu0 0
      %687 = vmatpush.bf16.msra.mxu0 0
      %688 = vmatpush.bf16.msra.mxu0 0
      %689 = vmatpush.bf16.msra.mxu0 0
      %690 = vmatpush.bf16.msra.mxu0 0
      %691 = vmatpush.bf16.msra.mxu0 %v588
      %692 = vmatmul.bf16.gmra.mxu0 %v564
      %v693 = vpop.f32.mrf.mxu0
      %v694 = vadd.f32 0.0, %v693
      %v695 = vpop.f32.mrf.mxu0
      %696 = vdwg.mxu0
      %697 = vmatpush.bf16.msra.mxu0 0
      %698 = vmatpush.bf16.msra.mxu0 0
      %699 = vmatpush.bf16.msra.mxu0 0
      %700 = vmatpush.bf16.msra.mxu0 0
      %701 = vmatpush.bf16.msra.mxu0 0
      %702 = vmatpush.bf16.msra.mxu0 0
      %703 = vmatpush.bf16.msra.mxu0 0
      %704 = vmatpush.bf16.msra.mxu0 %v591
      %705 = vmatmul.bf16.gmra.mxu0 %v564
      %v706 = vpop.f32.mrf.mxu0
      %v707 = vadd.f32 0.0, %v706
      %v708 = vpop.f32.mrf.mxu0
      %709 = vdwg.mxu0
      %v710 = vadd.f32 %v424, %v603
      %v711 = vadd.f32 %v437, %v616
      %v712 = vadd.f32 %v450, %v629
      %v713 = vadd.f32 %v463, %v642
      %v714 = vadd.f32 %v476, %v655
      %v715 = vadd.f32 %v489, %v668
      %v716 = vadd.f32 %v502, %v681
      %v717 = vadd.f32 %v515, %v694
      %v718 = vadd.f32 %v528, %v707
      %s719 = scalar_lea.vmem %s1, 12
      %v720 = vld [vmem:[%s719] sm:$0xf]
      %721 = vrot.lane.b32.xlu0 %v190, 94
      %v722 = vpop.permute.xlu0 %721
      %723 = vrot.lane.b32.xlu0 %v191, 94
      %v724 = vpop.permute.xlu0 %723
      %725 = vrot.lane.b32.xlu0 %v192, 94
      %v726 = vpop.permute.xlu0 %725
      %727 = vrot.lane.b32.xlu0 %v193, 94
      %v728 = vpop.permute.xlu0 %727
      %729 = vrot.lane.b32.xlu0 %v194, 94
      %v730 = vpop.permute.xlu0 %729
      %731 = vrot.lane.b32.xlu0 %v195, 94
      %v732 = vpop.permute.xlu0 %731
      %733 = vrot.lane.b32.xlu0 %v196, 94
      %v734 = vpop.permute.xlu0 %733
      %735 = vrot.lane.b32.xlu0 %v197, 94
      %v736 = vpop.permute.xlu0 %735
      %737 = vrot.lane.b32.xlu0 %v198, 94
      %v738 = vpop.permute.xlu0 %737
      %739 = vrot.lane.b32.xlu0 %v199, 94
      %v740 = vpop.permute.xlu0 %739
      %vm741 = vcmask 769024
      %v742 = vsel %vm741, %v722, %v724
      %v743 = vsel %vm741, %v724, %v726
      %v744 = vsel %vm741, %v726, %v728
      %v745 = vsel %vm741, %v728, %v730
      %v746 = vsel %vm741, %v730, %v732
      %v747 = vsel %vm741, %v732, %v734
      %v748 = vsel %vm741, %v734, %v736
      %v749 = vsel %vm741, %v736, %v738
      %v750 = vsel %vm741, %v738, %v740
      %v752 = vsel %vm230, %v720, 0
      %v755 = vsel %vm234, %v742, 0
      %v758 = vsel %vm234, %v743, 0
      %v761 = vsel %vm234, %v744, 0
      %v764 = vsel %vm234, %v745, 0
      %v767 = vsel %vm234, %v746, 0
      %v770 = vsel %vm234, %v747, 0
      %v773 = vsel %vm234, %v748, 0
      %v776 = vsel %vm234, %v749, 0
      %v779 = vsel %vm234, %v750, 0
      %781 = vmatpush.bf16.msra.mxu0 0
      %782 = vmatpush.bf16.msra.mxu0 0
      %783 = vmatpush.bf16.msra.mxu0 0
      %784 = vmatpush.bf16.msra.mxu0 0
      %785 = vmatpush.bf16.msra.mxu0 0
      %786 = vmatpush.bf16.msra.mxu0 0
      %787 = vmatpush.bf16.msra.mxu0 0
      %788 = vmatpush.bf16.msra.mxu0 %v755
      %789 = vmatmul.bf16.gmra.mxu0 %v752
      %v790 = vpop.f32.mrf.mxu0
      %v791 = vadd.f32 0.0, %v790
      %v792 = vpop.f32.mrf.mxu0
      %793 = vdwg.mxu0
      %794 = vmatpush.bf16.msra.mxu0 0
      %795 = vmatpush.bf16.msra.mxu0 0
      %796 = vmatpush.bf16.msra.mxu0 0
      %797 = vmatpush.bf16.msra.mxu0 0
      %798 = vmatpush.bf16.msra.mxu0 0
      %799 = vmatpush.bf16.msra.mxu0 0
      %800 = vmatpush.bf16.msra.mxu0 0
      %801 = vmatpush.bf16.msra.mxu0 %v758
      %802 = vmatmul.bf16.gmra.mxu0 %v752
      %v803 = vpop.f32.mrf.mxu0
      %v804 = vadd.f32 0.0, %v803
      %v805 = vpop.f32.mrf.mxu0
      %806 = vdwg.mxu0
      %807 = vmatpush.bf16.msra.mxu0 0
      %808 = vmatpush.bf16.msra.mxu0 0
      %809 = vmatpush.bf16.msra.mxu0 0
      %810 = vmatpush.bf16.msra.mxu0 0
      %811 = vmatpush.bf16.msra.mxu0 0
      %812 = vmatpush.bf16.msra.mxu0 0
      %813 = vmatpush.bf16.msra.mxu0 0
      %814 = vmatpush.bf16.msra.mxu0 %v761
      %815 = vmatmul.bf16.gmra.mxu0 %v752
      %v816 = vpop.f32.mrf.mxu0
      %v817 = vadd.f32 0.0, %v816
      %v818 = vpop.f32.mrf.mxu0
      %819 = vdwg.mxu0
      %820 = vmatpush.bf16.msra.mxu0 0
      %821 = vmatpush.bf16.msra.mxu0 0
      %822 = vmatpush.bf16.msra.mxu0 0
      %823 = vmatpush.bf16.msra.mxu0 0
      %824 = vmatpush.bf16.msra.mxu0 0
      %825 = vmatpush.bf16.msra.mxu0 0
      %826 = vmatpush.bf16.msra.mxu0 0
      %827 = vmatpush.bf16.msra.mxu0 %v764
      %828 = vmatmul.bf16.gmra.mxu0 %v752
      %v829 = vpop.f32.mrf.mxu0
      %v830 = vadd.f32 0.0, %v829
      %v831 = vpop.f32.mrf.mxu0
      %832 = vdwg.mxu0
      %833 = vmatpush.bf16.msra.mxu0 0
      %834 = vmatpush.bf16.msra.mxu0 0
      %835 = vmatpush.bf16.msra.mxu0 0
      %836 = vmatpush.bf16.msra.mxu0 0
      %837 = vmatpush.bf16.msra.mxu0 0
      %838 = vmatpush.bf16.msra.mxu0 0
      %839 = vmatpush.bf16.msra.mxu0 0
      %840 = vmatpush.bf16.msra.mxu0 %v767
      %841 = vmatmul.bf16.gmra.mxu0 %v752
      %v842 = vpop.f32.mrf.mxu0
      %v843 = vadd.f32 0.0, %v842
      %v844 = vpop.f32.mrf.mxu0
      %845 = vdwg.mxu0
      %846 = vmatpush.bf16.msra.mxu0 0
      %847 = vmatpush.bf16.msra.mxu0 0
      %848 = vmatpush.bf16.msra.mxu0 0
      %849 = vmatpush.bf16.msra.mxu0 0
      %850 = vmatpush.bf16.msra.mxu0 0
      %851 = vmatpush.bf16.msra.mxu0 0
      %852 = vmatpush.bf16.msra.mxu0 0
      %853 = vmatpush.bf16.msra.mxu0 %v770
      %854 = vmatmul.bf16.gmra.mxu0 %v752
      %v855 = vpop.f32.mrf.mxu0
      %v856 = vadd.f32 0.0, %v855
      %v857 = vpop.f32.mrf.mxu0
      %858 = vdwg.mxu0
      %859 = vmatpush.bf16.msra.mxu0 0
      %860 = vmatpush.bf16.msra.mxu0 0
      %861 = vmatpush.bf16.msra.mxu0 0
      %862 = vmatpush.bf16.msra.mxu0 0
      %863 = vmatpush.bf16.msra.mxu0 0
      %864 = vmatpush.bf16.msra.mxu0 0
      %865 = vmatpush.bf16.msra.mxu0 0
      %866 = vmatpush.bf16.msra.mxu0 %v773
      %867 = vmatmul.bf16.gmra.mxu0 %v752
      %v868 = vpop.f32.mrf.mxu0
      %v869 = vadd.f32 0.0, %v868
      %v870 = vpop.f32.mrf.mxu0
      %871 = vdwg.mxu0
      %872 = vmatpush.bf16.msra.mxu0 0
      %873 = vmatpush.bf16.msra.mxu0 0
      %874 = vmatpush.bf16.msra.mxu0 0
      %875 = vmatpush.bf16.msra.mxu0 0
      %876 = vmatpush.bf16.msra.mxu0 0
      %877 = vmatpush.bf16.msra.mxu0 0
      %878 = vmatpush.bf16.msra.mxu0 0
      %879 = vmatpush.bf16.msra.mxu0 %v776
      %880 = vmatmul.bf16.gmra.mxu0 %v752
      %v881 = vpop.f32.mrf.mxu0
      %v882 = vadd.f32 0.0, %v881
      %v883 = vpop.f32.mrf.mxu0
      %884 = vdwg.mxu0
      %885 = vmatpush.bf16.msra.mxu0 0
      %886 = vmatpush.bf16.msra.mxu0 0
      %887 = vmatpush.bf16.msra.mxu0 0
      %888 = vmatpush.bf16.msra.mxu0 0
      %889 = vmatpush.bf16.msra.mxu0 0
      %890 = vmatpush.bf16.msra.mxu0 0
      %891 = vmatpush.bf16.msra.mxu0 0
      %892 = vmatpush.bf16.msra.mxu0 %v779
      %893 = vmatmul.bf16.gmra.mxu0 %v752
      %v894 = vpop.f32.mrf.mxu0
      %v895 = vadd.f32 0.0, %v894
      %v896 = vpop.f32.mrf.mxu0
      %897 = vdwg.mxu0
      %v898 = vadd.f32 %v710, %v791
      %v899 = vadd.f32 %v711, %v804
      %v900 = vadd.f32 %v712, %v817
      %v901 = vadd.f32 %v713, %v830
      %v902 = vadd.f32 %v714, %v843
      %v903 = vadd.f32 %v715, %v856
      %v904 = vadd.f32 %v716, %v869
      %v905 = vadd.f32 %v717, %v882
      %v906 = vadd.f32 %v718, %v895
      %v907 = vpack.c.bf16 %v899, %v898
      %v908 = vpack.c.bf16 %v901, %v900
      %v909 = vpack.c.bf16 %v903, %v902
      %v910 = vpack.c.bf16 %v905, %v904
      %v911 = vpack.c.bf16 %v906, %v906
      %912 = vst [vmem:[%s143] sm:$0xff] %v907
      %913 = vst [vmem:[%s143 + $0x8] sm:$0xff] %v908
      %914 = vst [vmem:[%s143 + $0x10] sm:$0xff] %v909
      %915 = vst [vmem:[%s143 + $0x18] sm:$0xff] %v910
      %916 = vst [vmem:[%s143 + $0x20] sm:$0xf] %v911
      %p917 = scmp.lt.s32.totalorder %s13, 1
      %s918 = scalar_select %p917, %s13, 1
      %s919 = smul.addr %s918, 9
      %s920 = smul.addr %s919, 4
      %s921 = scalar_lea.vmem %s2, %s920
      // Predicated region
      $region29: #{discriminator_forward.5} parent=27 // pred_check
        %p922 = pneg %p78
      $region30: #{discriminator_forward.5} parent=27 // pred_check_branch
        %924 = sbr.rel (%p922) target = $region32
      $region31: #{discriminator_forward.5} parent=27 // pred_region
        _
      $region32: #{discriminator_forward.5} parent=27 // pred_fallthru
        _
    $region28: #{discriminator_forward.5} parent=5 // pred_fallthru
      _
    %p925 = scmp.le.s32.totalorder 2, %s8
    // Predicated region
    $region33: #{discriminator_forward.5} parent=5 // pred_check
      %p926 = pneg %p925
    $region34: #{discriminator_forward.5} parent=5 // pred_check_branch
      %928 = sbr.rel (%p926) target = $region36
    $region35: #{discriminator_forward.5} parent=5 // pred_region
      %s929 = ssub.s32 %s8, 2
      // Predicated region
      $region37: #{discriminator_forward.5} parent=35 // pred_check
        %p930 = pneg %p84
      $region38: #{discriminator_forward.5} parent=35 // pred_check_branch
        %932 = sbr.rel (%p930) target = $region40
      $region39: #{discriminator_forward.5} parent=35 // pred_region
        %p933 = scmp.lt.s32.totalorder %s14, 1
        %s934 = scalar_select %p933, %s14, 1
        %s935 = smul.addr %s934, 9
        %s936 = smul.addr %s935, 4
        %s937 = scalar_lea.vmem %s2, %s936
      $region40: #{discriminator_forward.5} parent=35 // pred_fallthru
        _
    $region36: #{discriminator_forward.5} parent=5 // pred_fallthru
      _
  $region6: #{discriminator_forward.5} parent=0 // loop_footer
    %s12 = sadd.s32 1, %s8
  $region7: #{discriminator_forward.5} parent=0 // loop_footer_branch
    %7 = sbr.rel target = $region3
  $region8: #{discriminator_forward.5} parent=0 // loop_exit
    _

// kernel: discriminator_forward.6
$region0: #{discriminator_forward.6}
  #allocation0 [shape = 'u32[]', space=smem, size = 0x4, offset = 0x4, fixed_abs, tag = 'smem constant byte address 0x4 - core index']
  #allocation1 [shape = 'u32[72,128]{1,0:T(1,128)}', space=vmem, size = 0x9000, scoped, tag = 'internal scratch']
  %s0 = inlined_call_operand.vmem [shape: bf16[2,32,512], index: 0, kind: input, shape index: {}]
  %s1 = inlined_call_operand.vmem [shape: bf16[4,16,32], index: 1, kind: input, shape index: {}]
  %s2 = inlined_call_operand.vmem [shape: f32[1,384], index: 2, kind: input, shape index: {}]
  %s3 = inlined_call_operand.vmem [shape: bf16[2,16,384], index: 3, kind: output, shape index: {0}]
  %s4 = inlined_call_operand.vmem [shape: f32[2,16,1], index: 4, kind: output, shape index: {1}]
  %s5 = inlined_call_operand.vmem [shape: f32[2,16,1], index: 5, kind: output, shape index: {2}]
  %6 = xla_tuple %s3, %s4, %s5
  %s7 = sld [smem:[#allocation0]]
  $region61: #{discriminator_forward.6} parent=0
    _
  %s9 = ssub.s32 1, %s7
  %s10 = scalar_select 0, %s9, %s7
  loop: start=0, step=1, limit=4
  $region2: #{discriminator_forward.6} parent=0 // loop_pre_header
    _
  $region3: #{discriminator_forward.6} parent=0 // loop_header
    %s12 = sphi 0, %s16
    %p13 = scmp.ge.s32.totalorder %s12, 4
    %s22 = sphi 0, %s24
    %s25 = sphi 0, %s22
    %s26 = sphi 0, %s25
    %s42 = sphi 0, %s26
    %s46 = sphi 0, %s46
    %s48 = sphi 0, %s46
    %s49 = sphi 0, %s48
    %s63 = sphi 0, %s49
    %s67 = sphi 0, %s67
    %s69 = sphi 0, %s67
    %s70 = sphi 0, %s69
    %s84 = sphi 0, %s70
    %s90 = sphi 0, %s92
    %s93 = sphi 0, %s90
    %s94 = sphi 0, %s93
    %s110 = sphi 0, %s94
    %s116 = sphi 0, %s118
    %s119 = sphi 0, %s116
    %s120 = sphi 0, %s119
    %s136 = sphi 0, %s120
    %s142 = sphi 0, %s144
    %s145 = sphi 0, %s142
    %s146 = sphi 0, %s145
    %s162 = sphi 0, %s146
  $region4: #{discriminator_forward.6} parent=0 // loop_header_branch
    %15 = sbr.rel (%p13) target = $region8
  $region5: #{discriminator_forward.6} parent=0 // loop_body
    %s17 = ssub.s32 %s12, 1
    %s18 = ssub.s32 %s12, 2
    %s19 = sadd.s32 %s12, 1
    %s20 = ssub.s32 %s12, %s19
    %p21 = scmp.eq.s32.totalorder %s20, 0
    %s23 = sadd.s32 %s22, 1
    %s24 = scalar_select %p21, %s22, %s23
    %p27 = pneg %p21
    %p28 = scmp.eq.s32.totalorder %s12, 1
    %p29 = por %p27, %p28
    %p30 = scmp.ne.s32.totalorder %s22, %s25
    %p31 = scmp.eq.s32.totalorder %s12, 0
    %p32 = por %p30, %p31
    %p33 = scmp.ne.s32.totalorder %s22, %s25
    %p34 = scmp.eq.s32.totalorder %s17, 1
    %p35 = por %p33, %p34
    %p36 = scmp.ne.s32.totalorder %s25, %s26
    %p37 = scmp.eq.s32.totalorder %s17, 0
    %p38 = por %p36, %p37
    %p39 = scmp.ne.s32.totalorder %s25, %s26
    %p40 = scmp.eq.s32.totalorder %s18, 1
    %p41 = por %p39, %p40
    %p43 = scmp.ne.s32.totalorder %s26, %s42
    %p44 = scmp.eq.s32.totalorder %s18, 0
    %p45 = por %p43, %p44
    %s47 = sadd.s32 %s46, 1
    %p50 = scmp.eq.s32.totalorder %s12, 1
    %p51 = scmp.ne.s32.totalorder %s46, %s48
    %p52 = scmp.eq.s32.totalorder %s12, 0
    %p53 = por %p51, %p52
    %p54 = scmp.ne.s32.totalorder %s46, %s48
    %p55 = scmp.eq.s32.totalorder %s17, 1
    %p56 = por %p54, %p55
    %p57 = scmp.ne.s32.totalorder %s48, %s49
    %p58 = scmp.eq.s32.totalorder %s17, 0
    %p59 = por %p57, %p58
    %p60 = scmp.ne.s32.totalorder %s48, %s49
    %p61 = scmp.eq.s32.totalorder %s18, 1
    %p62 = por %p60, %p61
    %p64 = scmp.ne.s32.totalorder %s49, %s63
    %p65 = scmp.eq.s32.totalorder %s18, 0
    %p66 = por %p64, %p65
    %s68 = sadd.s32 %s67, 1
    %p71 = scmp.eq.s32.totalorder %s12, 1
    %p72 = scmp.ne.s32.totalorder %s67, %s69
    %p73 = scmp.eq.s32.totalorder %s12, 0
    %p74 = por %p72, %p73
    %p75 = scmp.ne.s32.totalorder %s67, %s69
    %p76 = scmp.eq.s32.totalorder %s17, 1
    %p77 = por %p75, %p76
    %p78 = scmp.ne.s32.totalorder %s69, %s70
    %p79 = scmp.eq.s32.totalorder %s17, 0
    %p80 = por %p78, %p79
    %p81 = scmp.ne.s32.totalorder %s69, %s70
    %p82 = scmp.eq.s32.totalorder %s18, 1
    %p83 = por %p81, %p82
    %p85 = scmp.ne.s32.totalorder %s70, %s84
    %p86 = scmp.eq.s32.totalorder %s18, 0
    %p87 = por %p85, %p86
    %s88 = ssub.s32 %s12, %s19
    %p89 = scmp.eq.s32.totalorder %s88, 0
    %s91 = sadd.s32 %s90, 1
    %s92 = scalar_select %p89, %s90, %s91
    %p95 = pneg %p89
    %p96 = scmp.eq.s32.totalorder %s12, 1
    %p97 = por %p95, %p96
    %p98 = scmp.ne.s32.totalorder %s90, %s93
    %p99 = scmp.eq.s32.totalorder %s12, 0
    %p100 = por %p98, %p99
    %p101 = scmp.ne.s32.totalorder %s90, %s93
    %p102 = scmp.eq.s32.totalorder %s17, 1
    %p103 = por %p101, %p102
    %p104 = scmp.ne.s32.totalorder %s93, %s94
    %p105 = scmp.eq.s32.totalorder %s17, 0
    %p106 = por %p104, %p105
    %p107 = scmp.ne.s32.totalorder %s93, %s94
    %p108 = scmp.eq.s32.totalorder %s18, 1
    %p109 = por %p107, %p108
    %p111 = scmp.ne.s32.totalorder %s94, %s110
    %p112 = scmp.eq.s32.totalorder %s18, 0
    %p113 = por %p111, %p112
    %s114 = ssub.s32 %s12, %s19
    %p115 = scmp.eq.s32.totalorder %s114, 0
    %s117 = sadd.s32 %s116, 1
    %s118 = scalar_select %p115, %s116, %s117
    %p121 = pneg %p115
    %p122 = scmp.eq.s32.totalorder %s12, 1
    %p123 = por %p121, %p122
    %p124 = scmp.ne.s32.totalorder %s116, %s119
    %p125 = scmp.eq.s32.totalorder %s12, 0
    %p126 = por %p124, %p125
    %p127 = scmp.ne.s32.totalorder %s116, %s119
    %p128 = scmp.eq.s32.totalorder %s17, 1
    %p129 = por %p127, %p128
    %p130 = scmp.ne.s32.totalorder %s119, %s120
    %p131 = scmp.eq.s32.totalorder %s17, 0
    %p132 = por %p130, %p131
    %p133 = scmp.ne.s32.totalorder %s119, %s120
    %p134 = scmp.eq.s32.totalorder %s18, 1
    %p135 = por %p133, %p134
    %p137 = scmp.ne.s32.totalorder %s120, %s136
    %p138 = scmp.eq.s32.totalorder %s18, 0
    %p139 = por %p137, %p138
    %s140 = ssub.s32 %s12, %s19
    %p141 = scmp.eq.s32.totalorder %s140, 0
    %s143 = sadd.s32 %s142, 1
    %s144 = scalar_select %p141, %s142, %s143
    %p147 = pneg %p141
    %p148 = scmp.eq.s32.totalorder %s12, 1
    %p149 = por %p147, %p148
    %p150 = scmp.ne.s32.totalorder %s142, %s145
    %p151 = scmp.eq.s32.totalorder %s12, 0
    %p152 = por %p150, %p151
    %p153 = scmp.ne.s32.totalorder %s142, %s145
    %p154 = scmp.eq.s32.totalorder %s17, 1
    %p155 = por %p153, %p154
    %p156 = scmp.ne.s32.totalorder %s145, %s146
    %p157 = scmp.eq.s32.totalorder %s17, 0
    %p158 = por %p156, %p157
    %p159 = scmp.ne.s32.totalorder %s145, %s146
    %p160 = scmp.eq.s32.totalorder %s18, 1
    %p161 = por %p159, %p160
    %p163 = scmp.ne.s32.totalorder %s146, %s162
    %p164 = scmp.eq.s32.totalorder %s18, 0
    %p165 = por %p163, %p164
    %p166 = scmp.le.s32.totalorder 1, %s12
    %p167 = scmp.lt.s32.totalorder %s12, 3
    %p168 = pnand %p166, %p167
    %p169 = pneg %p168
    // Predicated region
    $region9: #{discriminator_forward.6} parent=5 // pred_check
      _
    $region10: #{discriminator_forward.6} parent=5 // pred_check_branch
      %171 = sbr.rel (%p168) target = $region12
    $region11: #{discriminator_forward.6} parent=5 // pred_region
      %s172 = ssub.s32 %s12, 1
      // Predicated region
      $region13: #{discriminator_forward.6} parent=11 // pred_check
        %p173 = pneg %p59
      $region14: #{discriminator_forward.6} parent=11 // pred_check_branch
        %175 = sbr.rel (%p173) target = $region16
      $region15: #{discriminator_forward.6} parent=11 // pred_region
        _
      $region16: #{discriminator_forward.6} parent=11 // pred_fallthru
        _
      // Predicated region
      $region17: #{discriminator_forward.6} parent=11 // pred_check
        %p176 = pneg %p80
      $region18: #{discriminator_forward.6} parent=11 // pred_check_branch
        %178 = sbr.rel (%p176) target = $region20
      $region19: #{discriminator_forward.6} parent=11 // pred_region
        _
      $region20: #{discriminator_forward.6} parent=11 // pred_fallthru
        _
    $region12: #{discriminator_forward.6} parent=5 // pred_fallthru
      _
    %p179 = scmp.lt.s32.totalorder %s12, 2
    // Predicated region
    $region21: #{discriminator_forward.6} parent=5 // pred_check
      %p180 = pneg %p179
    $region22: #{discriminator_forward.6} parent=5 // pred_check_branch
      %182 = sbr.rel (%p180) target = $region24
    $region23: #{discriminator_forward.6} parent=5 // pred_region
      // Predicated region
      $region25: #{discriminator_forward.6} parent=23 // pred_check
        %p183 = pneg %p32
      $region26: #{discriminator_forward.6} parent=23 // pred_check_branch
        %185 = sbr.rel (%p183) target = $region28
      $region27: #{discriminator_forward.6} parent=23 // pred_region
        %p186 = scmp.lt.s32.totalorder %s12, 1
        %s187 = scalar_select %p186, %s12, 1
        %s188 = smul.addr %s187, 16
        %s189 = smul.addr %s188, 4
        %s190 = scalar_lea.vmem %s0, %s189
      $region28: #{discriminator_forward.6} parent=23 // pred_fallthru
        _
    $region24: #{discriminator_forward.6} parent=5 // pred_fallthru
      _
    %p191 = scmp.le.s32.totalorder 1, %s12
    %p192 = scmp.lt.s32.totalorder %s12, 3
    %p193 = pnand %p191, %p192
    %p194 = pneg %p193
    // Predicated region
    $region29: #{discriminator_forward.6} parent=5 // pred_check
      _
    $region30: #{discriminator_forward.6} parent=5 // pred_check_branch
      %196 = sbr.rel (%p193) target = $region32
    $region31: #{discriminator_forward.6} parent=5 // pred_region
      %s197 = ssub.s32 %s12, 1
      %p198 = scmp.lt.s32.totalorder %s17, 1
      %s199 = scalar_select %p198, %s17, 1
      %s200 = smul.addr %s199, 16
      %s201 = smul.addr %s200, 4
      %s202 = scalar_lea.vmem %s0, %s201
      %p203 = pneg %p38
      %p204 = pneg %p35
      %p205 = pneg %p59
      %p206 = pneg %p56
      %p207 = pneg %p80
      %p208 = pneg %p77
      %p209 = pneg %p106
      %p210 = pneg %p103
      %p211 = scmp.lt.s32.totalorder %s17, 1
      %s212 = scalar_select %p211, %s17, 1
      %s213 = smul.addr %s212, 6
      %s214 = smul.addr %s213, 4
      %s215 = scalar_lea.vmem %s3, %s214
      %p216 = pneg %p132
      %p217 = pneg %p129
      %p218 = scmp.lt.s32.totalorder %s17, 1
      %s219 = scalar_select %p218, %s17, 1
      %s220 = smul.addr %s219, 2
      %s221 = smul.addr %s220, 8
      %s222 = scalar_lea.vmem %s4, %s221
      %p223 = pneg %p158
      %p224 = pneg %p155
      %p225 = scmp.lt.s32.totalorder %s17, 1
      %s226 = scalar_select %p225, %s17, 1
      %s227 = smul.addr %s226, 2
      %s228 = smul.addr %s227, 8
      %s229 = scalar_lea.vmem %s5, %s228
      %p230 = scmp.lt.s32.totalorder %s17, 1
      %s231 = scalar_select %p230, %s17, 1
      %s232 = smul.addr %s231, 16
      %s233 = smul.addr %s232, 4
      %s234 = scalar_lea.vmem %s0, %s233
      %p235 = scmp.lt.s32.totalorder %s17, 1
      %s236 = scalar_select %p235, %s17, 1
      %s237 = smul.addr %s236, 6
      %s238 = smul.addr %s237, 4
      %s239 = scalar_lea.vmem %s3, %s238
      %p240 = scmp.lt.s32.totalorder %s17, 1
      %s241 = scalar_select %p240, %s17, 1
      %s242 = smul.addr %s241, 2
      %s243 = smul.addr %s242, 8
      %s244 = scalar_lea.vmem %s4, %s243
      %p245 = scmp.lt.s32.totalorder %s17, 1
      %s246 = scalar_select %p245, %s17, 1
      %s247 = smul.addr %s246, 2
      %s248 = smul.addr %s247, 8
      %s249 = scalar_lea.vmem %s5, %s248
      %v251 = vld [vmem:[%s234] sm:$0xff]
      %v252 = vld [vmem:[%s234 + $0x8] sm:$0xf]
      %v253 = vld [vmem:[%s234 + $0x10] sm:$0xff]
      %v254 = vld [vmem:[%s234 + $0x18] sm:$0xf]
      %v255 = vld [vmem:[%s234 + $0x20] sm:$0xff]
      %v256 = vld [vmem:[%s234 + $0x28] sm:$0xf]
      %v257 = vld [vmem:[%s234 + $0x30] sm:$0xff]
      %v258 = vld [vmem:[%s234 + $0x38] sm:$0xf]
      %v259 = vld [vmem:[%s1] sm:$0xf]
      %v260 = vld [vmem:[%s1 + $0x4] sm:$0xf]
      %v261 = vld [vmem:[%s234] sm:$0xff]
      %v262 = vld [vmem:[%s234 + $0x8] sm:$0xff]
      %v263 = vld [vmem:[%s234 + $0x10] sm:$0xff]
      %v264 = vld [vmem:[%s234 + $0x18] sm:$0xff]
      %v265 = vld [vmem:[%s234 + $0x20] sm:$0xff]
      %v266 = vld [vmem:[%s234 + $0x28] sm:$0xff]
      %v267 = vld [vmem:[%s234 + $0x30] sm:$0xff]
      %v268 = vld [vmem:[%s234 + $0x38] sm:$0xff]
      %s269 = scalar_lea.vmem %s1, 8
      %v270 = vld [vmem:[%s269] sm:$0xf]
      %v271 = vld [vmem:[%s269 + $0x4] sm:$0xf]
      %v274 = vunpack.c.l.b16 %v270
      %v275 = vunpack.c.l.b16 %v271
      %v276 = vpack.c.b16 %v275, %v274
      %v285 = vunpack.c.l.b16 %v261
      %v286 = vunpack.c.h.b16 %v261
      %v287 = vunpack.c.l.b16 %v262
      %v288 = vunpack.c.h.b16 %v262
      %v289 = vunpack.c.l.b16 %v263
      %v290 = vunpack.c.h.b16 %v263
      %v291 = vunpack.c.l.b16 %v264
      %v292 = vunpack.c.h.b16 %v264
      %v293 = vunpack.c.l.b16 %v265
      %v294 = vunpack.c.h.b16 %v265
      %v295 = vunpack.c.l.b16 %v266
      %v296 = vunpack.c.h.b16 %v266
      %v297 = vunpack.c.l.b16 %v267
      %v298 = vunpack.c.h.b16 %v267
      %v299 = vunpack.c.l.b16 %v268
      %v300 = vunpack.c.h.b16 %v268
      %v301 = vpack.c.b16 %v289, %v285
      %v302 = vpack.c.b16 %v290, %v286
      %v303 = vpack.c.b16 %v291, %v287
      %v304 = vpack.c.b16 %v292, %v288
      %v305 = vpack.c.b16 %v297, %v293
      %v306 = vpack.c.b16 %v298, %v294
      %v307 = vpack.c.b16 %v299, %v295
      %v308 = vpack.c.b16 %v300, %v296
      %309 = vrot.lane.b32.xlu0 %v301, 127
      %v310 = vpop.permute.xlu0 %309
      %311 = vrot.lane.b32.xlu0 %v302, 127
      %v312 = vpop.permute.xlu0 %311
      %313 = vrot.lane.b32.xlu0 %v303, 127
      %v314 = vpop.permute.xlu0 %313
      %315 = vrot.lane.b32.xlu0 %v304, 127
      %v316 = vpop.permute.xlu0 %315
      %317 = vrot.lane.b32.xlu0 %v305, 127
      %v318 = vpop.permute.xlu0 %317
      %319 = vrot.lane.b32.xlu0 %v306, 127
      %v320 = vpop.permute.xlu0 %319
      %321 = vrot.lane.b32.xlu0 %v307, 127
      %v322 = vpop.permute.xlu0 %321
      %323 = vrot.lane.b32.xlu0 %v308, 127
      %v324 = vpop.permute.xlu0 %323
      %vm325 = vcmask 1039360
      %v326 = vsel %vm325, %v310, %v312
      %v327 = vsel %vm325, %v312, %v314
      %v328 = vsel %vm325, %v314, %v316
      %v329 = vsel %vm325, %v318, %v320
      %v330 = vsel %vm325, %v320, %v322
      %v331 = vsel %vm325, %v322, %v324
      %vm338 = vcmask 261120
      %v340 = vsel %vm338, %v276, 0
      %342 = vmatpush.bf16.msra.mxu0 0
      %343 = vmatpush.bf16.msra.mxu0 0
      %344 = vmatpush.bf16.msra.mxu0 0
      %345 = vmatpush.bf16.msra.mxu0 0
      %346 = vmatpush.bf16.msra.mxu0 0
      %347 = vmatpush.bf16.msra.mxu0 0
      %348 = vmatpush.bf16.msra.mxu0 %v329
      %349 = vmatpush.bf16.msra.mxu0 %v326
      %350 = vmatmul.bf16.gmra.mxu0 %v340
      %v351 = vpop.f32.mrf.mxu0
      %v352 = vadd.f32 0.0, %v351
      %v353 = vpop.f32.mrf.mxu0
      %v354 = vadd.f32 0.0, %v353
      %355 = vdwg.mxu0
      %356 = vmatpush.bf16.msra.mxu0 0
      %357 = vmatpush.bf16.msra.mxu0 0
      %358 = vmatpush.bf16.msra.mxu0 0
      %359 = vmatpush.bf16.msra.mxu0 0
      %360 = vmatpush.bf16.msra.mxu0 0
      %361 = vmatpush.bf16.msra.mxu0 0
      %362 = vmatpush.bf16.msra.mxu0 %v330
      %363 = vmatpush.bf16.msra.mxu0 %v327
      %364 = vmatmul.bf16.gmra.mxu0 %v340
      %v365 = vpop.f32.mrf.mxu0
      %v366 = vadd.f32 0.0, %v365
      %v367 = vpop.f32.mrf.mxu0
      %v368 = vadd.f32 0.0, %v367
      %369 = vdwg.mxu0
      %370 = vmatpush.bf16.msra.mxu0 0
      %371 = vmatpush.bf16.msra.mxu0 0
      %372 = vmatpush.bf16.msra.mxu0 0
      %373 = vmatpush.bf16.msra.mxu0 0
      %374 = vmatpush.bf16.msra.mxu0 0
      %375 = vmatpush.bf16.msra.mxu0 0
      %376 = vmatpush.bf16.msra.mxu0 %v331
      %377 = vmatpush.bf16.msra.mxu0 %v328
      %378 = vmatmul.bf16.gmra.mxu0 %v340
      %v379 = vpop.f32.mrf.mxu0
      %v380 = vadd.f32 0.0, %v379
      %v381 = vpop.f32.mrf.mxu0
      %v382 = vadd.f32 0.0, %v381
      %383 = vdwg.mxu0
      %v386 = vunpack.c.l.b16 %v259
      %v387 = vunpack.c.l.b16 %v260
      %v388 = vpack.c.b16 %v387, %v386
      %v397 = vunpack.c.l.b16 %v251
      %v398 = vunpack.c.h.b16 %v251
      %v399 = vunpack.c.l.b16 %v252
      %v400 = vunpack.c.l.b16 %v253
      %v401 = vunpack.c.h.b16 %v253
      %v402 = vunpack.c.l.b16 %v254
      %v403 = vunpack.c.l.b16 %v255
      %v404 = vunpack.c.h.b16 %v255
      %v405 = vunpack.c.l.b16 %v256
      %v406 = vunpack.c.l.b16 %v257
      %v407 = vunpack.c.h.b16 %v257
      %v408 = vunpack.c.l.b16 %v258
      %v409 = vpack.c.b16 %v400, %v397
      %v410 = vpack.c.b16 %v401, %v398
      %v411 = vpack.c.b16 %v402, %v399
      %v412 = vpack.c.b16 %v406, %v403
      %v413 = vpack.c.b16 %v407, %v404
      %v414 = vpack.c.b16 %v408, %v405
      %v422 = vsel %vm338, %v388, 0
      %424 = vmatpush.bf16.msra.mxu0 0
      %425 = vmatpush.bf16.msra.mxu0 0
      %426 = vmatpush.bf16.msra.mxu0 0
      %427 = vmatpush.bf16.msra.mxu0 0
      %428 = vmatpush.bf16.msra.mxu0 0
      %429 = vmatpush.bf16.msra.mxu0 0
      %430 = vmatpush.bf16.msra.mxu0 %v412
      %431 = vmatpush.bf16.msra.mxu0 %v409
      %432 = vmatmul.bf16.gmra.mxu0 %v422
      %v433 = vpop.f32.mrf.mxu0
      %v434 = vadd.f32 %v352, %v433
      %v435 = vpop.f32.mrf.mxu0
      %v436 = vadd.f32 %v354, %v435
      %437 = vdwg.mxu0
      %438 = vmatpush.bf16.msra.mxu0 0
      %439 = vmatpush.bf16.msra.mxu0 0
      %440 = vmatpush.bf16.msra.mxu0 0
      %441 = vmatpush.bf16.msra.mxu0 0
      %442 = vmatpush.bf16.msra.mxu0 0
      %443 = vmatpush.bf16.msra.mxu0 0
      %444 = vmatpush.bf16.msra.mxu0 %v413
      %445 = vmatpush.bf16.msra.mxu0 %v410
      %446 = vmatmul.bf16.gmra.mxu0 %v422
      %v447 = vpop.f32.mrf.mxu0
      %v448 = vadd.f32 %v366, %v447
      %v449 = vpop.f32.mrf.mxu0
      %v450 = vadd.f32 %v368, %v449
      %451 = vdwg.mxu0
      %452 = vmatpush.bf16.msra.mxu0 0
      %453 = vmatpush.bf16.msra.mxu0 0
      %454 = vmatpush.bf16.msra.mxu0 0
      %455 = vmatpush.bf16.msra.mxu0 0
      %456 = vmatpush.bf16.msra.mxu0 0
      %457 = vmatpush.bf16.msra.mxu0 0
      %458 = vmatpush.bf16.msra.mxu0 %v414
      %459 = vmatpush.bf16.msra.mxu0 %v411
      %460 = vmatmul.bf16.gmra.mxu0 %v422
      %v461 = vpop.f32.mrf.mxu0
      %v462 = vadd.f32 %v380, %v461
      %v463 = vpop.f32.mrf.mxu0
      %v464 = vadd.f32 %v382, %v463
      %465 = vdwg.mxu0
      %s466 = scalar_lea.vmem %s1, 16
      %v467 = vld [vmem:[%s466] sm:$0xf]
      %v468 = vld [vmem:[%s466 + $0x4] sm:$0xf]
      %v471 = vunpack.c.l.b16 %v467
      %v472 = vunpack.c.l.b16 %v468
      %v473 = vpack.c.b16 %v472, %v471
      %474 = vrot.lane.b32.xlu0 %v301, 111
      %v475 = vpop.permute.xlu0 %474
      %476 = vrot.lane.b32.xlu0 %v302, 111
      %v477 = vpop.permute.xlu0 %476
      %478 = vrot.lane.b32.xlu0 %v303, 111
      %v479 = vpop.permute.xlu0 %478
      %480 = vrot.lane.b32.xlu0 %v304, 111
      %v481 = vpop.permute.xlu0 %480
      %482 = vrot.lane.b32.xlu0 %v305, 111
      %v483 = vpop.permute.xlu0 %482
      %484 = vrot.lane.b32.xlu0 %v306, 111
      %v485 = vpop.permute.xlu0 %484
      %486 = vrot.lane.b32.xlu0 %v307, 111
      %v487 = vpop.permute.xlu0 %486
      %488 = vrot.lane.b32.xlu0 %v308, 111
      %v489 = vpop.permute.xlu0 %488
      %vm490 = vcmask 908288
      %v491 = vsel %vm490, %v475, %v477
      %v492 = vsel %vm490, %v477, %v479
      %v493 = vsel %vm490, %v479, %v481
      %v494 = vsel %vm490, %v483, %v485
      %v495 = vsel %vm490, %v485, %v487
      %v496 = vsel %vm490, %v487, %v489
      %v504 = vsel %vm338, %v473, 0
      %506 = vmatpush.bf16.msra.mxu0 0
      %507 = vmatpush.bf16.msra.mxu0 0
      %508 = vmatpush.bf16.msra.mxu0 0
      %509 = vmatpush.bf16.msra.mxu0 0
      %510 = vmatpush.bf16.msra.mxu0 0
      %511 = vmatpush.bf16.msra.mxu0 0
      %512 = vmatpush.bf16.msra.mxu0 %v494
      %513 = vmatpush.bf16.msra.mxu0 %v491
      %514 = vmatmul.bf16.gmra.mxu0 %v504
      %v515 = vpop.f32.mrf.mxu0
      %v516 = vadd.f32 0.0, %v515
      %v517 = vpop.f32.mrf.mxu0
      %v518 = vadd.f32 0.0, %v517
      %519 = vdwg.mxu0
      %520 = vmatpush.bf16.msra.mxu0 0
      %521 = vmatpush.bf16.msra.mxu0 0
      %522 = vmatpush.bf16.msra.mxu0 0
      %523 = vmatpush.bf16.msra.mxu0 0
      %524 = vmatpush.bf16.msra.mxu0 0
      %525 = vmatpush.bf16.msra.mxu0 0
      %526 = vmatpush.bf16.msra.mxu0 %v495
      %527 = vmatpush.bf16.msra.mxu0 %v492
      %528 = vmatmul.bf16.gmra.mxu0 %v504
      %v529 = vpop.f32.mrf.mxu0
      %v530 = vadd.f32 0.0, %v529
      %v531 = vpop.f32.mrf.mxu0
      %v532 = vadd.f32 0.0, %v531
      %533 = vdwg.mxu0
      %534 = vmatpush.bf16.msra.mxu0 0
      %535 = vmatpush.bf16.msra.mxu0 0
      %536 = vmatpush.bf16.msra.mxu0 0
      %537 = vmatpush.bf16.msra.mxu0 0
      %538 = vmatpush.bf16.msra.mxu0 0
      %539 = vmatpush.bf16.msra.mxu0 0
      %540 = vmatpush.bf16.msra.mxu0 %v496
      %541 = vmatpush.bf16.msra.mxu0 %v493
      %542 = vmatmul.bf16.gmra.mxu0 %v504
      %v543 = vpop.f32.mrf.mxu0
      %v544 = vadd.f32 0.0, %v543
      %v545 = vpop.f32.mrf.mxu0
      %v546 = vadd.f32 0.0, %v545
      %547 = vdwg.mxu0
      %v548 = vadd.f32 %v434, %v516
      %v549 = vadd.f32 %v448, %v530
      %v550 = vadd.f32 %v462, %v544
      %v551 = vadd.f32 %v436, %v518
      %v552 = vadd.f32 %v450, %v532
      %v553 = vadd.f32 %v464, %v546
      %s554 = scalar_lea.vmem %s1, 24
      %v555 = vld [vmem:[%s554] sm:$0xf]
      %v556 = vld [vmem:[%s554 + $0x4] sm:$0xf]
      %v559 = vunpack.c.l.b16 %v555
      %v560 = vunpack.c.l.b16 %v556
      %v561 = vpack.c.b16 %v560, %v559
      %562 = vrot.lane.b32.xlu0 %v301, 110
      %v563 = vpop.permute.xlu0 %562
      %564 = vrot.lane.b32.xlu0 %v302, 110
      %v565 = vpop.permute.xlu0 %564
      %566 = vrot.lane.b32.xlu0 %v303, 110
      %v567 = vpop.permute.xlu0 %566
      %568 = vrot.lane.b32.xlu0 %v304, 110
      %v569 = vpop.permute.xlu0 %568
      %570 = vrot.lane.b32.xlu0 %v305, 110
      %v571 = vpop.permute.xlu0 %570
      %572 = vrot.lane.b32.xlu0 %v306, 110
      %v573 = vpop.permute.xlu0 %572
      %574 = vrot.lane.b32.xlu0 %v307, 110
      %v575 = vpop.permute.xlu0 %574
      %576 = vrot.lane.b32.xlu0 %v308, 110
      %v577 = vpop.permute.xlu0 %576
      %vm578 = vcmask 900096
      %v579 = vsel %vm578, %v563, %v565
      %v580 = vsel %vm578, %v565, %v567
      %v581 = vsel %vm578, %v567, %v569
      %v582 = vsel %vm578, %v571, %v573
      %v583 = vsel %vm578, %v573, %v575
      %v584 = vsel %vm578, %v575, %v577
      %v592 = vsel %vm338, %v561, 0
      %594 = vmatpush.bf16.msra.mxu0 0
      %595 = vmatpush.bf16.msra.mxu0 0
      %596 = vmatpush.bf16.msra.mxu0 0
      %597 = vmatpush.bf16.msra.mxu0 0
      %598 = vmatpush.bf16.msra.mxu0 0
      %599 = vmatpush.bf16.msra.mxu0 0
      %600 = vmatpush.bf16.msra.mxu0 %v582
      %601 = vmatpush.bf16.msra.mxu0 %v579
      %602 = vmatmul.bf16.gmra.mxu0 %v592
      %v603 = vpop.f32.mrf.mxu0
      %v604 = vadd.f32 0.0, %v603
      %v605 = vpop.f32.mrf.mxu0
      %v606 = vadd.f32 0.0, %v605
      %607 = vdwg.mxu0
      %608 = vmatpush.bf16.msra.mxu0 0
      %609 = vmatpush.bf16.msra.mxu0 0
      %610 = vmatpush.bf16.msra.mxu0 0
      %611 = vmatpush.bf16.msra.mxu0 0
      %612 = vmatpush.bf16.msra.mxu0 0
      %613 = vmatpush.bf16.msra.mxu0 0
      %614 = vmatpush.bf16.msra.mxu0 %v583
      %615 = vmatpush.bf16.msra.mxu0 %v580
      %616 = vmatmul.bf16.gmra.mxu0 %v592
      %v617 = vpop.f32.mrf.mxu0
      %v618 = vadd.f32 0.0, %v617
      %v619 = vpop.f32.mrf.mxu0
      %v620 = vadd.f32 0.0, %v619
      %621 = vdwg.mxu0
      %622 = vmatpush.bf16.msra.mxu0 0
      %623 = vmatpush.bf16.msra.mxu0 0
      %624 = vmatpush.bf16.msra.mxu0 0
      %625 = vmatpush.bf16.msra.mxu0 0
      %626 = vmatpush.bf16.msra.mxu0 0
      %627 = vmatpush.bf16.msra.mxu0 0
      %628 = vmatpush.bf16.msra.mxu0 %v584
      %629 = vmatpush.bf16.msra.mxu0 %v581
      %630 = vmatmul.bf16.gmra.mxu0 %v592
      %v631 = vpop.f32.mrf.mxu0
      %v632 = vadd.f32 0.0, %v631
      %v633 = vpop.f32.mrf.mxu0
      %v634 = vadd.f32 0.0, %v633
      %635 = vdwg.mxu0
      %v636 = vadd.f32 %v548, %v604
      %v637 = vadd.f32 %v549, %v618
      %v638 = vadd.f32 %v550, %v632
      %v639 = vadd.f32 %v551, %v606
      %v640 = vadd.f32 %v552, %v620
      %v641 = vadd.f32 %v553, %v634
      %v642 = vpack.c.bf16 %v637, %v636
      %v643 = vpack.c.bf16 %v638, %v638
      %v644 = vpack.c.bf16 %v640, %v639
      %v645 = vpack.c.bf16 %v641, %v641
      %646 = vst [vmem:[%s239] sm:$0xff] %v642
      %647 = vst [vmem:[%s239 + $0x8] sm:$0xf] %v643
      %648 = vst [vmem:[%s239 + $0xc] sm:$0xff] %v644
      %649 = vst [vmem:[%s239 + $0x14] sm:$0xf] %v645
      %v650 = vld [vmem:[%s2] sm:$0x7]
      %v652 = vperm.slane %v650, 0
      %v653 = vperm.slane %v650, 1
      %v654 = vperm.slane %v650, 2
      %v658 = vmul.f32 %v636, %v652
      %v659 = vmul.f32 %v637, %v653
      %v660 = vmul.f32 %v638, %v654
      %v661 = vmul.f32 %v639, %v652
      %v662 = vmul.f32 %v640, %v653
      %v663 = vmul.f32 %v641, %v654
      %v664 = vadd.f32 %v658, %v659
      %v665 = vadd.f32 %v664, %v660
      %666 = vadd.xlane.f32.xlu0 %v665
      %v667 = vpop.xlane.xlu0 %666
      %v668 = vadd.f32 %v661, %v662
      %v669 = vadd.f32 %v668, %v663
      %670 = vadd.xlane.f32.xlu0 %v669
      %v671 = vpop.xlane.xlu0 %670
      %vm672 = vcmask 7168
      %673 = vst.msk [vmem:[%s244] sm:$0xff] %vm672, %v667
      %674 = vst.msk [vmem:[%s244 + $0x8] sm:$0xff] %vm672, %v671
      %v675 = vmul.f32 %v658, %v636
      %v676 = vmul.f32 %v659, %v637
      %v677 = vmul.f32 %v660, %v638
      %v678 = vmul.f32 %v661, %v639
      %v679 = vmul.f32 %v662, %v640
      %v680 = vmul.f32 %v663, %v641
      %v681 = vadd.f32 %v675, %v676
      %v682 = vadd.f32 %v681, %v677
      %683 = vadd.xlane.f32.xlu0 %v682
      %v684 = vpop.xlane.xlu0 %683
      %v685 = vadd.f32 %v678, %v679
      %v686 = vadd.f32 %v685, %v680
      %687 = vadd.xlane.f32.xlu0 %v686
      %v688 = vpop.xlane.xlu0 %687
      %689 = vst.msk [vmem:[%s249] sm:$0xff] %vm672, %v684
      %690 = vst.msk [vmem:[%s249 + $0x8] sm:$0xff] %vm672, %v688
      %p691 = scmp.lt.s32.totalorder %s17, 1
      %s692 = scalar_select %p691, %s17, 1
      %s693 = smul.addr %s692, 6
      %s694 = smul.addr %s693, 4
      %s695 = scalar_lea.vmem %s3, %s694
      %p696 = scmp.lt.s32.totalorder %s17, 1
      %s697 = scalar_select %p696, %s17, 1
      %s698 = smul.addr %s697, 2
      %s699 = smul.addr %s698, 8
      %s700 = scalar_lea.vmem %s4, %s699
      %p701 = scmp.lt.s32.totalorder %s17, 1
      %s702 = scalar_select %p701, %s17, 1
      %s703 = smul.addr %s702, 2
      %s704 = smul.addr %s703, 8
      %s705 = scalar_lea.vmem %s5, %s704
      // Predicated region
      $region33: #{discriminator_forward.6} parent=31 // pred_check
        %p706 = pneg %p103
      $region34: #{discriminator_forward.6} parent=31 // pred_check_branch
        %708 = sbr.rel (%p706) target = $region36
      $region35: #{discriminator_forward.6} parent=31 // pred_region
        _
      $region36: #{discriminator_forward.6} parent=31 // pred_fallthru
        _
      // Predicated region
      $region37: #{discriminator_forward.6} parent=31 // pred_check
        %p709 = pneg %p129
      $region38: #{discriminator_forward.6} parent=31 // pred_check_branch
        %711 = sbr.rel (%p709) target = $region40
      $region39: #{discriminator_forward.6} parent=31 // pred_region
        _
      $region40: #{discriminator_forward.6} parent=31 // pred_fallthru
        _
      // Predicated region
      $region41: #{discriminator_forward.6} parent=31 // pred_check
        %p712 = pneg %p155
      $region42: #{discriminator_forward.6} parent=31 // pred_check_branch
        %714 = sbr.rel (%p712) target = $region44
      $region43: #{discriminator_forward.6} parent=31 // pred_region
        _
      $region44: #{discriminator_forward.6} parent=31 // pred_fallthru
        _
    $region32: #{discriminator_forward.6} parent=5 // pred_fallthru
      _
    %p715 = scmp.le.s32.totalorder 2, %s12
    // Predicated region
    $region45: #{discriminator_forward.6} parent=5 // pred_check
      %p716 = pneg %p715
    $region46: #{discriminator_forward.6} parent=5 // pred_check_branch
      %718 = sbr.rel (%p716) target = $region48
    $region47: #{discriminator_forward.6} parent=5 // pred_region
      %s719 = ssub.s32 %s12, 2
      // Predicated region
      $region49: #{discriminator_forward.6} parent=47 // pred_check
        %p720 = pneg %p109
      $region50: #{discriminator_forward.6} parent=47 // pred_check_branch
        %722 = sbr.rel (%p720) target = $region52
      $region51: #{discriminator_forward.6} parent=47 // pred_region
        %p723 = scmp.lt.s32.totalorder %s18, 1
        %s724 = scalar_select %p723, %s18, 1
        %s725 = smul.addr %s724, 6
        %s726 = smul.addr %s725, 4
        %s727 = scalar_lea.vmem %s3, %s726
      $region52: #{discriminator_forward.6} parent=47 // pred_fallthru
        _
      // Predicated region
      $region53: #{discriminator_forward.6} parent=47 // pred_check
        %p728 = pneg %p135
      $region54: #{discriminator_forward.6} parent=47 // pred_check_branch
        %730 = sbr.rel (%p728) target = $region56
      $region55: #{discriminator_forward.6} parent=47 // pred_region
        %p731 = scmp.lt.s32.totalorder %s18, 1
        %s732 = scalar_select %p731, %s18, 1
        %s733 = smul.addr %s732, 2
        %s734 = smul.addr %s733, 8
        %s735 = scalar_lea.vmem %s4, %s734
      $region56: #{discriminator_forward.6} parent=47 // pred_fallthru
        _
      // Predicated region
      $region57: #{discriminator_forward.6} parent=47 // pred_check
        %p736 = pneg %p161
      $region58: #{discriminator_forward.6} parent=47 // pred_check_branch
        %738 = sbr.rel (%p736) target = $region60
      $region59: #{discriminator_forward.6} parent=47 // pred_region
        %p739 = scmp.lt.s32.totalorder %s18, 1
        %s740 = scalar_select %p739, %s18, 1
        %s741 = smul.addr %s740, 2
        %s742 = smul.addr %s741, 8
        %s743 = scalar_lea.vmem %s5, %s742
      $region60: #{discriminator_forward.6} parent=47 // pred_fallthru
        _
    $region48: #{discriminator_forward.6} parent=5 // pred_fallthru
      _
  $region6: #{discriminator_forward.6} parent=0 // loop_footer
    %s16 = sadd.s32 1, %s12
  $region7: #{discriminator_forward.6} parent=0 // loop_footer_branch
    %11 = sbr.rel target = $region3
  $region8: #{discriminator_forward.6} parent=0 // loop_exit
    _

// kernel: discriminator_forward.7
$region0: #{discriminator_forward.7}
  #allocation0 [shape = 'u32[]', space=smem, size = 0x4, offset = 0x4, fixed_abs, tag = 'smem constant byte address 0x4 - core index']
  #allocation1 [shape = 'u32[72,128]{1,0:T(1,128)}', space=vmem, size = 0x9000, scoped, tag = 'internal scratch']
  %s0 = inlined_call_operand.vmem [shape: bf16[2,64,256], index: 0, kind: input, shape index: {}]
  %s1 = inlined_call_operand.vmem [shape: bf16[4,32,64], index: 1, kind: input, shape index: {}]
  %s2 = inlined_call_operand.vmem [shape: f32[1,128], index: 2, kind: input, shape index: {}]
  %s3 = inlined_call_operand.vmem [shape: bf16[2,32,128], index: 3, kind: output, shape index: {0}]
  %s4 = inlined_call_operand.vmem [shape: f32[2,32,1], index: 4, kind: output, shape index: {1}]
  %s5 = inlined_call_operand.vmem [shape: f32[2,32,1], index: 5, kind: output, shape index: {2}]
  %6 = xla_tuple %s3, %s4, %s5
  %s7 = sld [smem:[#allocation0]]
  $region61: #{discriminator_forward.7} parent=0
    _
  %s9 = ssub.s32 1, %s7
  %s10 = scalar_select 0, %s9, %s7
  loop: start=0, step=1, limit=4
  $region2: #{discriminator_forward.7} parent=0 // loop_pre_header
    _
  $region3: #{discriminator_forward.7} parent=0 // loop_header
    %s12 = sphi 0, %s16
    %p13 = scmp.ge.s32.totalorder %s12, 4
    %s22 = sphi 0, %s24
    %s25 = sphi 0, %s22
    %s26 = sphi 0, %s25
    %s42 = sphi 0, %s26
    %s46 = sphi 0, %s46
    %s48 = sphi 0, %s46
    %s49 = sphi 0, %s48
    %s63 = sphi 0, %s49
    %s67 = sphi 0, %s67
    %s69 = sphi 0, %s67
    %s70 = sphi 0, %s69
    %s84 = sphi 0, %s70
    %s90 = sphi 0, %s92
    %s93 = sphi 0, %s90
    %s94 = sphi 0, %s93
    %s110 = sphi 0, %s94
    %s116 = sphi 0, %s118
    %s119 = sphi 0, %s116
    %s120 = sphi 0, %s119
    %s136 = sphi 0, %s120
    %s142 = sphi 0, %s144
    %s145 = sphi 0, %s142
    %s146 = sphi 0, %s145
    %s162 = sphi 0, %s146
  $region4: #{discriminator_forward.7} parent=0 // loop_header_branch
    %15 = sbr.rel (%p13) target = $region8
  $region5: #{discriminator_forward.7} parent=0 // loop_body
    %s17 = ssub.s32 %s12, 1
    %s18 = ssub.s32 %s12, 2
    %s19 = sadd.s32 %s12, 1
    %s20 = ssub.s32 %s12, %s19
    %p21 = scmp.eq.s32.totalorder %s20, 0
    %s23 = sadd.s32 %s22, 1
    %s24 = scalar_select %p21, %s22, %s23
    %p27 = pneg %p21
    %p28 = scmp.eq.s32.totalorder %s12, 1
    %p29 = por %p27, %p28
    %p30 = scmp.ne.s32.totalorder %s22, %s25
    %p31 = scmp.eq.s32.totalorder %s12, 0
    %p32 = por %p30, %p31
    %p33 = scmp.ne.s32.totalorder %s22, %s25
    %p34 = scmp.eq.s32.totalorder %s17, 1
    %p35 = por %p33, %p34
    %p36 = scmp.ne.s32.totalorder %s25, %s26
    %p37 = scmp.eq.s32.totalorder %s17, 0
    %p38 = por %p36, %p37
    %p39 = scmp.ne.s32.totalorder %s25, %s26
    %p40 = scmp.eq.s32.totalorder %s18, 1
    %p41 = por %p39, %p40
    %p43 = scmp.ne.s32.totalorder %s26, %s42
    %p44 = scmp.eq.s32.totalorder %s18, 0
    %p45 = por %p43, %p44
    %s47 = sadd.s32 %s46, 1
    %p50 = scmp.eq.s32.totalorder %s12, 1
    %p51 = scmp.ne.s32.totalorder %s46, %s48
    %p52 = scmp.eq.s32.totalorder %s12, 0
    %p53 = por %p51, %p52
    %p54 = scmp.ne.s32.totalorder %s46, %s48
    %p55 = scmp.eq.s32.totalorder %s17, 1
    %p56 = por %p54, %p55
    %p57 = scmp.ne.s32.totalorder %s48, %s49
    %p58 = scmp.eq.s32.totalorder %s17, 0
    %p59 = por %p57, %p58
    %p60 = scmp.ne.s32.totalorder %s48, %s49
    %p61 = scmp.eq.s32.totalorder %s18, 1
    %p62 = por %p60, %p61
    %p64 = scmp.ne.s32.totalorder %s49, %s63
    %p65 = scmp.eq.s32.totalorder %s18, 0
    %p66 = por %p64, %p65
    %s68 = sadd.s32 %s67, 1
    %p71 = scmp.eq.s32.totalorder %s12, 1
    %p72 = scmp.ne.s32.totalorder %s67, %s69
    %p73 = scmp.eq.s32.totalorder %s12, 0
    %p74 = por %p72, %p73
    %p75 = scmp.ne.s32.totalorder %s67, %s69
    %p76 = scmp.eq.s32.totalorder %s17, 1
    %p77 = por %p75, %p76
    %p78 = scmp.ne.s32.totalorder %s69, %s70
    %p79 = scmp.eq.s32.totalorder %s17, 0
    %p80 = por %p78, %p79
    %p81 = scmp.ne.s32.totalorder %s69, %s70
    %p82 = scmp.eq.s32.totalorder %s18, 1
    %p83 = por %p81, %p82
    %p85 = scmp.ne.s32.totalorder %s70, %s84
    %p86 = scmp.eq.s32.totalorder %s18, 0
    %p87 = por %p85, %p86
    %s88 = ssub.s32 %s12, %s19
    %p89 = scmp.eq.s32.totalorder %s88, 0
    %s91 = sadd.s32 %s90, 1
    %s92 = scalar_select %p89, %s90, %s91
    %p95 = pneg %p89
    %p96 = scmp.eq.s32.totalorder %s12, 1
    %p97 = por %p95, %p96
    %p98 = scmp.ne.s32.totalorder %s90, %s93
    %p99 = scmp.eq.s32.totalorder %s12, 0
    %p100 = por %p98, %p99
    %p101 = scmp.ne.s32.totalorder %s90, %s93
    %p102 = scmp.eq.s32.totalorder %s17, 1
    %p103 = por %p101, %p102
    %p104 = scmp.ne.s32.totalorder %s93, %s94
    %p105 = scmp.eq.s32.totalorder %s17, 0
    %p106 = por %p104, %p105
    %p107 = scmp.ne.s32.totalorder %s93, %s94
    %p108 = scmp.eq.s32.totalorder %s18, 1
    %p109 = por %p107, %p108
    %p111 = scmp.ne.s32.totalorder %s94, %s110
    %p112 = scmp.eq.s32.totalorder %s18, 0
    %p113 = por %p111, %p112
    %s114 = ssub.s32 %s12, %s19
    %p115 = scmp.eq.s32.totalorder %s114, 0
    %s117 = sadd.s32 %s116, 1
    %s118 = scalar_select %p115, %s116, %s117
    %p121 = pneg %p115
    %p122 = scmp.eq.s32.totalorder %s12, 1
    %p123 = por %p121, %p122
    %p124 = scmp.ne.s32.totalorder %s116, %s119
    %p125 = scmp.eq.s32.totalorder %s12, 0
    %p126 = por %p124, %p125
    %p127 = scmp.ne.s32.totalorder %s116, %s119
    %p128 = scmp.eq.s32.totalorder %s17, 1
    %p129 = por %p127, %p128
    %p130 = scmp.ne.s32.totalorder %s119, %s120
    %p131 = scmp.eq.s32.totalorder %s17, 0
    %p132 = por %p130, %p131
    %p133 = scmp.ne.s32.totalorder %s119, %s120
    %p134 = scmp.eq.s32.totalorder %s18, 1
    %p135 = por %p133, %p134
    %p137 = scmp.ne.s32.totalorder %s120, %s136
    %p138 = scmp.eq.s32.totalorder %s18, 0
    %p139 = por %p137, %p138
    %s140 = ssub.s32 %s12, %s19
    %p141 = scmp.eq.s32.totalorder %s140, 0
    %s143 = sadd.s32 %s142, 1
    %s144 = scalar_select %p141, %s142, %s143
    %p147 = pneg %p141
    %p148 = scmp.eq.s32.totalorder %s12, 1
    %p149 = por %p147, %p148
    %p150 = scmp.ne.s32.totalorder %s142, %s145
    %p151 = scmp.eq.s32.totalorder %s12, 0
    %p152 = por %p150, %p151
    %p153 = scmp.ne.s32.totalorder %s142, %s145
    %p154 = scmp.eq.s32.totalorder %s17, 1
    %p155 = por %p153, %p154
    %p156 = scmp.ne.s32.totalorder %s145, %s146
    %p157 = scmp.eq.s32.totalorder %s17, 0
    %p158 = por %p156, %p157
    %p159 = scmp.ne.s32.totalorder %s145, %s146
    %p160 = scmp.eq.s32.totalorder %s18, 1
    %p161 = por %p159, %p160
    %p163 = scmp.ne.s32.totalorder %s146, %s162
    %p164 = scmp.eq.s32.totalorder %s18, 0
    %p165 = por %p163, %p164
    %p166 = scmp.le.s32.totalorder 1, %s12
    %p167 = scmp.lt.s32.totalorder %s12, 3
    %p168 = pnand %p166, %p167
    %p169 = pneg %p168
    // Predicated region
    $region9: #{discriminator_forward.7} parent=5 // pred_check
      _
    $region10: #{discriminator_forward.7} parent=5 // pred_check_branch
      %171 = sbr.rel (%p168) target = $region12
    $region11: #{discriminator_forward.7} parent=5 // pred_region
      %s172 = ssub.s32 %s12, 1
      // Predicated region
      $region13: #{discriminator_forward.7} parent=11 // pred_check
        %p173 = pneg %p59
      $region14: #{discriminator_forward.7} parent=11 // pred_check_branch
        %175 = sbr.rel (%p173) target = $region16
      $region15: #{discriminator_forward.7} parent=11 // pred_region
        _
      $region16: #{discriminator_forward.7} parent=11 // pred_fallthru
        _
      // Predicated region
      $region17: #{discriminator_forward.7} parent=11 // pred_check
        %p176 = pneg %p80
      $region18: #{discriminator_forward.7} parent=11 // pred_check_branch
        %178 = sbr.rel (%p176) target = $region20
      $region19: #{discriminator_forward.7} parent=11 // pred_region
        _
      $region20: #{discriminator_forward.7} parent=11 // pred_fallthru
        _
    $region12: #{discriminator_forward.7} parent=5 // pred_fallthru
      _
    %p179 = scmp.lt.s32.totalorder %s12, 2
    // Predicated region
    $region21: #{discriminator_forward.7} parent=5 // pred_check
      %p180 = pneg %p179
    $region22: #{discriminator_forward.7} parent=5 // pred_check_branch
      %182 = sbr.rel (%p180) target = $region24
    $region23: #{discriminator_forward.7} parent=5 // pred_region
      // Predicated region
      $region25: #{discriminator_forward.7} parent=23 // pred_check
        %p183 = pneg %p32
      $region26: #{discriminator_forward.7} parent=23 // pred_check_branch
        %185 = sbr.rel (%p183) target = $region28
      $region27: #{discriminator_forward.7} parent=23 // pred_region
        %p186 = scmp.lt.s32.totalorder %s12, 1
        %s187 = scalar_select %p186, %s12, 1
        %s188 = smul.addr %s187, 16
        %s189 = smul.addr %s188, 4
        %s190 = scalar_lea.vmem %s0, %s189
      $region28: #{discriminator_forward.7} parent=23 // pred_fallthru
        _
    $region24: #{discriminator_forward.7} parent=5 // pred_fallthru
      _
    %p191 = scmp.le.s32.totalorder 1, %s12
    %p192 = scmp.lt.s32.totalorder %s12, 3
    %p193 = pnand %p191, %p192
    %p194 = pneg %p193
    // Predicated region
    $region29: #{discriminator_forward.7} parent=5 // pred_check
      _
    $region30: #{discriminator_forward.7} parent=5 // pred_check_branch
      %196 = sbr.rel (%p193) target = $region32
    $region31: #{discriminator_forward.7} parent=5 // pred_region
      %s197 = ssub.s32 %s12, 1
      %p198 = scmp.lt.s32.totalorder %s17, 1
      %s199 = scalar_select %p198, %s17, 1
      %s200 = smul.addr %s199, 16
      %s201 = smul.addr %s200, 4
      %s202 = scalar_lea.vmem %s0, %s201
      %p203 = pneg %p38
      %p204 = pneg %p35
      %p205 = pneg %p59
      %p206 = pneg %p56
      %p207 = pneg %p80
      %p208 = pneg %p77
      %p209 = pneg %p106
      %p210 = pneg %p103
      %p211 = scmp.lt.s32.totalorder %s17, 1
      %s212 = scalar_select %p211, %s17, 1
      %s213 = smul.addr %s212, 4
      %s214 = smul.addr %s213, 4
      %s215 = scalar_lea.vmem %s3, %s214
      %p216 = pneg %p132
      %p217 = pneg %p129
      %p218 = scmp.lt.s32.totalorder %s17, 1
      %s219 = scalar_select %p218, %s17, 1
      %s220 = smul.addr %s219, 4
      %s221 = smul.addr %s220, 8
      %s222 = scalar_lea.vmem %s4, %s221
      %p223 = pneg %p158
      %p224 = pneg %p155
      %p225 = scmp.lt.s32.totalorder %s17, 1
      %s226 = scalar_select %p225, %s17, 1
      %s227 = smul.addr %s226, 4
      %s228 = smul.addr %s227, 8
      %s229 = scalar_lea.vmem %s5, %s228
      %p230 = scmp.lt.s32.totalorder %s17, 1
      %s231 = scalar_select %p230, %s17, 1
      %s232 = smul.addr %s231, 16
      %s233 = smul.addr %s232, 4
      %s234 = scalar_lea.vmem %s0, %s233
      %p235 = scmp.lt.s32.totalorder %s17, 1
      %s236 = scalar_select %p235, %s17, 1
      %s237 = smul.addr %s236, 4
      %s238 = smul.addr %s237, 4
      %s239 = scalar_lea.vmem %s3, %s238
      %p240 = scmp.lt.s32.totalorder %s17, 1
      %s241 = scalar_select %p240, %s17, 1
      %s242 = smul.addr %s241, 4
      %s243 = smul.addr %s242, 8
      %s244 = scalar_lea.vmem %s4, %s243
      %p245 = scmp.lt.s32.totalorder %s17, 1
      %s246 = scalar_select %p245, %s17, 1
      %s247 = smul.addr %s246, 4
      %s248 = smul.addr %s247, 8
      %s249 = scalar_lea.vmem %s5, %s248
      %v251 = vld [vmem:[%s234] sm:$0xf]
      %v252 = vld [vmem:[%s234 + $0x8] sm:$0xf]
      %v253 = vld [vmem:[%s234 + $0x10] sm:$0xf]
      %v254 = vld [vmem:[%s234 + $0x18] sm:$0xf]
      %v255 = vld [vmem:[%s234 + $0x20] sm:$0xf]
      %v256 = vld [vmem:[%s234 + $0x28] sm:$0xf]
      %v257 = vld [vmem:[%s234 + $0x30] sm:$0xf]
      %v258 = vld [vmem:[%s234 + $0x38] sm:$0xf]
      %v259 = vld [vmem:[%s1] sm:$0xf]
      %v260 = vld [vmem:[%s1 + $0x4] sm:$0xf]
      %v261 = vld [vmem:[%s1 + $0x8] sm:$0xf]
      %v262 = vld [vmem:[%s1 + $0xc] sm:$0xf]
      %v263 = vld [vmem:[%s234] sm:$0xff]
      %v264 = vld [vmem:[%s234 + $0x8] sm:$0xff]
      %v265 = vld [vmem:[%s234 + $0x10] sm:$0xff]
      %v266 = vld [vmem:[%s234 + $0x18] sm:$0xff]
      %v267 = vld [vmem:[%s234 + $0x20] sm:$0xff]
      %v268 = vld [vmem:[%s234 + $0x28] sm:$0xff]
      %v269 = vld [vmem:[%s234 + $0x30] sm:$0xff]
      %v270 = vld [vmem:[%s234 + $0x38] sm:$0xff]
      %s271 = scalar_lea.vmem %s1, 16
      %v272 = vld [vmem:[%s271] sm:$0xf]
      %v273 = vld [vmem:[%s271 + $0x4] sm:$0xf]
      %v274 = vld [vmem:[%s271 + $0x8] sm:$0xf]
      %v275 = vld [vmem:[%s271 + $0xc] sm:$0xf]
      %v280 = vunpack.c.l.b16 %v272
      %v281 = vunpack.c.l.b16 %v273
      %v282 = vunpack.c.l.b16 %v274
      %v283 = vunpack.c.l.b16 %v275
      %v284 = vpack.c.b16 %v281, %v280
      %v285 = vpack.c.b16 %v283, %v282
      %v294 = vunpack.c.l.b16 %v263
      %v295 = vunpack.c.h.b16 %v263
      %v296 = vunpack.c.l.b16 %v264
      %v297 = vunpack.c.h.b16 %v264
      %v298 = vunpack.c.l.b16 %v265
      %v299 = vunpack.c.h.b16 %v265
      %v300 = vunpack.c.l.b16 %v266
      %v301 = vunpack.c.h.b16 %v266
      %v302 = vunpack.c.l.b16 %v267
      %v303 = vunpack.c.h.b16 %v267
      %v304 = vunpack.c.l.b16 %v268
      %v305 = vunpack.c.h.b16 %v268
      %v306 = vunpack.c.l.b16 %v269
      %v307 = vunpack.c.h.b16 %v269
      %v308 = vunpack.c.l.b16 %v270
      %v309 = vunpack.c.h.b16 %v270
      %v310 = vpack.c.b16 %v296, %v294
      %v311 = vpack.c.b16 %v297, %v295
      %v312 = vpack.c.b16 %v300, %v298
      %v313 = vpack.c.b16 %v301, %v299
      %v314 = vpack.c.b16 %v304, %v302
      %v315 = vpack.c.b16 %v305, %v303
      %v316 = vpack.c.b16 %v308, %v306
      %v317 = vpack.c.b16 %v309, %v307
      %318 = vrot.lane.b32.xlu0 %v310, 127
      %v319 = vpop.permute.xlu0 %318
      %320 = vrot.lane.b32.xlu0 %v311, 127
      %v321 = vpop.permute.xlu0 %320
      %322 = vrot.lane.b32.xlu0 %v312, 127
      %v323 = vpop.permute.xlu0 %322
      %324 = vrot.lane.b32.xlu0 %v313, 127
      %v325 = vpop.permute.xlu0 %324
      %326 = vrot.lane.b32.xlu0 %v314, 127
      %v327 = vpop.permute.xlu0 %326
      %328 = vrot.lane.b32.xlu0 %v315, 127
      %v329 = vpop.permute.xlu0 %328
      %330 = vrot.lane.b32.xlu0 %v316, 127
      %v331 = vpop.permute.xlu0 %330
      %332 = vrot.lane.b32.xlu0 %v317, 127
      %v333 = vpop.permute.xlu0 %332
      %vm334 = vcmask 1039360
      %v335 = vsel %vm334, %v319, %v321
      %v336 = vsel %vm334, %v323, %v325
      %v337 = vsel %vm334, %v327, %v329
      %v338 = vsel %vm334, %v331, %v333
      %vm343 = vcmask 523264
      %v345 = vsel %vm343, %v284, 0
      %v348 = vsel %vm343, %v285, 0
      %350 = vmatpush.bf16.msra.mxu0 0
      %351 = vmatpush.bf16.msra.mxu0 0
      %352 = vmatpush.bf16.msra.mxu0 0
      %353 = vmatpush.bf16.msra.mxu0 0
      %354 = vmatpush.bf16.msra.mxu0 %v338
      %355 = vmatpush.bf16.msra.mxu0 %v337
      %356 = vmatpush.bf16.msra.mxu0 %v336
      %357 = vmatpush.bf16.msra.mxu0 %v335
      %358 = vmatmul.bf16.gmra.mxu0 %v345
      %v359 = vpop.f32.mrf.mxu0
      %v360 = vadd.f32 0.0, %v359
      %v361 = vpop.f32.mrf.mxu0
      %v362 = vadd.f32 0.0, %v361
      %363 = vmatmul.bf16.gmra.mxu0 %v348
      %v364 = vpop.f32.mrf.mxu0
      %v365 = vadd.f32 0.0, %v364
      %v366 = vpop.f32.mrf.mxu0
      %v367 = vadd.f32 0.0, %v366
      %368 = vdwg.mxu0
      %v373 = vunpack.c.l.b16 %v259
      %v374 = vunpack.c.l.b16 %v260
      %v375 = vunpack.c.l.b16 %v261
      %v376 = vunpack.c.l.b16 %v262
      %v377 = vpack.c.b16 %v374, %v373
      %v378 = vpack.c.b16 %v376, %v375
      %v387 = vunpack.c.l.b16 %v251
      %v388 = vunpack.c.l.b16 %v252
      %v389 = vunpack.c.l.b16 %v253
      %v390 = vunpack.c.l.b16 %v254
      %v391 = vunpack.c.l.b16 %v255
      %v392 = vunpack.c.l.b16 %v256
      %v393 = vunpack.c.l.b16 %v257
      %v394 = vunpack.c.l.b16 %v258
      %v395 = vpack.c.b16 %v388, %v387
      %v396 = vpack.c.b16 %v390, %v389
      %v397 = vpack.c.b16 %v392, %v391
      %v398 = vpack.c.b16 %v394, %v393
      %v404 = vsel %vm343, %v377, 0
      %v407 = vsel %vm343, %v378, 0
      %409 = vmatpush.bf16.msra.mxu0 0
      %410 = vmatpush.bf16.msra.mxu0 0
      %411 = vmatpush.bf16.msra.mxu0 0
      %412 = vmatpush.bf16.msra.mxu0 0
      %413 = vmatpush.bf16.msra.mxu0 %v398
      %414 = vmatpush.bf16.msra.mxu0 %v397
      %415 = vmatpush.bf16.msra.mxu0 %v396
      %416 = vmatpush.bf16.msra.mxu0 %v395
      %417 = vmatmul.bf16.gmra.mxu0 %v404
      %v418 = vpop.f32.mrf.mxu0
      %v419 = vadd.f32 %v360, %v418
      %v420 = vpop.f32.mrf.mxu0
      %v421 = vadd.f32 %v362, %v420
      %422 = vmatmul.bf16.gmra.mxu0 %v407
      %v423 = vpop.f32.mrf.mxu0
      %v424 = vadd.f32 %v365, %v423
      %v425 = vpop.f32.mrf.mxu0
      %v426 = vadd.f32 %v367, %v425
      %427 = vdwg.mxu0
      %s428 = scalar_lea.vmem %s1, 32
      %v429 = vld [vmem:[%s428] sm:$0xf]
      %v430 = vld [vmem:[%s428 + $0x4] sm:$0xf]
      %v431 = vld [vmem:[%s428 + $0x8] sm:$0xf]
      %v432 = vld [vmem:[%s428 + $0xc] sm:$0xf]
      %v437 = vunpack.c.l.b16 %v429
      %v438 = vunpack.c.l.b16 %v430
      %v439 = vunpack.c.l.b16 %v431
      %v440 = vunpack.c.l.b16 %v432
      %v441 = vpack.c.b16 %v438, %v437
      %v442 = vpack.c.b16 %v440, %v439
      %443 = vrot.lane.b32.xlu0 %v310, 119
      %v444 = vpop.permute.xlu0 %443
      %445 = vrot.lane.b32.xlu0 %v311, 119
      %v446 = vpop.permute.xlu0 %445
      %447 = vrot.lane.b32.xlu0 %v312, 119
      %v448 = vpop.permute.xlu0 %447
      %449 = vrot.lane.b32.xlu0 %v313, 119
      %v450 = vpop.permute.xlu0 %449
      %451 = vrot.lane.b32.xlu0 %v314, 119
      %v452 = vpop.permute.xlu0 %451
      %453 = vrot.lane.b32.xlu0 %v315, 119
      %v454 = vpop.permute.xlu0 %453
      %455 = vrot.lane.b32.xlu0 %v316, 119
      %v456 = vpop.permute.xlu0 %455
      %457 = vrot.lane.b32.xlu0 %v317, 119
      %v458 = vpop.permute.xlu0 %457
      %vm459 = vcmask 973824
      %v460 = vsel %vm459, %v444, %v446
      %v461 = vsel %vm459, %v448, %v450
      %v462 = vsel %vm459, %v452, %v454
      %v463 = vsel %vm459, %v456, %v458
      %v469 = vsel %vm343, %v441, 0
      %v472 = vsel %vm343, %v442, 0
      %474 = vmatpush.bf16.msra.mxu0 0
      %475 = vmatpush.bf16.msra.mxu0 0
      %476 = vmatpush.bf16.msra.mxu0 0
      %477 = vmatpush.bf16.msra.mxu0 0
      %478 = vmatpush.bf16.msra.mxu0 %v463
      %479 = vmatpush.bf16.msra.mxu0 %v462
      %480 = vmatpush.bf16.msra.mxu0 %v461
      %481 = vmatpush.bf16.msra.mxu0 %v460
      %482 = vmatmul.bf16.gmra.mxu0 %v469
      %v483 = vpop.f32.mrf.mxu0
      %v484 = vadd.f32 0.0, %v483
      %v485 = vpop.f32.mrf.mxu0
      %v486 = vadd.f32 0.0, %v485
      %487 = vmatmul.bf16.gmra.mxu0 %v472
      %v488 = vpop.f32.mrf.mxu0
      %v489 = vadd.f32 0.0, %v488
      %v490 = vpop.f32.mrf.mxu0
      %v491 = vadd.f32 0.0, %v490
      %492 = vdwg.mxu0
      %v493 = vadd.f32 %v419, %v484
      %v494 = vadd.f32 %v421, %v486
      %v495 = vadd.f32 %v424, %v489
      %v496 = vadd.f32 %v426, %v491
      %s497 = scalar_lea.vmem %s1, 48
      %v498 = vld [vmem:[%s497] sm:$0xf]
      %v499 = vld [vmem:[%s497 + $0x4] sm:$0xf]
      %v500 = vld [vmem:[%s497 + $0x8] sm:$0xf]
      %v501 = vld [vmem:[%s497 + $0xc] sm:$0xf]
      %v506 = vunpack.c.l.b16 %v498
      %v507 = vunpack.c.l.b16 %v499
      %v508 = vunpack.c.l.b16 %v500
      %v509 = vunpack.c.l.b16 %v501
      %v510 = vpack.c.b16 %v507, %v506
      %v511 = vpack.c.b16 %v509, %v508
      %512 = vrot.lane.b32.xlu0 %v310, 118
      %v513 = vpop.permute.xlu0 %512
      %514 = vrot.lane.b32.xlu0 %v311, 118
      %v515 = vpop.permute.xlu0 %514
      %516 = vrot.lane.b32.xlu0 %v312, 118
      %v517 = vpop.permute.xlu0 %516
      %518 = vrot.lane.b32.xlu0 %v313, 118
      %v519 = vpop.permute.xlu0 %518
      %520 = vrot.lane.b32.xlu0 %v314, 118
      %v521 = vpop.permute.xlu0 %520
      %522 = vrot.lane.b32.xlu0 %v315, 118
      %v523 = vpop.permute.xlu0 %522
      %524 = vrot.lane.b32.xlu0 %v316, 118
      %v525 = vpop.permute.xlu0 %524
      %526 = vrot.lane.b32.xlu0 %v317, 118
      %v527 = vpop.permute.xlu0 %526
      %vm528 = vcmask 965632
      %v529 = vsel %vm528, %v513, %v515
      %v530 = vsel %vm528, %v517, %v519
      %v531 = vsel %vm528, %v521, %v523
      %v532 = vsel %vm528, %v525, %v527
      %v538 = vsel %vm343, %v510, 0
      %v541 = vsel %vm343, %v511, 0
      %543 = vmatpush.bf16.msra.mxu0 0
      %544 = vmatpush.bf16.msra.mxu0 0
      %545 = vmatpush.bf16.msra.mxu0 0
      %546 = vmatpush.bf16.msra.mxu0 0
      %547 = vmatpush.bf16.msra.mxu0 %v532
      %548 = vmatpush.bf16.msra.mxu0 %v531
      %549 = vmatpush.bf16.msra.mxu0 %v530
      %550 = vmatpush.bf16.msra.mxu0 %v529
      %551 = vmatmul.bf16.gmra.mxu0 %v538
      %v552 = vpop.f32.mrf.mxu0
      %v553 = vadd.f32 0.0, %v552
      %v554 = vpop.f32.mrf.mxu0
      %v555 = vadd.f32 0.0, %v554
      %556 = vmatmul.bf16.gmra.mxu0 %v541
      %v557 = vpop.f32.mrf.mxu0
      %v558 = vadd.f32 0.0, %v557
      %v559 = vpop.f32.mrf.mxu0
      %v560 = vadd.f32 0.0, %v559
      %561 = vdwg.mxu0
      %v562 = vadd.f32 %v493, %v553
      %v563 = vadd.f32 %v494, %v555
      %v564 = vadd.f32 %v495, %v558
      %v565 = vadd.f32 %v496, %v560
      %v566 = vpack.c.bf16 %v562, %v562
      %v567 = vpack.c.bf16 %v563, %v563
      %v568 = vpack.c.bf16 %v564, %v564
      %v569 = vpack.c.bf16 %v565, %v565
      %570 = vst [vmem:[%s239] sm:$0xf] %v566
      %571 = vst [vmem:[%s239 + $0x4] sm:$0xf] %v567
      %572 = vst [vmem:[%s239 + $0x8] sm:$0xf] %v568
      %573 = vst [vmem:[%s239 + $0xc] sm:$0xf] %v569
      %v574 = vld [vmem:[%s2] sm:$0x1]
      %v576 = vperm.slane %v574, 0
      %v578 = vmul.f32 %v562, %v576
      %v579 = vmul.f32 %v563, %v576
      %v580 = vmul.f32 %v564, %v576
      %v581 = vmul.f32 %v565, %v576
      %582 = vadd.xlane.f32.xlu0 %v578
      %v583 = vpop.xlane.xlu0 %582
      %584 = vadd.xlane.f32.xlu0 %v579
      %v585 = vpop.xlane.xlu0 %584
      %586 = vadd.xlane.f32.xlu0 %v580
      %v587 = vpop.xlane.xlu0 %586
      %588 = vadd.xlane.f32.xlu0 %v581
      %v589 = vpop.xlane.xlu0 %588
      %vm590 = vcmask 7168
      %591 = vst.msk [vmem:[%s244] sm:$0xff] %vm590, %v583
      %592 = vst.msk [vmem:[%s244 + $0x8] sm:$0xff] %vm590, %v585
      %593 = vst.msk [vmem:[%s244 + $0x10] sm:$0xff] %vm590, %v587
      %594 = vst.msk [vmem:[%s244 + $0x18] sm:$0xff] %vm590, %v589
      %v595 = vmul.f32 %v578, %v562
      %v596 = vmul.f32 %v579, %v563
      %v597 = vmul.f32 %v580, %v564
      %v598 = vmul.f32 %v581, %v565
      %599 = vadd.xlane.f32.xlu0 %v595
      %v600 = vpop.xlane.xlu0 %599
      %601 = vadd.xlane.f32.xlu0 %v596
      %v602 = vpop.xlane.xlu0 %601
      %603 = vadd.xlane.f32.xlu0 %v597
      %v604 = vpop.xlane.xlu0 %603
      %605 = vadd.xlane.f32.xlu0 %v598
      %v606 = vpop.xlane.xlu0 %605
      %607 = vst.msk [vmem:[%s249] sm:$0xff] %vm590, %v600
      %608 = vst.msk [vmem:[%s249 + $0x8] sm:$0xff] %vm590, %v602
      %609 = vst.msk [vmem:[%s249 + $0x10] sm:$0xff] %vm590, %v604
      %610 = vst.msk [vmem:[%s249 + $0x18] sm:$0xff] %vm590, %v606
      %p611 = scmp.lt.s32.totalorder %s17, 1
      %s612 = scalar_select %p611, %s17, 1
      %s613 = smul.addr %s612, 4
      %s614 = smul.addr %s613, 4
      %s615 = scalar_lea.vmem %s3, %s614
      %p616 = scmp.lt.s32.totalorder %s17, 1
      %s617 = scalar_select %p616, %s17, 1
      %s618 = smul.addr %s617, 4
      %s619 = smul.addr %s618, 8
      %s620 = scalar_lea.vmem %s4, %s619
      %p621 = scmp.lt.s32.totalorder %s17, 1
      %s622 = scalar_select %p621, %s17, 1
      %s623 = smul.addr %s622, 4
      %s624 = smul.addr %s623, 8
      %s625 = scalar_lea.vmem %s5, %s624
      // Predicated region
      $region33: #{discriminator_forward.7} parent=31 // pred_check
        %p626 = pneg %p103
      $region34: #{discriminator_forward.7} parent=31 // pred_check_branch
        %628 = sbr.rel (%p626) target = $region36
      $region35: #{discriminator_forward.7} parent=31 // pred_region
        _
      $region36: #{discriminator_forward.7} parent=31 // pred_fallthru
        _
      // Predicated region
      $region37: #{discriminator_forward.7} parent=31 // pred_check
        %p629 = pneg %p129
      $region38: #{discriminator_forward.7} parent=31 // pred_check_branch
        %631 = sbr.rel (%p629) target = $region40
      $region39: #{discriminator_forward.7} parent=31 // pred_region
        _
      $region40: #{discriminator_forward.7} parent=31 // pred_fallthru
        _
      // Predicated region
      $region41: #{discriminator_forward.7} parent=31 // pred_check
        %p632 = pneg %p155
      $region42: #{discriminator_forward.7} parent=31 // pred_check_branch
        %634 = sbr.rel (%p632) target = $region44
      $region43: #{discriminator_forward.7} parent=31 // pred_region
        _
      $region44: #{discriminator_forward.7} parent=31 // pred_fallthru
        _
    $region32: #{discriminator_forward.7} parent=5 // pred_fallthru
      _
    %p635 = scmp.le.s32.totalorder 2, %s12
    // Predicated region
    $region45: #{discriminator_forward.7} parent=5 // pred_check
      %p636 = pneg %p635
    $region46: #{discriminator_forward.7} parent=5 // pred_check_branch
      %638 = sbr.rel (%p636) target = $region48
    $region47: #{discriminator_forward.7} parent=5 // pred_region
      %s639 = ssub.s32 %s12, 2
      // Predicated region
      $region49: #{discriminator_forward.7} parent=47 // pred_check
        %p640 = pneg %p109
      $region50: #{discriminator_forward.7} parent=47 // pred_check_branch
        %642 = sbr.rel (%p640) target = $region52
      $region51: #{discriminator_forward.7} parent=47 // pred_region
        %p643 = scmp.lt.s32.totalorder %s18, 1
        %s644 = scalar_select %p643, %s18, 1
        %s645 = smul.addr %s644, 4
        %s646 = smul.addr %s645, 4
        %s647 = scalar_lea.vmem %s3, %s646
      $region52: #{discriminator_forward.7} parent=47 // pred_fallthru
        _
      // Predicated region
      $region53: #{discriminator_forward.7} parent=47 // pred_check
        %p648 = pneg %p135
      $region54: #{discriminator_forward.7} parent=47 // pred_check_branch
        %650 = sbr.rel (%p648) target = $region56
      $region55: #{discriminator_forward.7} parent=47 // pred_region
        %p651 = scmp.lt.s32.totalorder %s18, 1
        %s652 = scalar_select %p651, %s18, 1
        %s653 = smul.addr %s652, 4
        %s654 = smul.addr %s653, 8
        %s655 = scalar_lea.vmem %s4, %s654
      $region56: #{discriminator_forward.7} parent=47 // pred_fallthru
        _
      // Predicated region
      $region57: #{discriminator_forward.7} parent=47 // pred_check
        %p656 = pneg %p161
      $region58: #{discriminator_forward.7} parent=47 // pred_check_branch
        %658 = sbr.rel (%p656) target = $region60
      $region59: #{discriminator_forward.7} parent=47 // pred_region
        %p659 = scmp.lt.s32.totalorder %s18, 1
        %s660 = scalar_select %p659, %s18, 1
        %s661 = smul.addr %s660, 4
        %s662 = smul.addr %s661, 8
        %s663 = scalar_lea.vmem %s5, %s662
      $region60: #{discriminator_forward.7} parent=47 // pred_fallthru
        _
    $region48: #{discriminator_forward.7} parent=5 // pred_fallthru
      _
  $region6: #{discriminator_forward.7} parent=0 // loop_footer
    %s16 = sadd.s32 1, %s12
  $region7: #{discriminator_forward.7} parent=0 // loop_footer_branch
    %11 = sbr.rel target = $region3
  $region8: #{discriminator_forward.7} parent=0 // loop_exit
    _

// kernel: discriminator_forward.9
$region0: #{discriminator_forward.9}
  #allocation0 [shape = 'u32[]', space=smem, size = 0x4, offset = 0x4, fixed_abs, tag = 'smem constant byte address 0x4 - core index']
  #allocation1 [shape = 'u32[72,128]{1,0:T(1,128)}', space=vmem, size = 0x9000, scoped, tag = 'internal scratch']
  %s0 = inlined_call_operand.vmem [shape: bf16[2,1024], index: 0, kind: input, shape index: {}]
  %s1 = inlined_call_operand.vmem [shape: bf16[1,1024], index: 1, kind: input, shape index: {}]
  %s2 = inlined_call_operand.vmem [shape: f32[2,1], index: 2, kind: output, shape index: {}]
  %s3 = sld [smem:[#allocation0]]
  $region18: #{discriminator_forward.9} parent=0
    _
  %s5 = ssub.s32 1, %s3
  %s6 = scalar_select 0, %s5, %s3
  // Predicated region
  $region2: #{discriminator_forward.9} parent=0 // pred_check
    _
  $region3: #{discriminator_forward.9} parent=0 // pred_check_branch
    %8 = sbr.rel (0) target = $region5
  $region4: #{discriminator_forward.9} parent=0 // pred_region
    _
  $region5: #{discriminator_forward.9} parent=0 // pred_fallthru
    _
  // Predicated region
  $region6: #{discriminator_forward.9} parent=0 // pred_check
    _
  $region7: #{discriminator_forward.9} parent=0 // pred_check_branch
    %10 = sbr.rel (0) target = $region9
  $region8: #{discriminator_forward.9} parent=0 // pred_region
    _
  $region9: #{discriminator_forward.9} parent=0 // pred_fallthru
    _
  %v11 = vld [vmem:[%s0] sm:$0xff]
  %v12 = vunpack.c.l.bf16 %v11
  %v13 = vunpack.c.h.bf16 %v11
  %v14 = vld [vmem:[%s1] sm:$0xff]
  %v15 = vunpack.c.l.bf16 %v14
  %v16 = vunpack.c.h.bf16 %v14
  %v19 = vperm.slane %v15, 0
  %v20 = vperm.slane %v15, 2
  %v21 = vperm.slane %v15, 4
  %v22 = vperm.slane %v15, 6
  %v23 = vperm.slane %v16, 0
  %v24 = vperm.slane %v16, 2
  %v25 = vperm.slane %v16, 4
  %v26 = vperm.slane %v16, 6
  %v35 = vperm.slane %v19, 0
  %v36 = vperm.slane %v20, 0
  %v37 = vperm.slane %v21, 0
  %v38 = vperm.slane %v22, 0
  %v39 = vperm.slane %v23, 0
  %v40 = vperm.slane %v24, 0
  %v41 = vperm.slane %v25, 0
  %v42 = vperm.slane %v26, 0
  %v51 = vrot.slane %v36, 6
  %v52 = vrot.slane %v37, 4
  %v53 = vrot.slane %v38, 2
  %v54 = vrot.slane %v40, 6
  %v55 = vrot.slane %v41, 4
  %v56 = vrot.slane %v42, 2
  %vm57 = vcmask 1041408
  %v58 = vsel %vm57, %v35, %v51
  %vm59 = vcmask 1045508
  %v60 = vsel %vm59, %v52, %v53
  %vm61 = vcmask 1043456
  %v62 = vsel %vm61, %v58, %v60
  %v63 = vsel %vm57, %v39, %v54
  %v64 = vsel %vm59, %v55, %v56
  %v65 = vsel %vm61, %v63, %v64
  %v68 = vmul.f32 %v12, %v62
  %v69 = vmul.f32 %v13, %v65
  %72 = vst [vmem:[#allocation1] ss:$4 sm:$0xff] %v68
  %s73 = scalar_lea.vmem [#allocation1], 32
  %74 = vst [vmem:[%s73] ss:$4 sm:$0xff] %v69
  %v75 = vld.sshfl [vmem:[#allocation1] sm:$0xff pattern:$0x73625140]
  %v76 = vld.sshfl [vmem:[#allocation1 + $0x8] sm:$0xff pattern:$0x73625140]
  %v77 = vld.sshfl [vmem:[#allocation1 + $0x10] sm:$0xff pattern:$0x73625140]
  %v78 = vld.sshfl [vmem:[#allocation1 + $0x18] sm:$0xff pattern:$0x73625140]
  %v79 = vld.sshfl [vmem:[#allocation1 + $0x20] sm:$0xff pattern:$0x73625140]
  %v80 = vld.sshfl [vmem:[#allocation1 + $0x28] sm:$0xff pattern:$0x73625140]
  %v81 = vld.sshfl [vmem:[#allocation1 + $0x30] sm:$0xff pattern:$0x73625140]
  %v82 = vld.sshfl [vmem:[#allocation1 + $0x38] sm:$0xff pattern:$0x73625140]
  %v91 = vsel %vm57, %v75, 0.0
  %v92 = vsel %vm57, %v76, 0.0
  %v93 = vadd.f32 %v91, %v92
  %v94 = vsel %vm57, %v77, 0.0
  %v95 = vadd.f32 %v93, %v94
  %v96 = vsel %vm57, %v78, 0.0
  %v97 = vadd.f32 %v95, %v96
  %v98 = vsel %vm57, %v79, 0.0
  %v99 = vadd.f32 %v97, %v98
  %v100 = vsel %vm57, %v80, 0.0
  %v101 = vadd.f32 %v99, %v100
  %v102 = vsel %vm57, %v81, 0.0
  %v103 = vadd.f32 %v101, %v102
  %v104 = vsel %vm57, %v82, 0.0
  %v105 = vadd.f32 %v103, %v104
  %106 = vadd.xlane.f32.xlu0 %v105
  %v107 = vpop.xlane.xlu0 %106
  %v108 = vsub.f32 0.0, %v107
  %v109 = vmul.f32 %v108, 1.442695
  %v110 = vpow.pop %v109
  %v111 = vadd.f32 %v110, 1.0
  %v112 = vrcp.pop %v111
  %v113 = vmax.f32 %v112, 0.0
  %v114 = vmin.f32 %v113, 1.0
  %vm115 = vcmask 1024
  %116 = vst.msk [vmem:[%s2] sm:$0x3] %vm115, %v114
  // Predicated region
  $region10: #{discriminator_forward.9} parent=0 // pred_check
    _
  $region11: #{discriminator_forward.9} parent=0 // pred_check_branch
    %118 = sbr.rel (0) target = $region13
  $region12: #{discriminator_forward.9} parent=0 // pred_region
    _
  $region13: #{discriminator_forward.9} parent=0 // pred_fallthru
    _
  // Predicated region
  $region14: #{discriminator_forward.9} parent=0 // pred_check
    _
  $region15: #{discriminator_forward.9} parent=0 // pred_check_branch
    %120 = sbr.rel (0) target = $region17
  $region16: #{discriminator_forward.9} parent=0 // pred_region
    _
  $region17: #{discriminator_forward.9} parent=0 // pred_fallthru
    _

// kernel: discriminator_forward.8
$region0: #{discriminator_forward.8}
  #allocation0 [shape = 'u32[]', space=smem, size = 0x4, offset = 0x4, fixed_abs, tag = 'smem constant byte address 0x4 - core index']
  #allocation1 [shape = 'u32[72,128]{1,0:T(1,128)}', space=vmem, size = 0x9000, scoped, tag = 'internal scratch']
  %s0 = inlined_call_operand.vmem [shape: bf16[2,128,256], index: 0, kind: input, shape index: {}]
  %s1 = inlined_call_operand.vmem [shape: bf16[4,64,128], index: 1, kind: input, shape index: {}]
  %s2 = inlined_call_operand.vmem [shape: f32[1,128], index: 2, kind: input, shape index: {}]
  %s3 = inlined_call_operand.vmem [shape: bf16[2,64,128], index: 3, kind: output, shape index: {0}]
  %s4 = inlined_call_operand.vmem [shape: f32[2,64,1], index: 4, kind: output, shape index: {1}]
  %s5 = inlined_call_operand.vmem [shape: f32[2,64,1], index: 5, kind: output, shape index: {2}]
  %6 = xla_tuple %s3, %s4, %s5
  %s7 = sld [smem:[#allocation0]]
  $region61: #{discriminator_forward.8} parent=0
    _
  %s9 = ssub.s32 1, %s7
  %s10 = scalar_select 0, %s9, %s7
  loop: start=0, step=1, limit=4
  $region2: #{discriminator_forward.8} parent=0 // loop_pre_header
    _
  $region3: #{discriminator_forward.8} parent=0 // loop_header
    %s12 = sphi 0, %s16
    %p13 = scmp.ge.s32.totalorder %s12, 4
    %s22 = sphi 0, %s24
    %s25 = sphi 0, %s22
    %s26 = sphi 0, %s25
    %s42 = sphi 0, %s26
    %s46 = sphi 0, %s46
    %s48 = sphi 0, %s46
    %s49 = sphi 0, %s48
    %s63 = sphi 0, %s49
    %s67 = sphi 0, %s67
    %s69 = sphi 0, %s67
    %s70 = sphi 0, %s69
    %s84 = sphi 0, %s70
    %s90 = sphi 0, %s92
    %s93 = sphi 0, %s90
    %s94 = sphi 0, %s93
    %s110 = sphi 0, %s94
    %s116 = sphi 0, %s118
    %s119 = sphi 0, %s116
    %s120 = sphi 0, %s119
    %s136 = sphi 0, %s120
    %s142 = sphi 0, %s144
    %s145 = sphi 0, %s142
    %s146 = sphi 0, %s145
    %s162 = sphi 0, %s146
  $region4: #{discriminator_forward.8} parent=0 // loop_header_branch
    %15 = sbr.rel (%p13) target = $region8
  $region5: #{discriminator_forward.8} parent=0 // loop_body
    %s17 = ssub.s32 %s12, 1
    %s18 = ssub.s32 %s12, 2
    %s19 = sadd.s32 %s12, 1
    %s20 = ssub.s32 %s12, %s19
    %p21 = scmp.eq.s32.totalorder %s20, 0
    %s23 = sadd.s32 %s22, 1
    %s24 = scalar_select %p21, %s22, %s23
    %p27 = pneg %p21
    %p28 = scmp.eq.s32.totalorder %s12, 1
    %p29 = por %p27, %p28
    %p30 = scmp.ne.s32.totalorder %s22, %s25
    %p31 = scmp.eq.s32.totalorder %s12, 0
    %p32 = por %p30, %p31
    %p33 = scmp.ne.s32.totalorder %s22, %s25
    %p34 = scmp.eq.s32.totalorder %s17, 1
    %p35 = por %p33, %p34
    %p36 = scmp.ne.s32.totalorder %s25, %s26
    %p37 = scmp.eq.s32.totalorder %s17, 0
    %p38 = por %p36, %p37
    %p39 = scmp.ne.s32.totalorder %s25, %s26
    %p40 = scmp.eq.s32.totalorder %s18, 1
    %p41 = por %p39, %p40
    %p43 = scmp.ne.s32.totalorder %s26, %s42
    %p44 = scmp.eq.s32.totalorder %s18, 0
    %p45 = por %p43, %p44
    %s47 = sadd.s32 %s46, 1
    %p50 = scmp.eq.s32.totalorder %s12, 1
    %p51 = scmp.ne.s32.totalorder %s46, %s48
    %p52 = scmp.eq.s32.totalorder %s12, 0
    %p53 = por %p51, %p52
    %p54 = scmp.ne.s32.totalorder %s46, %s48
    %p55 = scmp.eq.s32.totalorder %s17, 1
    %p56 = por %p54, %p55
    %p57 = scmp.ne.s32.totalorder %s48, %s49
    %p58 = scmp.eq.s32.totalorder %s17, 0
    %p59 = por %p57, %p58
    %p60 = scmp.ne.s32.totalorder %s48, %s49
    %p61 = scmp.eq.s32.totalorder %s18, 1
    %p62 = por %p60, %p61
    %p64 = scmp.ne.s32.totalorder %s49, %s63
    %p65 = scmp.eq.s32.totalorder %s18, 0
    %p66 = por %p64, %p65
    %s68 = sadd.s32 %s67, 1
    %p71 = scmp.eq.s32.totalorder %s12, 1
    %p72 = scmp.ne.s32.totalorder %s67, %s69
    %p73 = scmp.eq.s32.totalorder %s12, 0
    %p74 = por %p72, %p73
    %p75 = scmp.ne.s32.totalorder %s67, %s69
    %p76 = scmp.eq.s32.totalorder %s17, 1
    %p77 = por %p75, %p76
    %p78 = scmp.ne.s32.totalorder %s69, %s70
    %p79 = scmp.eq.s32.totalorder %s17, 0
    %p80 = por %p78, %p79
    %p81 = scmp.ne.s32.totalorder %s69, %s70
    %p82 = scmp.eq.s32.totalorder %s18, 1
    %p83 = por %p81, %p82
    %p85 = scmp.ne.s32.totalorder %s70, %s84
    %p86 = scmp.eq.s32.totalorder %s18, 0
    %p87 = por %p85, %p86
    %s88 = ssub.s32 %s12, %s19
    %p89 = scmp.eq.s32.totalorder %s88, 0
    %s91 = sadd.s32 %s90, 1
    %s92 = scalar_select %p89, %s90, %s91
    %p95 = pneg %p89
    %p96 = scmp.eq.s32.totalorder %s12, 1
    %p97 = por %p95, %p96
    %p98 = scmp.ne.s32.totalorder %s90, %s93
    %p99 = scmp.eq.s32.totalorder %s12, 0
    %p100 = por %p98, %p99
    %p101 = scmp.ne.s32.totalorder %s90, %s93
    %p102 = scmp.eq.s32.totalorder %s17, 1
    %p103 = por %p101, %p102
    %p104 = scmp.ne.s32.totalorder %s93, %s94
    %p105 = scmp.eq.s32.totalorder %s17, 0
    %p106 = por %p104, %p105
    %p107 = scmp.ne.s32.totalorder %s93, %s94
    %p108 = scmp.eq.s32.totalorder %s18, 1
    %p109 = por %p107, %p108
    %p111 = scmp.ne.s32.totalorder %s94, %s110
    %p112 = scmp.eq.s32.totalorder %s18, 0
    %p113 = por %p111, %p112
    %s114 = ssub.s32 %s12, %s19
    %p115 = scmp.eq.s32.totalorder %s114, 0
    %s117 = sadd.s32 %s116, 1
    %s118 = scalar_select %p115, %s116, %s117
    %p121 = pneg %p115
    %p122 = scmp.eq.s32.totalorder %s12, 1
    %p123 = por %p121, %p122
    %p124 = scmp.ne.s32.totalorder %s116, %s119
    %p125 = scmp.eq.s32.totalorder %s12, 0
    %p126 = por %p124, %p125
    %p127 = scmp.ne.s32.totalorder %s116, %s119
    %p128 = scmp.eq.s32.totalorder %s17, 1
    %p129 = por %p127, %p128
    %p130 = scmp.ne.s32.totalorder %s119, %s120
    %p131 = scmp.eq.s32.totalorder %s17, 0
    %p132 = por %p130, %p131
    %p133 = scmp.ne.s32.totalorder %s119, %s120
    %p134 = scmp.eq.s32.totalorder %s18, 1
    %p135 = por %p133, %p134
    %p137 = scmp.ne.s32.totalorder %s120, %s136
    %p138 = scmp.eq.s32.totalorder %s18, 0
    %p139 = por %p137, %p138
    %s140 = ssub.s32 %s12, %s19
    %p141 = scmp.eq.s32.totalorder %s140, 0
    %s143 = sadd.s32 %s142, 1
    %s144 = scalar_select %p141, %s142, %s143
    %p147 = pneg %p141
    %p148 = scmp.eq.s32.totalorder %s12, 1
    %p149 = por %p147, %p148
    %p150 = scmp.ne.s32.totalorder %s142, %s145
    %p151 = scmp.eq.s32.totalorder %s12, 0
    %p152 = por %p150, %p151
    %p153 = scmp.ne.s32.totalorder %s142, %s145
    %p154 = scmp.eq.s32.totalorder %s17, 1
    %p155 = por %p153, %p154
    %p156 = scmp.ne.s32.totalorder %s145, %s146
    %p157 = scmp.eq.s32.totalorder %s17, 0
    %p158 = por %p156, %p157
    %p159 = scmp.ne.s32.totalorder %s145, %s146
    %p160 = scmp.eq.s32.totalorder %s18, 1
    %p161 = por %p159, %p160
    %p163 = scmp.ne.s32.totalorder %s146, %s162
    %p164 = scmp.eq.s32.totalorder %s18, 0
    %p165 = por %p163, %p164
    %p166 = scmp.le.s32.totalorder 1, %s12
    %p167 = scmp.lt.s32.totalorder %s12, 3
    %p168 = pnand %p166, %p167
    %p169 = pneg %p168
    // Predicated region
    $region9: #{discriminator_forward.8} parent=5 // pred_check
      _
    $region10: #{discriminator_forward.8} parent=5 // pred_check_branch
      %171 = sbr.rel (%p168) target = $region12
    $region11: #{discriminator_forward.8} parent=5 // pred_region
      %s172 = ssub.s32 %s12, 1
      // Predicated region
      $region13: #{discriminator_forward.8} parent=11 // pred_check
        %p173 = pneg %p59
      $region14: #{discriminator_forward.8} parent=11 // pred_check_branch
        %175 = sbr.rel (%p173) target = $region16
      $region15: #{discriminator_forward.8} parent=11 // pred_region
        _
      $region16: #{discriminator_forward.8} parent=11 // pred_fallthru
        _
      // Predicated region
      $region17: #{discriminator_forward.8} parent=11 // pred_check
        %p176 = pneg %p80
      $region18: #{discriminator_forward.8} parent=11 // pred_check_branch
        %178 = sbr.rel (%p176) target = $region20
      $region19: #{discriminator_forward.8} parent=11 // pred_region
        _
      $region20: #{discriminator_forward.8} parent=11 // pred_fallthru
        _
    $region12: #{discriminator_forward.8} parent=5 // pred_fallthru
      _
    %p179 = scmp.lt.s32.totalorder %s12, 2
    // Predicated region
    $region21: #{discriminator_forward.8} parent=5 // pred_check
      %p180 = pneg %p179
    $region22: #{discriminator_forward.8} parent=5 // pred_check_branch
      %182 = sbr.rel (%p180) target = $region24
    $region23: #{discriminator_forward.8} parent=5 // pred_region
      // Predicated region
      $region25: #{discriminator_forward.8} parent=23 // pred_check
        %p183 = pneg %p32
      $region26: #{discriminator_forward.8} parent=23 // pred_check_branch
        %185 = sbr.rel (%p183) target = $region28
      $region27: #{discriminator_forward.8} parent=23 // pred_region
        %p186 = scmp.lt.s32.totalorder %s12, 1
        %s187 = scalar_select %p186, %s12, 1
        %s188 = smul.addr %s187, 32
        %s189 = smul.addr %s188, 4
        %s190 = scalar_lea.vmem %s0, %s189
      $region28: #{discriminator_forward.8} parent=23 // pred_fallthru
        _
    $region24: #{discriminator_forward.8} parent=5 // pred_fallthru
      _
    %p191 = scmp.le.s32.totalorder 1, %s12
    %p192 = scmp.lt.s32.totalorder %s12, 3
    %p193 = pnand %p191, %p192
    %p194 = pneg %p193
    // Predicated region
    $region29: #{discriminator_forward.8} parent=5 // pred_check
      _
    $region30: #{discriminator_forward.8} parent=5 // pred_check_branch
      %196 = sbr.rel (%p193) target = $region32
    $region31: #{discriminator_forward.8} parent=5 // pred_region
      %s197 = ssub.s32 %s12, 1
      %p198 = scmp.lt.s32.totalorder %s17, 1
      %s199 = scalar_select %p198, %s17, 1
      %s200 = smul.addr %s199, 32
      %s201 = smul.addr %s200, 4
      %s202 = scalar_lea.vmem %s0, %s201
      %p203 = pneg %p38
      %p204 = pneg %p35
      %p205 = pneg %p59
      %p206 = pneg %p56
      %p207 = pneg %p80
      %p208 = pneg %p77
      %p209 = pneg %p106
      %p210 = pneg %p103
      %p211 = scmp.lt.s32.totalorder %s17, 1
      %s212 = scalar_select %p211, %s17, 1
      %s213 = smul.addr %s212, 8
      %s214 = smul.addr %s213, 4
      %s215 = scalar_lea.vmem %s3, %s214
      %p216 = pneg %p132
      %p217 = pneg %p129
      %p218 = scmp.lt.s32.totalorder %s17, 1
      %s219 = scalar_select %p218, %s17, 1
      %s220 = smul.addr %s219, 8
      %s221 = smul.addr %s220, 8
      %s222 = scalar_lea.vmem %s4, %s221
      %p223 = pneg %p158
      %p224 = pneg %p155
      %p225 = scmp.lt.s32.totalorder %s17, 1
      %s226 = scalar_select %p225, %s17, 1
      %s227 = smul.addr %s226, 8
      %s228 = smul.addr %s227, 8
      %s229 = scalar_lea.vmem %s5, %s228
      %p230 = scmp.lt.s32.totalorder %s17, 1
      %s231 = scalar_select %p230, %s17, 1
      %s232 = smul.addr %s231, 32
      %s233 = smul.addr %s232, 4
      %s234 = scalar_lea.vmem %s0, %s233
      %p235 = scmp.lt.s32.totalorder %s17, 1
      %s236 = scalar_select %p235, %s17, 1
      %s237 = smul.addr %s236, 8
      %s238 = smul.addr %s237, 4
      %s239 = scalar_lea.vmem %s3, %s238
      %p240 = scmp.lt.s32.totalorder %s17, 1
      %s241 = scalar_select %p240, %s17, 1
      %s242 = smul.addr %s241, 8
      %s243 = smul.addr %s242, 8
      %s244 = scalar_lea.vmem %s4, %s243
      %p245 = scmp.lt.s32.totalorder %s17, 1
      %s246 = scalar_select %p245, %s17, 1
      %s247 = smul.addr %s246, 8
      %s248 = smul.addr %s247, 8
      %s249 = scalar_lea.vmem %s5, %s248
      %v250 = vld [vmem:[%s234] sm:$0xf]
      %v251 = vld [vmem:[%s234 + $0x8] sm:$0xf]
      %v252 = vld [vmem:[%s234 + $0x10] sm:$0xf]
      %v253 = vld [vmem:[%s234 + $0x18] sm:$0xf]
      %v254 = vld [vmem:[%s234 + $0x20] sm:$0xf]
      %v255 = vld [vmem:[%s234 + $0x28] sm:$0xf]
      %v256 = vld [vmem:[%s234 + $0x30] sm:$0xf]
      %v257 = vld [vmem:[%s234 + $0x38] sm:$0xf]
      %v258 = vld [vmem:[%s234 + $0x40] sm:$0xf]
      %v259 = vld [vmem:[%s234 + $0x48] sm:$0xf]
      %v260 = vld [vmem:[%s234 + $0x50] sm:$0xf]
      %v261 = vld [vmem:[%s234 + $0x58] sm:$0xf]
      %v262 = vld [vmem:[%s234 + $0x60] sm:$0xf]
      %v263 = vld [vmem:[%s234 + $0x68] sm:$0xf]
      %v264 = vld [vmem:[%s234 + $0x70] sm:$0xf]
      %v265 = vld [vmem:[%s234 + $0x78] sm:$0xf]
      %v266 = vld [vmem:[%s1] sm:$0xf]
      %v267 = vld [vmem:[%s1 + $0x4] sm:$0xf]
      %v268 = vld [vmem:[%s1 + $0x8] sm:$0xf]
      %v269 = vld [vmem:[%s1 + $0xc] sm:$0xf]
      %v270 = vld [vmem:[%s1 + $0x10] sm:$0xf]
      %v271 = vld [vmem:[%s1 + $0x14] sm:$0xf]
      %v272 = vld [vmem:[%s1 + $0x18] sm:$0xf]
      %v273 = vld [vmem:[%s1 + $0x1c] sm:$0xf]
      %v274 = vld [vmem:[%s234] sm:$0xff]
      %v275 = vld [vmem:[%s234 + $0x8] sm:$0xff]
      %v276 = vld [vmem:[%s234 + $0x10] sm:$0xff]
      %v277 = vld [vmem:[%s234 + $0x18] sm:$0xff]
      %v278 = vld [vmem:[%s234 + $0x20] sm:$0xff]
      %v279 = vld [vmem:[%s234 + $0x28] sm:$0xff]
      %v280 = vld [vmem:[%s234 + $0x30] sm:$0xff]
      %v281 = vld [vmem:[%s234 + $0x38] sm:$0xff]
      %v282 = vld [vmem:[%s234 + $0x40] sm:$0xff]
      %v283 = vld [vmem:[%s234 + $0x48] sm:$0xff]
      %v284 = vld [vmem:[%s234 + $0x50] sm:$0xff]
      %v285 = vld [vmem:[%s234 + $0x58] sm:$0xff]
      %v286 = vld [vmem:[%s234 + $0x60] sm:$0xff]
      %v287 = vld [vmem:[%s234 + $0x68] sm:$0xff]
      %v288 = vld [vmem:[%s234 + $0x70] sm:$0xff]
      %v289 = vld [vmem:[%s234 + $0x78] sm:$0xff]
      %s290 = scalar_lea.vmem %s1, 32
      %v291 = vld [vmem:[%s290] sm:$0xf]
      %v292 = vld [vmem:[%s290 + $0x4] sm:$0xf]
      %v293 = vld [vmem:[%s290 + $0x8] sm:$0xf]
      %v294 = vld [vmem:[%s290 + $0xc] sm:$0xf]
      %v295 = vld [vmem:[%s290 + $0x10] sm:$0xf]
      %v296 = vld [vmem:[%s290 + $0x14] sm:$0xf]
      %v297 = vld [vmem:[%s290 + $0x18] sm:$0xf]
      %v298 = vld [vmem:[%s290 + $0x1c] sm:$0xf]
      %v307 = vunpack.c.l.b16 %v291
      %v308 = vunpack.c.l.b16 %v292
      %v309 = vunpack.c.l.b16 %v293
      %v310 = vunpack.c.l.b16 %v294
      %v311 = vunpack.c.l.b16 %v295
      %v312 = vunpack.c.l.b16 %v296
      %v313 = vunpack.c.l.b16 %v297
      %v314 = vunpack.c.l.b16 %v298
      %v315 = vpack.c.b16 %v308, %v307
      %v316 = vpack.c.b16 %v310, %v309
      %v317 = vpack.c.b16 %v312, %v311
      %v318 = vpack.c.b16 %v314, %v313
      %v339 = vunpack.c.l.b16 %v274
      %v340 = vunpack.c.h.b16 %v274
      %v341 = vunpack.c.l.b16 %v275
      %v342 = vunpack.c.h.b16 %v275
      %v343 = vunpack.c.l.b16 %v276
      %v344 = vunpack.c.h.b16 %v276
      %v345 = vunpack.c.l.b16 %v277
      %v346 = vunpack.c.h.b16 %v277
      %v347 = vunpack.c.l.b16 %v278
      %v348 = vunpack.c.h.b16 %v278
      %v349 = vunpack.c.l.b16 %v279
      %v350 = vunpack.c.h.b16 %v279
      %v351 = vunpack.c.l.b16 %v280
      %v352 = vunpack.c.h.b16 %v280
      %v353 = vunpack.c.l.b16 %v281
      %v354 = vunpack.c.h.b16 %v281
      %v355 = vunpack.c.l.b16 %v282
      %v356 = vunpack.c.h.b16 %v282
      %v357 = vunpack.c.l.b16 %v283
      %v358 = vunpack.c.h.b16 %v283
      %v359 = vunpack.c.l.b16 %v284
      %v360 = vunpack.c.h.b16 %v284
      %v361 = vunpack.c.l.b16 %v285
      %v362 = vunpack.c.h.b16 %v285
      %v363 = vunpack.c.l.b16 %v286
      %v364 = vunpack.c.h.b16 %v286
      %v365 = vunpack.c.l.b16 %v287
      %v366 = vunpack.c.h.b16 %v287
      %v367 = vunpack.c.l.b16 %v288
      %v368 = vunpack.c.h.b16 %v288
      %v369 = vunpack.c.l.b16 %v289
      %v370 = vunpack.c.h.b16 %v289
      %v371 = vpack.c.b16 %v341, %v339
      %v372 = vpack.c.b16 %v342, %v340
      %v373 = vpack.c.b16 %v345, %v343
      %v374 = vpack.c.b16 %v346, %v344
      %v375 = vpack.c.b16 %v349, %v347
      %v376 = vpack.c.b16 %v350, %v348
      %v377 = vpack.c.b16 %v353, %v351
      %v378 = vpack.c.b16 %v354, %v352
      %v379 = vpack.c.b16 %v357, %v355
      %v380 = vpack.c.b16 %v358, %v356
      %v381 = vpack.c.b16 %v361, %v359
      %v382 = vpack.c.b16 %v362, %v360
      %v383 = vpack.c.b16 %v365, %v363
      %v384 = vpack.c.b16 %v366, %v364
      %v385 = vpack.c.b16 %v369, %v367
      %v386 = vpack.c.b16 %v370, %v368
      %387 = vrot.lane.b32.xlu0 %v371, 127
      %v388 = vpop.permute.xlu0 %387
      %389 = vrot.lane.b32.xlu0 %v372, 127
      %v390 = vpop.permute.xlu0 %389
      %391 = vrot.lane.b32.xlu0 %v373, 127
      %v392 = vpop.permute.xlu0 %391
      %393 = vrot.lane.b32.xlu0 %v374, 127
      %v394 = vpop.permute.xlu0 %393
      %395 = vrot.lane.b32.xlu0 %v375, 127
      %v396 = vpop.permute.xlu0 %395
      %397 = vrot.lane.b32.xlu0 %v376, 127
      %v398 = vpop.permute.xlu0 %397
      %399 = vrot.lane.b32.xlu0 %v377, 127
      %v400 = vpop.permute.xlu0 %399
      %401 = vrot.lane.b32.xlu0 %v378, 127
      %v402 = vpop.permute.xlu0 %401
      %403 = vrot.lane.b32.xlu0 %v379, 127
      %v404 = vpop.permute.xlu0 %403
      %405 = vrot.lane.b32.xlu0 %v380, 127
      %v406 = vpop.permute.xlu0 %405
      %407 = vrot.lane.b32.xlu0 %v381, 127
      %v408 = vpop.permute.xlu0 %407
      %409 = vrot.lane.b32.xlu0 %v382, 127
      %v410 = vpop.permute.xlu0 %409
      %411 = vrot.lane.b32.xlu0 %v383, 127
      %v412 = vpop.permute.xlu0 %411
      %413 = vrot.lane.b32.xlu0 %v384, 127
      %v414 = vpop.permute.xlu0 %413
      %415 = vrot.lane.b32.xlu0 %v385, 127
      %v416 = vpop.permute.xlu0 %415
      %417 = vrot.lane.b32.xlu0 %v386, 127
      %v418 = vpop.permute.xlu0 %417
      %vm419 = vcmask 1039360
      %v420 = vsel %vm419, %v388, %v390
      %v421 = vsel %vm419, %v392, %v394
      %v422 = vsel %vm419, %v396, %v398
      %v423 = vsel %vm419, %v400, %v402
      %v424 = vsel %vm419, %v404, %v406
      %v425 = vsel %vm419, %v408, %v410
      %v426 = vsel %vm419, %v412, %v414
      %v427 = vsel %vm419, %v416, %v418
      %436 = vmatpush.bf16.msra.mxu0 %v427
      %437 = vmatpush.bf16.msra.mxu0 %v426
      %438 = vmatpush.bf16.msra.mxu0 %v425
      %439 = vmatpush.bf16.msra.mxu0 %v424
      %440 = vmatpush.bf16.msra.mxu0 %v423
      %441 = vmatpush.bf16.msra.mxu0 %v422
      %442 = vmatpush.bf16.msra.mxu0 %v421
      %443 = vmatpush.bf16.msra.mxu0 %v420
      %444 = vmatmul.bf16.gmra.mxu0 %v315
      %v445 = vpop.f32.mrf.mxu0
      %v446 = vadd.f32 0.0, %v445
      %v447 = vpop.f32.mrf.mxu0
      %v448 = vadd.f32 0.0, %v447
      %449 = vmatmul.bf16.gmra.mxu0 %v316
      %v450 = vpop.f32.mrf.mxu0
      %v451 = vadd.f32 0.0, %v450
      %v452 = vpop.f32.mrf.mxu0
      %v453 = vadd.f32 0.0, %v452
      %454 = vmatmul.bf16.gmra.mxu0 %v317
      %v455 = vpop.f32.mrf.mxu0
      %v456 = vadd.f32 0.0, %v455
      %v457 = vpop.f32.mrf.mxu0
      %v458 = vadd.f32 0.0, %v457
      %459 = vmatmul.bf16.gmra.mxu0 %v318
      %v460 = vpop.f32.mrf.mxu0
      %v461 = vadd.f32 0.0, %v460
      %v462 = vpop.f32.mrf.mxu0
      %v463 = vadd.f32 0.0, %v462
      %464 = vdwg.mxu0
      %v473 = vunpack.c.l.b16 %v266
      %v474 = vunpack.c.l.b16 %v267
      %v475 = vunpack.c.l.b16 %v268
      %v476 = vunpack.c.l.b16 %v269
      %v477 = vunpack.c.l.b16 %v270
      %v478 = vunpack.c.l.b16 %v271
      %v479 = vunpack.c.l.b16 %v272
      %v480 = vunpack.c.l.b16 %v273
      %v481 = vpack.c.b16 %v474, %v473
      %v482 = vpack.c.b16 %v476, %v475
      %v483 = vpack.c.b16 %v478, %v477
      %v484 = vpack.c.b16 %v480, %v479
      %v505 = vunpack.c.l.b16 %v250
      %v506 = vunpack.c.l.b16 %v251
      %v507 = vunpack.c.l.b16 %v252
      %v508 = vunpack.c.l.b16 %v253
      %v509 = vunpack.c.l.b16 %v254
      %v510 = vunpack.c.l.b16 %v255
      %v511 = vunpack.c.l.b16 %v256
      %v512 = vunpack.c.l.b16 %v257
      %v513 = vunpack.c.l.b16 %v258
      %v514 = vunpack.c.l.b16 %v259
      %v515 = vunpack.c.l.b16 %v260
      %v516 = vunpack.c.l.b16 %v261
      %v517 = vunpack.c.l.b16 %v262
      %v518 = vunpack.c.l.b16 %v263
      %v519 = vunpack.c.l.b16 %v264
      %v520 = vunpack.c.l.b16 %v265
      %v521 = vpack.c.b16 %v506, %v505
      %v522 = vpack.c.b16 %v508, %v507
      %v523 = vpack.c.b16 %v510, %v509
      %v524 = vpack.c.b16 %v512, %v511
      %v525 = vpack.c.b16 %v514, %v513
      %v526 = vpack.c.b16 %v516, %v515
      %v527 = vpack.c.b16 %v518, %v517
      %v528 = vpack.c.b16 %v520, %v519
      %537 = vmatpush.bf16.msra.mxu0 %v528
      %538 = vmatpush.bf16.msra.mxu0 %v527
      %539 = vmatpush.bf16.msra.mxu0 %v526
      %540 = vmatpush.bf16.msra.mxu0 %v525
      %541 = vmatpush.bf16.msra.mxu0 %v524
      %542 = vmatpush.bf16.msra.mxu0 %v523
      %543 = vmatpush.bf16.msra.mxu0 %v522
      %544 = vmatpush.bf16.msra.mxu0 %v521
      %545 = vmatmul.bf16.gmra.mxu0 %v481
      %v546 = vpop.f32.mrf.mxu0
      %v547 = vadd.f32 %v446, %v546
      %v548 = vpop.f32.mrf.mxu0
      %v549 = vadd.f32 %v448, %v548
      %550 = vmatmul.bf16.gmra.mxu0 %v482
      %v551 = vpop.f32.mrf.mxu0
      %v552 = vadd.f32 %v451, %v551
      %v553 = vpop.f32.mrf.mxu0
      %v554 = vadd.f32 %v453, %v553
      %555 = vmatmul.bf16.gmra.mxu0 %v483
      %v556 = vpop.f32.mrf.mxu0
      %v557 = vadd.f32 %v456, %v556
      %v558 = vpop.f32.mrf.mxu0
      %v559 = vadd.f32 %v458, %v558
      %560 = vmatmul.bf16.gmra.mxu0 %v484
      %v561 = vpop.f32.mrf.mxu0
      %v562 = vadd.f32 %v461, %v561
      %v563 = vpop.f32.mrf.mxu0
      %v564 = vadd.f32 %v463, %v563
      %565 = vdwg.mxu0
      %s566 = scalar_lea.vmem %s1, 64
      %v567 = vld [vmem:[%s566] sm:$0xf]
      %v568 = vld [vmem:[%s566 + $0x4] sm:$0xf]
      %v569 = vld [vmem:[%s566 + $0x8] sm:$0xf]
      %v570 = vld [vmem:[%s566 + $0xc] sm:$0xf]
      %v571 = vld [vmem:[%s566 + $0x10] sm:$0xf]
      %v572 = vld [vmem:[%s566 + $0x14] sm:$0xf]
      %v573 = vld [vmem:[%s566 + $0x18] sm:$0xf]
      %v574 = vld [vmem:[%s566 + $0x1c] sm:$0xf]
      %v583 = vunpack.c.l.b16 %v567
      %v584 = vunpack.c.l.b16 %v568
      %v585 = vunpack.c.l.b16 %v569
      %v586 = vunpack.c.l.b16 %v570
      %v587 = vunpack.c.l.b16 %v571
      %v588 = vunpack.c.l.b16 %v572
      %v589 = vunpack.c.l.b16 %v573
      %v590 = vunpack.c.l.b16 %v574
      %v591 = vpack.c.b16 %v584, %v583
      %v592 = vpack.c.b16 %v586, %v585
      %v593 = vpack.c.b16 %v588, %v587
      %v594 = vpack.c.b16 %v590, %v589
      %599 = vrot.lane.b32.xlu0 %v371, 123
      %v600 = vpop.permute.xlu0 %599
      %601 = vrot.lane.b32.xlu0 %v372, 123
      %v602 = vpop.permute.xlu0 %601
      %603 = vrot.lane.b32.xlu0 %v373, 123
      %v604 = vpop.permute.xlu0 %603
      %605 = vrot.lane.b32.xlu0 %v374, 123
      %v606 = vpop.permute.xlu0 %605
      %607 = vrot.lane.b32.xlu0 %v375, 123
      %v608 = vpop.permute.xlu0 %607
      %609 = vrot.lane.b32.xlu0 %v376, 123
      %v610 = vpop.permute.xlu0 %609
      %611 = vrot.lane.b32.xlu0 %v377, 123
      %v612 = vpop.permute.xlu0 %611
      %613 = vrot.lane.b32.xlu0 %v378, 123
      %v614 = vpop.permute.xlu0 %613
      %615 = vrot.lane.b32.xlu0 %v379, 123
      %v616 = vpop.permute.xlu0 %615
      %617 = vrot.lane.b32.xlu0 %v380, 123
      %v618 = vpop.permute.xlu0 %617
      %619 = vrot.lane.b32.xlu0 %v381, 123
      %v620 = vpop.permute.xlu0 %619
      %621 = vrot.lane.b32.xlu0 %v382, 123
      %v622 = vpop.permute.xlu0 %621
      %623 = vrot.lane.b32.xlu0 %v383, 123
      %v624 = vpop.permute.xlu0 %623
      %625 = vrot.lane.b32.xlu0 %v384, 123
      %v626 = vpop.permute.xlu0 %625
      %627 = vrot.lane.b32.xlu0 %v385, 123
      %v628 = vpop.permute.xlu0 %627
      %629 = vrot.lane.b32.xlu0 %v386, 123
      %v630 = vpop.permute.xlu0 %629
      %vm631 = vcmask 1006592
      %v632 = vsel %vm631, %v600, %v602
      %v633 = vsel %vm631, %v604, %v606
      %v634 = vsel %vm631, %v608, %v610
      %v635 = vsel %vm631, %v612, %v614
      %v636 = vsel %vm631, %v616, %v618
      %v637 = vsel %vm631, %v620, %v622
      %v638 = vsel %vm631, %v624, %v626
      %v639 = vsel %vm631, %v628, %v630
      %648 = vmatpush.bf16.msra.mxu0 %v639
      %649 = vmatpush.bf16.msra.mxu0 %v638
      %650 = vmatpush.bf16.msra.mxu0 %v637
      %651 = vmatpush.bf16.msra.mxu0 %v636
      %652 = vmatpush.bf16.msra.mxu0 %v635
      %653 = vmatpush.bf16.msra.mxu0 %v634
      %654 = vmatpush.bf16.msra.mxu0 %v633
      %655 = vmatpush.bf16.msra.mxu0 %v632
      %656 = vmatmul.bf16.gmra.mxu0 %v591
      %v657 = vpop.f32.mrf.mxu0
      %v658 = vadd.f32 0.0, %v657
      %v659 = vpop.f32.mrf.mxu0
      %v660 = vadd.f32 0.0, %v659
      %661 = vmatmul.bf16.gmra.mxu0 %v592
      %v662 = vpop.f32.mrf.mxu0
      %v663 = vadd.f32 0.0, %v662
      %v664 = vpop.f32.mrf.mxu0
      %v665 = vadd.f32 0.0, %v664
      %666 = vmatmul.bf16.gmra.mxu0 %v593
      %v667 = vpop.f32.mrf.mxu0
      %v668 = vadd.f32 0.0, %v667
      %v669 = vpop.f32.mrf.mxu0
      %v670 = vadd.f32 0.0, %v669
      %671 = vmatmul.bf16.gmra.mxu0 %v594
      %v672 = vpop.f32.mrf.mxu0
      %v673 = vadd.f32 0.0, %v672
      %v674 = vpop.f32.mrf.mxu0
      %v675 = vadd.f32 0.0, %v674
      %676 = vdwg.mxu0
      %v677 = vadd.f32 %v547, %v658
      %v678 = vadd.f32 %v549, %v660
      %v679 = vadd.f32 %v552, %v663
      %v680 = vadd.f32 %v554, %v665
      %v681 = vadd.f32 %v557, %v668
      %v682 = vadd.f32 %v559, %v670
      %v683 = vadd.f32 %v562, %v673
      %v684 = vadd.f32 %v564, %v675
      %s685 = scalar_lea.vmem %s1, 96
      %v686 = vld [vmem:[%s685] sm:$0xf]
      %v687 = vld [vmem:[%s685 + $0x4] sm:$0xf]
      %v688 = vld [vmem:[%s685 + $0x8] sm:$0xf]
      %v689 = vld [vmem:[%s685 + $0xc] sm:$0xf]
      %v690 = vld [vmem:[%s685 + $0x10] sm:$0xf]
      %v691 = vld [vmem:[%s685 + $0x14] sm:$0xf]
      %v692 = vld [vmem:[%s685 + $0x18] sm:$0xf]
      %v693 = vld [vmem:[%s685 + $0x1c] sm:$0xf]
      %v702 = vunpack.c.l.b16 %v686
      %v703 = vunpack.c.l.b16 %v687
      %v704 = vunpack.c.l.b16 %v688
      %v705 = vunpack.c.l.b16 %v689
      %v706 = vunpack.c.l.b16 %v690
      %v707 = vunpack.c.l.b16 %v691
      %v708 = vunpack.c.l.b16 %v692
      %v709 = vunpack.c.l.b16 %v693
      %v710 = vpack.c.b16 %v703, %v702
      %v711 = vpack.c.b16 %v705, %v704
      %v712 = vpack.c.b16 %v707, %v706
      %v713 = vpack.c.b16 %v709, %v708
      %718 = vrot.lane.b32.xlu0 %v371, 122
      %v719 = vpop.permute.xlu0 %718
      %720 = vrot.lane.b32.xlu0 %v372, 122
      %v721 = vpop.permute.xlu0 %720
      %722 = vrot.lane.b32.xlu0 %v373, 122
      %v723 = vpop.permute.xlu0 %722
      %724 = vrot.lane.b32.xlu0 %v374, 122
      %v725 = vpop.permute.xlu0 %724
      %726 = vrot.lane.b32.xlu0 %v375, 122
      %v727 = vpop.permute.xlu0 %726
      %728 = vrot.lane.b32.xlu0 %v376, 122
      %v729 = vpop.permute.xlu0 %728
      %730 = vrot.lane.b32.xlu0 %v377, 122
      %v731 = vpop.permute.xlu0 %730
      %732 = vrot.lane.b32.xlu0 %v378, 122
      %v733 = vpop.permute.xlu0 %732
      %734 = vrot.lane.b32.xlu0 %v379, 122
      %v735 = vpop.permute.xlu0 %734
      %736 = vrot.lane.b32.xlu0 %v380, 122
      %v737 = vpop.permute.xlu0 %736
      %738 = vrot.lane.b32.xlu0 %v381, 122
      %v739 = vpop.permute.xlu0 %738
      %740 = vrot.lane.b32.xlu0 %v382, 122
      %v741 = vpop.permute.xlu0 %740
      %742 = vrot.lane.b32.xlu0 %v383, 122
      %v743 = vpop.permute.xlu0 %742
      %744 = vrot.lane.b32.xlu0 %v384, 122
      %v745 = vpop.permute.xlu0 %744
      %746 = vrot.lane.b32.xlu0 %v385, 122
      %v747 = vpop.permute.xlu0 %746
      %748 = vrot.lane.b32.xlu0 %v386, 122
      %v749 = vpop.permute.xlu0 %748
      %vm750 = vcmask 998400
      %v751 = vsel %vm750, %v719, %v721
      %v752 = vsel %vm750, %v723, %v725
      %v753 = vsel %vm750, %v727, %v729
      %v754 = vsel %vm750, %v731, %v733
      %v755 = vsel %vm750, %v735, %v737
      %v756 = vsel %vm750, %v739, %v741
      %v757 = vsel %vm750, %v743, %v745
      %v758 = vsel %vm750, %v747, %v749
      %767 = vmatpush.bf16.msra.mxu0 %v758
      %768 = vmatpush.bf16.msra.mxu0 %v757
      %769 = vmatpush.bf16.msra.mxu0 %v756
      %770 = vmatpush.bf16.msra.mxu0 %v755
      %771 = vmatpush.bf16.msra.mxu0 %v754
      %772 = vmatpush.bf16.msra.mxu0 %v753
      %773 = vmatpush.bf16.msra.mxu0 %v752
      %774 = vmatpush.bf16.msra.mxu0 %v751
      %775 = vmatmul.bf16.gmra.mxu0 %v710
      %v776 = vpop.f32.mrf.mxu0
      %v777 = vadd.f32 0.0, %v776
      %v778 = vpop.f32.mrf.mxu0
      %v779 = vadd.f32 0.0, %v778
      %780 = vmatmul.bf16.gmra.mxu0 %v711
      %v781 = vpop.f32.mrf.mxu0
      %v782 = vadd.f32 0.0, %v781
      %v783 = vpop.f32.mrf.mxu0
      %v784 = vadd.f32 0.0, %v783
      %785 = vmatmul.bf16.gmra.mxu0 %v712
      %v786 = vpop.f32.mrf.mxu0
      %v787 = vadd.f32 0.0, %v786
      %v788 = vpop.f32.mrf.mxu0
      %v789 = vadd.f32 0.0, %v788
      %790 = vmatmul.bf16.gmra.mxu0 %v713
      %v791 = vpop.f32.mrf.mxu0
      %v792 = vadd.f32 0.0, %v791
      %v793 = vpop.f32.mrf.mxu0
      %v794 = vadd.f32 0.0, %v793
      %795 = vdwg.mxu0
      %v796 = vadd.f32 %v677, %v777
      %v797 = vadd.f32 %v678, %v779
      %v798 = vadd.f32 %v679, %v782
      %v799 = vadd.f32 %v680, %v784
      %v800 = vadd.f32 %v681, %v787
      %v801 = vadd.f32 %v682, %v789
      %v802 = vadd.f32 %v683, %v792
      %v803 = vadd.f32 %v684, %v794
      %v804 = vpack.c.bf16 %v796, %v796
      %v805 = vpack.c.bf16 %v797, %v797
      %v806 = vpack.c.bf16 %v798, %v798
      %v807 = vpack.c.bf16 %v799, %v799
      %v808 = vpack.c.bf16 %v800, %v800
      %v809 = vpack.c.bf16 %v801, %v801
      %v810 = vpack.c.bf16 %v802, %v802
      %v811 = vpack.c.bf16 %v803, %v803
      %812 = vst [vmem:[%s239] sm:$0xf] %v804
      %813 = vst [vmem:[%s239 + $0x4] sm:$0xf] %v805
      %814 = vst [vmem:[%s239 + $0x8] sm:$0xf] %v806
      %815 = vst [vmem:[%s239 + $0xc] sm:$0xf] %v807
      %816 = vst [vmem:[%s239 + $0x10] sm:$0xf] %v808
      %817 = vst [vmem:[%s239 + $0x14] sm:$0xf] %v809
      %818 = vst [vmem:[%s239 + $0x18] sm:$0xf] %v810
      %819 = vst [vmem:[%s239 + $0x1c] sm:$0xf] %v811
      %v820 = vld [vmem:[%s2] sm:$0x1]
      %v822 = vperm.slane %v820, 0
      %v824 = vmul.f32 %v796, %v822
      %v825 = vmul.f32 %v797, %v822
      %v826 = vmul.f32 %v798, %v822
      %v827 = vmul.f32 %v799, %v822
      %v828 = vmul.f32 %v800, %v822
      %v829 = vmul.f32 %v801, %v822
      %v830 = vmul.f32 %v802, %v822
      %v831 = vmul.f32 %v803, %v822
      %832 = vadd.xlane.f32.xlu0 %v824
      %v833 = vpop.xlane.xlu0 %832
      %834 = vadd.xlane.f32.xlu0 %v825
      %v835 = vpop.xlane.xlu0 %834
      %836 = vadd.xlane.f32.xlu0 %v826
      %v837 = vpop.xlane.xlu0 %836
      %838 = vadd.xlane.f32.xlu0 %v827
      %v839 = vpop.xlane.xlu0 %838
      %840 = vadd.xlane.f32.xlu0 %v828
      %v841 = vpop.xlane.xlu0 %840
      %842 = vadd.xlane.f32.xlu0 %v829
      %v843 = vpop.xlane.xlu0 %842
      %844 = vadd.xlane.f32.xlu0 %v830
      %v845 = vpop.xlane.xlu0 %844
      %846 = vadd.xlane.f32.xlu0 %v831
      %v847 = vpop.xlane.xlu0 %846
      %vm848 = vcmask 7168
      %849 = vst.msk [vmem:[%s244] sm:$0xff] %vm848, %v833
      %850 = vst.msk [vmem:[%s244 + $0x8] sm:$0xff] %vm848, %v835
      %851 = vst.msk [vmem:[%s244 + $0x10] sm:$0xff] %vm848, %v837
      %852 = vst.msk [vmem:[%s244 + $0x18] sm:$0xff] %vm848, %v839
      %853 = vst.msk [vmem:[%s244 + $0x20] sm:$0xff] %vm848, %v841
      %854 = vst.msk [vmem:[%s244 + $0x28] sm:$0xff] %vm848, %v843
      %855 = vst.msk [vmem:[%s244 + $0x30] sm:$0xff] %vm848, %v845
      %856 = vst.msk [vmem:[%s244 + $0x38] sm:$0xff] %vm848, %v847
      %v857 = vmul.f32 %v824, %v796
      %v858 = vmul.f32 %v825, %v797
      %v859 = vmul.f32 %v826, %v798
      %v860 = vmul.f32 %v827, %v799
      %v861 = vmul.f32 %v828, %v800
      %v862 = vmul.f32 %v829, %v801
      %v863 = vmul.f32 %v830, %v802
      %v864 = vmul.f32 %v831, %v803
      %865 = vadd.xlane.f32.xlu0 %v857
      %v866 = vpop.xlane.xlu0 %865
      %867 = vadd.xlane.f32.xlu0 %v858
      %v868 = vpop.xlane.xlu0 %867
      %869 = vadd.xlane.f32.xlu0 %v859
      %v870 = vpop.xlane.xlu0 %869
      %871 = vadd.xlane.f32.xlu0 %v860
      %v872 = vpop.xlane.xlu0 %871
      %873 = vadd.xlane.f32.xlu0 %v861
      %v874 = vpop.xlane.xlu0 %873
      %875 = vadd.xlane.f32.xlu0 %v862
      %v876 = vpop.xlane.xlu0 %875
      %877 = vadd.xlane.f32.xlu0 %v863
      %v878 = vpop.xlane.xlu0 %877
      %879 = vadd.xlane.f32.xlu0 %v864
      %v880 = vpop.xlane.xlu0 %879
      %881 = vst.msk [vmem:[%s249] sm:$0xff] %vm848, %v866
      %882 = vst.msk [vmem:[%s249 + $0x8] sm:$0xff] %vm848, %v868
      %883 = vst.msk [vmem:[%s249 + $0x10] sm:$0xff] %vm848, %v870
      %884 = vst.msk [vmem:[%s249 + $0x18] sm:$0xff] %vm848, %v872
      %885 = vst.msk [vmem:[%s249 + $0x20] sm:$0xff] %vm848, %v874
      %886 = vst.msk [vmem:[%s249 + $0x28] sm:$0xff] %vm848, %v876
      %887 = vst.msk [vmem:[%s249 + $0x30] sm:$0xff] %vm848, %v878
      %888 = vst.msk [vmem:[%s249 + $0x38] sm:$0xff] %vm848, %v880
      %p889 = scmp.lt.s32.totalorder %s17, 1
      %s890 = scalar_select %p889, %s17, 1
      %s891 = smul.addr %s890, 8
      %s892 = smul.addr %s891, 4
      %s893 = scalar_lea.vmem %s3, %s892
      %p894 = scmp.lt.s32.totalorder %s17, 1
      %s895 = scalar_select %p894, %s17, 1
      %s896 = smul.addr %s895, 8
      %s897 = smul.addr %s896, 8
      %s898 = scalar_lea.vmem %s4, %s897
      %p899 = scmp.lt.s32.totalorder %s17, 1
      %s900 = scalar_select %p899, %s17, 1
      %s901 = smul.addr %s900, 8
      %s902 = smul.addr %s901, 8
      %s903 = scalar_lea.vmem %s5, %s902
      // Predicated region
      $region33: #{discriminator_forward.8} parent=31 // pred_check
        %p904 = pneg %p103
      $region34: #{discriminator_forward.8} parent=31 // pred_check_branch
        %906 = sbr.rel (%p904) target = $region36
      $region35: #{discriminator_forward.8} parent=31 // pred_region
        _
      $region36: #{discriminator_forward.8} parent=31 // pred_fallthru
        _
      // Predicated region
      $region37: #{discriminator_forward.8} parent=31 // pred_check
        %p907 = pneg %p129
      $region38: #{discriminator_forward.8} parent=31 // pred_check_branch
        %909 = sbr.rel (%p907) target = $region40
      $region39: #{discriminator_forward.8} parent=31 // pred_region
        _
      $region40: #{discriminator_forward.8} parent=31 // pred_fallthru
        _
      // Predicated region
      $region41: #{discriminator_forward.8} parent=31 // pred_check
        %p910 = pneg %p155
      $region42: #{discriminator_forward.8} parent=31 // pred_check_branch
        %912 = sbr.rel (%p910) target = $region44
      $region43: #{discriminator_forward.8} parent=31 // pred_region
        _
      $region44: #{discriminator_forward.8} parent=31 // pred_fallthru
        _
    $region32: #{discriminator_forward.8} parent=5 // pred_fallthru
      _
    %p913 = scmp.le.s32.totalorder 2, %s12
    // Predicated region
    $region45: #{discriminator_forward.8} parent=5 // pred_check
      %p914 = pneg %p913
    $region46: #{discriminator_forward.8} parent=5 // pred_check_branch
      %916 = sbr.rel (%p914) target = $region48
    $region47: #{discriminator_forward.8} parent=5 // pred_region
      %s917 = ssub.s32 %s12, 2
      // Predicated region
      $region49: #{discriminator_forward.8} parent=47 // pred_check
        %p918 = pneg %p109
      $region50: #{discriminator_forward.8} parent=47 // pred_check_branch
        %920 = sbr.rel (%p918) target = $region52
      $region51: #{discriminator_forward.8} parent=47 // pred_region
        %p921 = scmp.lt.s32.totalorder %s18, 1
        %s922 = scalar_select %p921, %s18, 1
        %s923 = smul.addr %s922, 8
        %s924 = smul.addr %s923, 4
        %s925 = scalar_lea.vmem %s3, %s924
      $region52: #{discriminator_forward.8} parent=47 // pred_fallthru
        _
      // Predicated region
      $region53: #{discriminator_forward.8} parent=47 // pred_check
        %p926 = pneg %p135
      $region54: #{discriminator_forward.8} parent=47 // pred_check_branch
        %928 = sbr.rel (%p926) target = $region56
      $region55: #{discriminator_forward.8} parent=47 // pred_region
        %p929 = scmp.lt.s32.totalorder %s18, 1
        %s930 = scalar_select %p929, %s18, 1
        %s931 = smul.addr %s930, 8
        %s932 = smul.addr %s931, 8
        %s933 = scalar_lea.vmem %s4, %s932
      $region56: #{discriminator_forward.8} parent=47 // pred_fallthru
        _
      // Predicated region
      $region57: #{discriminator_forward.8} parent=47 // pred_check
        %p934 = pneg %p161
      $region58: #{discriminator_forward.8} parent=47 // pred_check_branch
        %936 = sbr.rel (%p934) target = $region60
      $region59: #{discriminator_forward.8} parent=47 // pred_region
        %p937 = scmp.lt.s32.totalorder %s18, 1
        %s938 = scalar_select %p937, %s18, 1
        %s939 = smul.addr %s938, 8
        %s940 = smul.addr %s939, 8
        %s941 = scalar_lea.vmem %s5, %s940
      $region60: #{discriminator_forward.8} parent=47 // pred_fallthru
        _
    $region48: #{discriminator_forward.8} parent=5 // pred_fallthru
      _
  $region6: #{discriminator_forward.8} parent=0 // loop_footer
    %s16 = sadd.s32 1, %s12
  $region7: #{discriminator_forward.8} parent=0 // loop_footer_branch
    %11 = sbr.rel target = $region3
  $region8: #{discriminator_forward.8} parent=0 // loop_exit
    _

</llo_original>
